<compile_context>
chip_gen: v6e
topology: v6e:2x2x1
jax: 0.10.0
libtpu: 0.0.40
codegen_flags: <defaults>
</compile_context>

<pallas_src>
import functools

import jax
import jax.numpy as jnp
from jax.experimental import pallas as pl
from jax.experimental.pallas import tpu as pltpu

HIDDEN = 512
IN_F = 3
IN_PAD = 8      # K padded to 8 so layer 1 runs on the MXU
OUT_F = 2
OUT_PAD = 128   # lane-dense padded width of the final layer / output


def mlp_diffusion_kernel(x_ref,
                         w1_ref, b1_ref,
                         w2_ref, b2_ref,
                         w3_ref, b3_ref,
                         w4_ref, b4_ref,
                         o_ref):
    mm_dtype = w1_ref.dtype                      # bf16 (default) or f32 (verification)

    # Layer 1 on the MXU: (tn, 8) @ (8, 512), f32 accumulation.
    x = x_ref[...].astype(mm_dtype)
    h = jnp.dot(x, w1_ref[...], preferred_element_type=jnp.float32)
    h = jnp.maximum(h.astype(mm_dtype) + b1_ref[...], 0.0)       # bias+ReLU in mm_dtype

    # Layers 2-3: 512x512 MXU matmuls, f32 accumulation, bf16 element-wise math.
    h = jnp.dot(h, w2_ref[...], preferred_element_type=jnp.float32)
    h = jnp.maximum(h.astype(mm_dtype) + b2_ref[...], 0.0)
    h = jnp.dot(h, w3_ref[...], preferred_element_type=jnp.float32)
    h = jnp.maximum(h.astype(mm_dtype) + b3_ref[...], 0.0)

    # Layer 4: 512 -> 128 (zero-padded from 2) so the store is full-lane-width.
    o = jnp.dot(h, w4_ref[...], preferred_element_type=jnp.float32) + b4_ref[...]
    o_ref[...] = o.astype(o_ref.dtype)           # (tn, 128), bf16 on the fast path


def prepare_params(params, matmul_dtype=jnp.bfloat16):
    """One-time weight prep (hoisted out of the per-call hot path).

    - w1 zero-padded (3,512)->(8,512) so layer 1 runs on the MXU.
    - w4/b4 zero-padded to 128 output columns for a lane-dense store.
    - matmul inputs / element-wise biases cast to matmul_dtype (bf16 by default).
    - b4 kept in f32 (added to the f32 MXU accumulation, negligible VALU work).
    """
    prepared = {
        "w1": jnp.pad(params["w1"], ((0, IN_PAD - IN_F), (0, 0))).astype(matmul_dtype),
        "b1": params["b1"].astype(matmul_dtype),
        "w2": params["w2"].astype(matmul_dtype),
        "b2": params["b2"].astype(matmul_dtype),
        "w3": params["w3"].astype(matmul_dtype),
        "b3": params["b3"].astype(matmul_dtype),
        "w4": jnp.pad(params["w4"], ((0, 0), (0, OUT_PAD - OUT_F))).astype(matmul_dtype),
        "b4": jnp.pad(params["b4"], ((0, 0), (0, OUT_PAD - OUT_F))).astype(jnp.float32),
    }
    return prepared


@functools.partial(jax.jit, static_argnames=("tile_n",))
def mlp_diffusion(x, prepared, *, tile_n=1024):
    """x: [N, 3] float32. prepared: output of prepare_params. Returns [N, 2] float32.

    tile_n is the batch tile (sweep 1024-2048 on v6e; keep grid length >= 2 on v7x
    so both TensorCores get work).
    """
    n = x.shape[0]
    mm_dtype = prepared["w1"].dtype
    out_dtype = jnp.float32 if mm_dtype == jnp.float32 else jnp.bfloat16

    # Adapt the tile to small batches; keep it a multiple of 256 (sublane aligned,
    # MXU rows reasonably full) and no larger than requested.
    tile = max(256, (tile_n // 256) * 256)
    tile = min(tile, ((n + 255) // 256) * 256)
    n_pad = ((n + tile - 1) // tile) * tile

    # Pad batch to the tile and K from 3 -> 8 (zero columns feed zero weights).
    x = jnp.pad(x, ((0, n_pad - n), (0, IN_PAD - IN_F)))

    # Grid-invariant weights/biases: untiled, single-buffered VMEM residents.
    def resident():
        return pl.BlockSpec(memory_space=pltpu.MemorySpace.VMEM)

    out = pl.pallas_call(
        mlp_diffusion_kernel,
        out_shape=jax.ShapeDtypeStruct((n_pad, OUT_PAD), out_dtype),
        grid_spec=pltpu.PrefetchScalarGridSpec(
            num_scalar_prefetch=0,
            grid=(n_pad // tile,),
            in_specs=[
                pl.BlockSpec((tile, IN_PAD), lambda i: (i, 0)),   # x tile
                resident(), resident(),   # w1, b1
                resident(), resident(),   # w2, b2
                resident(), resident(),   # w3, b3
                resident(), resident(),   # w4, b4
            ],
            out_specs=pl.BlockSpec((tile, OUT_PAD), lambda i: (i, 0)),
        ),
        compiler_params=pltpu.CompilerParams(
            dimension_semantics=("parallel",),
            # Enough headroom for tile_n up to ~2048 on v5e/v6e while staying well
            # inside v7x's smaller per-core VMEM.
            vmem_limit_bytes=48 << 20,
        ),
    )(x, prepared["w1"], prepared["b1"], prepared["w2"], prepared["b2"],
      prepared["w3"], prepared["b3"], prepared["w4"], prepared["b4"])

    return out[:n, :OUT_F].astype(jnp.float32)


def init_params(key):
    """Deterministic init matching torch.nn.Linear shapes (stored as [in, out])."""
    dims = [(IN_F, HIDDEN), (HIDDEN, HIDDEN), (HIDDEN, HIDDEN), (HIDDEN, OUT_F)]
    params = {}
    for idx, (fan_in, fan_out) in enumerate(dims, start=1):
        key, kw, kb = jax.random.split(key, 3)
        bound = 1.0 / jnp.sqrt(fan_in)  # torch.nn.Linear default uniform bound
        params[f"w{idx}"] = jax.random.uniform(
            kw, (fan_in, fan_out), jnp.float32, -bound, bound)
        params[f"b{idx}"] = jax.random.uniform(
            kb, (1, fan_out), jnp.float32, -bound, bound)
    return params


def mlp_diffusion_ref(x, params):
    h = jnp.maximum(x @ params["w1"] + params["b1"], 0.0)
    h = jnp.maximum(h @ params["w2"] + params["b2"], 0.0)
    h = jnp.maximum(h @ params["w3"] + params["b3"], 0.0)
    return h @ params["w4"] + params["b4"]


if __name__ == "__main__":
    key = jax.random.PRNGKey(0)
    key, kx = jax.random.split(key)

    # Small example; 300 is deliberately NOT a multiple of 256 so the batch-padding
    # path is exercised (pads to 512 -> 2 grid steps with tile=256).
    batch = 300
    x = jax.random.normal(kx, (batch, IN_F), jnp.float32)
    params = init_params(key)

    ref = mlp_diffusion_ref(x, params)

    # Full f32 path: tight check against the JAX reference.
    prepared_f32 = prepare_params(params, matmul_dtype=jnp.float32)
    out_f32 = jax.block_until_ready(mlp_diffusion(x, prepared_f32, tile_n=256))
    assert out_f32.shape == (batch, OUT_F)
    assert jnp.allclose(out_f32, ref, atol=1e-3, rtol=1e-3), \
        "f32 kernel mismatch vs JAX reference"

    # Default bf16-matmul / bf16-elementwise / f32-accumulation fast path.
    prepared_bf16 = prepare_params(params)
    out_bf16 = jax.block_until_ready(mlp_diffusion(x, prepared_bf16, tile_n=1024))
    assert out_bf16.shape == (batch, OUT_F)
    assert jnp.allclose(out_bf16, ref, atol=5e-2, rtol=5e-2), \
        "bf16 kernel mismatch vs JAX reference"

    print("KERNEL_OK")
</pallas_src>

<mosaic_0001>
module attributes {stable_mosaic.version = 11 : i64} {
  func.func @mlp_diffusion_kernel(%arg0: i32, %arg1: memref<256x8xf32, #tpu.memory_space<vmem>>, %arg2: memref<8x512xf32, #tpu.memory_space<vmem>>, %arg3: memref<1x512xf32, #tpu.memory_space<vmem>>, %arg4: memref<512x512xf32, #tpu.memory_space<vmem>>, %arg5: memref<1x512xf32, #tpu.memory_space<vmem>>, %arg6: memref<512x512xf32, #tpu.memory_space<vmem>>, %arg7: memref<1x512xf32, #tpu.memory_space<vmem>>, %arg8: memref<512x128xf32, #tpu.memory_space<vmem>>, %arg9: memref<1x128xf32, #tpu.memory_space<vmem>>, %arg10: memref<256x128xf32, #tpu.memory_space<vmem>>) attributes {dimension_semantics = [#tpu.dimension_semantics<parallel>], iteration_bounds = array<i64: 2>, scalar_prefetch = 0 : i64, scratch_operands = 0 : i64, tpu.core_type = #tpu.core_type<tc>, window_params = [{transform_indices = @transform_0, window_bounds = array<i64: 256, 8>}, {pipeline_mode = #tpu.pipeline_mode<synchronous>, transform_indices = @transform_1, window_bounds = array<i64: 8, 512>}, {pipeline_mode = #tpu.pipeline_mode<synchronous>, transform_indices = @transform_2, window_bounds = array<i64: 1, 512>}, {pipeline_mode = #tpu.pipeline_mode<synchronous>, transform_indices = @transform_3, window_bounds = array<i64: 512, 512>}, {pipeline_mode = #tpu.pipeline_mode<synchronous>, transform_indices = @transform_4, window_bounds = array<i64: 1, 512>}, {pipeline_mode = #tpu.pipeline_mode<synchronous>, transform_indices = @transform_5, window_bounds = array<i64: 512, 512>}, {pipeline_mode = #tpu.pipeline_mode<synchronous>, transform_indices = @transform_6, window_bounds = array<i64: 1, 512>}, {pipeline_mode = #tpu.pipeline_mode<synchronous>, transform_indices = @transform_7, window_bounds = array<i64: 512, 128>}, {pipeline_mode = #tpu.pipeline_mode<synchronous>, transform_indices = @transform_8, window_bounds = array<i64: 1, 128>}, {transform_indices = @transform_9, window_bounds = array<i64: 256, 128>}]} {
    %c0 = arith.constant 0 : index
    %c0_0 = arith.constant 0 : index
    %0 = vector.load %arg1[%c0, %c0_0] : memref<256x8xf32, #tpu.memory_space<vmem>>, vector<256x8xf32>
    %c0_1 = arith.constant 0 : index
    %c0_2 = arith.constant 0 : index
    %1 = vector.load %arg2[%c0_1, %c0_2] : memref<8x512xf32, #tpu.memory_space<vmem>>, vector<8x512xf32>
    %cst = arith.constant dense<0.000000e+00> : vector<256x512xf32>
    %2 = tpu.matmul %0, %1, %cst {dimension_numbers = #tpu.dot_dimension_numbers<[1], [0], [0], [1], [0, 0, 1, 1], [], []>} : vector<256x8xf32>, vector<8x512xf32>, vector<256x512xf32> -> vector<256x512xf32>
    %c0_3 = arith.constant 0 : index
    %c0_4 = arith.constant 0 : index
    %3 = vector.load %arg3[%c0_3, %c0_4] : memref<1x512xf32, #tpu.memory_space<vmem>>, vector<1x512xf32>
    %4 = vector.broadcast %3 : vector<1x512xf32> to vector<256x512xf32>
    %5 = arith.addf %2, %4 : vector<256x512xf32>
    %cst_5 = arith.constant 0.000000e+00 : f32
    %6 = vector.broadcast %cst_5 : f32 to vector<256x512xf32>
    %7 = arith.maximumf %5, %6 : vector<256x512xf32>
    %c0_6 = arith.constant 0 : index
    %c0_7 = arith.constant 0 : index
    %8 = vector.load %arg4[%c0_6, %c0_7] : memref<512x512xf32, #tpu.memory_space<vmem>>, vector<512x512xf32>
    %cst_8 = arith.constant dense<0.000000e+00> : vector<256x512xf32>
    %9 = tpu.matmul %7, %8, %cst_8 {dimension_numbers = #tpu.dot_dimension_numbers<[1], [0], [0], [1], [0, 0, 1, 1], [], []>} : vector<256x512xf32>, vector<512x512xf32>, vector<256x512xf32> -> vector<256x512xf32>
    %c0_9 = arith.constant 0 : index
    %c0_10 = arith.constant 0 : index
    %10 = vector.load %arg5[%c0_9, %c0_10] : memref<1x512xf32, #tpu.memory_space<vmem>>, vector<1x512xf32>
    %11 = vector.broadcast %10 : vector<1x512xf32> to vector<256x512xf32>
    %12 = arith.addf %9, %11 : vector<256x512xf32>
    %cst_11 = arith.constant 0.000000e+00 : f32
    %13 = vector.broadcast %cst_11 : f32 to vector<256x512xf32>
    %14 = arith.maximumf %12, %13 : vector<256x512xf32>
    %c0_12 = arith.constant 0 : index
    %c0_13 = arith.constant 0 : index
    %15 = vector.load %arg6[%c0_12, %c0_13] : memref<512x512xf32, #tpu.memory_space<vmem>>, vector<512x512xf32>
    %cst_14 = arith.constant dense<0.000000e+00> : vector<256x512xf32>
    %16 = tpu.matmul %14, %15, %cst_14 {dimension_numbers = #tpu.dot_dimension_numbers<[1], [0], [0], [1], [0, 0, 1, 1], [], []>} : vector<256x512xf32>, vector<512x512xf32>, vector<256x512xf32> -> vector<256x512xf32>
    %c0_15 = arith.constant 0 : index
    %c0_16 = arith.constant 0 : index
    %17 = vector.load %arg7[%c0_15, %c0_16] : memref<1x512xf32, #tpu.memory_space<vmem>>, vector<1x512xf32>
    %18 = vector.broadcast %17 : vector<1x512xf32> to vector<256x512xf32>
    %19 = arith.addf %16, %18 : vector<256x512xf32>
    %cst_17 = arith.constant 0.000000e+00 : f32
    %20 = vector.broadcast %cst_17 : f32 to vector<256x512xf32>
    %21 = arith.maximumf %19, %20 : vector<256x512xf32>
    %c0_18 = arith.constant 0 : index
    %c0_19 = arith.constant 0 : index
    %22 = vector.load %arg8[%c0_18, %c0_19] : memref<512x128xf32, #tpu.memory_space<vmem>>, vector<512x128xf32>
    %cst_20 = arith.constant dense<0.000000e+00> : vector<256x128xf32>
    %23 = tpu.matmul %21, %22, %cst_20 {dimension_numbers = #tpu.dot_dimension_numbers<[1], [0], [0], [1], [0, 0, 1, 1], [], []>} : vector<256x512xf32>, vector<512x128xf32>, vector<256x128xf32> -> vector<256x128xf32>
    %c0_21 = arith.constant 0 : index
    %c0_22 = arith.constant 0 : index
    %24 = vector.load %arg9[%c0_21, %c0_22] : memref<1x128xf32, #tpu.memory_space<vmem>>, vector<1x128xf32>
    %25 = vector.broadcast %24 : vector<1x128xf32> to vector<256x128xf32>
    %26 = arith.addf %23, %25 : vector<256x128xf32>
    %c0_23 = arith.constant 0 : index
    %c0_24 = arith.constant 0 : index
    %27 = vector.load %arg10[%c0_23, %c0_24] : memref<256x128xf32, #tpu.memory_space<vmem>>, vector<256x128xf32>
    tpu.vector_store %arg10[%c0_23, %c0_24], %26 {strides = array<i32>} : memref<256x128xf32, #tpu.memory_space<vmem>>, vector<256x128xf32>,
    return
  }
  func.func @transform_0(%arg0: i32) -> (i32, i32) {
    %c0_i32 = arith.constant 0 : i32
    %c0_i32_0 = arith.constant 0 : i32
    return %arg0, %c0_i32 : i32, i32
  }
  func.func @transform_1(%arg0: i32) -> (i32, i32) {
    %c0_i32 = arith.constant 0 : i32
    %c0_i32_0 = arith.constant 0 : i32
    %c0_i32_1 = arith.constant 0 : i32
    return %c0_i32, %c0_i32_0 : i32, i32
  }
  func.func @transform_2(%arg0: i32) -> (i32, i32) {
    %c0_i32 = arith.constant 0 : i32
    %c0_i32_0 = arith.constant 0 : i32
    %c0_i32_1 = arith.constant 0 : i32
    return %c0_i32, %c0_i32_0 : i32, i32
  }
  func.func @transform_3(%arg0: i32) -> (i32, i32) {
    %c0_i32 = arith.constant 0 : i32
    %c0_i32_0 = arith.constant 0 : i32
    %c0_i32_1 = arith.constant 0 : i32
    return %c0_i32, %c0_i32_0 : i32, i32
  }
  func.func @transform_4(%arg0: i32) -> (i32, i32) {
    %c0_i32 = arith.constant 0 : i32
    %c0_i32_0 = arith.constant 0 : i32
    %c0_i32_1 = arith.constant 0 : i32
    return %c0_i32, %c0_i32_0 : i32, i32
  }
  func.func @transform_5(%arg0: i32) -> (i32, i32) {
    %c0_i32 = arith.constant 0 : i32
    %c0_i32_0 = arith.constant 0 : i32
    %c0_i32_1 = arith.constant 0 : i32
    return %c0_i32, %c0_i32_0 : i32, i32
  }
  func.func @transform_6(%arg0: i32) -> (i32, i32) {
    %c0_i32 = arith.constant 0 : i32
    %c0_i32_0 = arith.constant 0 : i32
    %c0_i32_1 = arith.constant 0 : i32
    return %c0_i32, %c0_i32_0 : i32, i32
  }
  func.func @transform_7(%arg0: i32) -> (i32, i32) {
    %c0_i32 = arith.constant 0 : i32
    %c0_i32_0 = arith.constant 0 : i32
    %c0_i32_1 = arith.constant 0 : i32
    return %c0_i32, %c0_i32_0 : i32, i32
  }
  func.func @transform_8(%arg0: i32) -> (i32, i32) {
    %c0_i32 = arith.constant 0 : i32
    %c0_i32_0 = arith.constant 0 : i32
    %c0_i32_1 = arith.constant 0 : i32
    return %c0_i32, %c0_i32_0 : i32, i32
  }
  func.func @transform_9(%arg0: i32) -> (i32, i32) {
    %c0_i32 = arith.constant 0 : i32
    %c0_i32_0 = arith.constant 0 : i32
    return %arg0, %c0_i32 : i32, i32
  }
}

</mosaic_0001>

<llo_original>
// kernel: mlp_diffusion.1
$region0: #{mlp_diffusion.1}
  #allocation0 [shape = 'u32[]', space=smem, size = 0x4, offset = 0x4, fixed_abs, tag = 'smem constant byte address 0x4 - core index']
  #allocation1 [shape = 'u32[144,128]{1,0:T(1,128)}', space=vmem, size = 0x12000, scoped, tag = 'internal scratch']
  %s0 = inlined_call_operand.vmem [shape: f32[512,8], index: 0, kind: input, shape index: {}]
  %s1 = inlined_call_operand.vmem [shape: f32[8,512], index: 1, kind: input, shape index: {}]
  %s2 = inlined_call_operand.vmem [shape: f32[1,512], index: 2, kind: input, shape index: {}]
  %s3 = inlined_call_operand.hbm [shape: f32[512,512], index: 3, kind: input, shape index: {}]
  %s4 = inlined_call_operand.vmem [shape: f32[1,512], index: 4, kind: input, shape index: {}]
  %s5 = inlined_call_operand.hbm [shape: f32[512,512], index: 5, kind: input, shape index: {}]
  %s6 = inlined_call_operand.vmem [shape: f32[1,512], index: 6, kind: input, shape index: {}]
  %s7 = inlined_call_operand.vmem [shape: f32[512,128], index: 7, kind: input, shape index: {}]
  %s8 = inlined_call_operand.vmem [shape: f32[1,128], index: 8, kind: input, shape index: {}]
  %s9 = inlined_call_operand.vmem [shape: f32[512,128], index: 9, kind: output, shape index: {}]
  %s10 = sld [smem:[#allocation0]]
  $region77: #{mlp_diffusion.1} parent=0
    _
  %s12 = ssub.s32 1, %s10
  %s13 = scalar_select 0, %s12, %s10
  $region1: #{mlp_diffusion.1} parent=0
    #allocation2 [shape = 'u8[1048576]{0}', space=vmem, size = 0x100000, scoped, tag = 'input window, operand 3, single buffered']
    #allocation3 [shape = 's32[2]{0}', space=sflag, size = 0x8, scoped, tag = 'scoped memory for mlp_diffusion.1']
    #allocation4 [shape = 'u8[1048576]{0}', space=vmem, size = 0x100000, scoped, tag = 'input window, operand 5, single buffered']
    #allocation5 [shape = 's32[1]{0}', space=sflag, size = 0x4, scoped, tag = 'scoped memory for mlp_diffusion.1']
    %14 = vsyncpa [#allocation3], 0
    %15 = vsyncpa [#allocation5], 0
    loop: start=0, step=1, limit=4
    $region2: #{mlp_diffusion.1} parent=1 // loop_pre_header
      _
    $region3: #{mlp_diffusion.1} parent=1 // loop_header
      %s17 = sphi 0, %s21
      %p18 = scmp.ge.s32.totalorder %s17, 4
      %s27 = sphi 0, %s29
      %s30 = sphi 0, %s27
      %s31 = sphi 0, %s30
      %s47 = sphi 0, %s31
      %s51 = sphi 0, %s51
      %s53 = sphi 0, %s51
      %s54 = sphi 0, %s53
      %s68 = sphi 0, %s54
      %s72 = sphi 0, %s72
      %s74 = sphi 0, %s72
      %s75 = sphi 0, %s74
      %s89 = sphi 0, %s75
      %s93 = sphi 0, %s93
      %s95 = sphi 0, %s93
      %s96 = sphi 0, %s95
      %s110 = sphi 0, %s96
      %s114 = sphi 0, %s114
      %s116 = sphi 0, %s114
      %s117 = sphi 0, %s116
      %s131 = sphi 0, %s117
      %s135 = sphi 0, %s135
      %s137 = sphi 0, %s135
      %s138 = sphi 0, %s137
      %s152 = sphi 0, %s138
      %s156 = sphi 0, %s156
      %s158 = sphi 0, %s156
      %s159 = sphi 0, %s158
      %s173 = sphi 0, %s159
      %s177 = sphi 0, %s177
      %s179 = sphi 0, %s177
      %s180 = sphi 0, %s179
      %s194 = sphi 0, %s180
      %s198 = sphi 0, %s198
      %s200 = sphi 0, %s198
      %s201 = sphi 0, %s200
      %s215 = sphi 0, %s201
      %s221 = sphi 0, %s223
      %s224 = sphi 0, %s221
      %s225 = sphi 0, %s224
      %s241 = sphi 0, %s225
    $region4: #{mlp_diffusion.1} parent=1 // loop_header_branch
      %20 = sbr.rel (%p18) target = $region8
    $region5: #{mlp_diffusion.1} parent=1 // loop_body
      %s22 = ssub.s32 %s17, 1
      %s23 = ssub.s32 %s17, 2
      %s24 = sadd.s32 %s17, 1
      %s25 = ssub.s32 %s17, %s24
      %p26 = scmp.eq.s32.totalorder %s25, 0
      %s28 = sadd.s32 %s27, 1
      %s29 = scalar_select %p26, %s27, %s28
      %p32 = pneg %p26
      %p33 = scmp.eq.s32.totalorder %s17, 1
      %p34 = por %p32, %p33
      %p35 = scmp.ne.s32.totalorder %s27, %s30
      %p36 = scmp.eq.s32.totalorder %s17, 0
      %p37 = por %p35, %p36
      %p38 = scmp.ne.s32.totalorder %s27, %s30
      %p39 = scmp.eq.s32.totalorder %s22, 1
      %p40 = por %p38, %p39
      %p41 = scmp.ne.s32.totalorder %s30, %s31
      %p42 = scmp.eq.s32.totalorder %s22, 0
      %p43 = por %p41, %p42
      %p44 = scmp.ne.s32.totalorder %s30, %s31
      %p45 = scmp.eq.s32.totalorder %s23, 1
      %p46 = por %p44, %p45
      %p48 = scmp.ne.s32.totalorder %s31, %s47
      %p49 = scmp.eq.s32.totalorder %s23, 0
      %p50 = por %p48, %p49
      %s52 = sadd.s32 %s51, 1
      %p55 = scmp.eq.s32.totalorder %s17, 1
      %p56 = scmp.ne.s32.totalorder %s51, %s53
      %p57 = scmp.eq.s32.totalorder %s17, 0
      %p58 = por %p56, %p57
      %p59 = scmp.ne.s32.totalorder %s51, %s53
      %p60 = scmp.eq.s32.totalorder %s22, 1
      %p61 = por %p59, %p60
      %p62 = scmp.ne.s32.totalorder %s53, %s54
      %p63 = scmp.eq.s32.totalorder %s22, 0
      %p64 = por %p62, %p63
      %p65 = scmp.ne.s32.totalorder %s53, %s54
      %p66 = scmp.eq.s32.totalorder %s23, 1
      %p67 = por %p65, %p66
      %p69 = scmp.ne.s32.totalorder %s54, %s68
      %p70 = scmp.eq.s32.totalorder %s23, 0
      %p71 = por %p69, %p70
      %s73 = sadd.s32 %s72, 1
      %p76 = scmp.eq.s32.totalorder %s17, 1
      %p77 = scmp.ne.s32.totalorder %s72, %s74
      %p78 = scmp.eq.s32.totalorder %s17, 0
      %p79 = por %p77, %p78
      %p80 = scmp.ne.s32.totalorder %s72, %s74
      %p81 = scmp.eq.s32.totalorder %s22, 1
      %p82 = por %p80, %p81
      %p83 = scmp.ne.s32.totalorder %s74, %s75
      %p84 = scmp.eq.s32.totalorder %s22, 0
      %p85 = por %p83, %p84
      %p86 = scmp.ne.s32.totalorder %s74, %s75
      %p87 = scmp.eq.s32.totalorder %s23, 1
      %p88 = por %p86, %p87
      %p90 = scmp.ne.s32.totalorder %s75, %s89
      %p91 = scmp.eq.s32.totalorder %s23, 0
      %p92 = por %p90, %p91
      %s94 = sadd.s32 %s93, 1
      %p97 = scmp.eq.s32.totalorder %s17, 1
      %p98 = scmp.ne.s32.totalorder %s93, %s95
      %p99 = scmp.eq.s32.totalorder %s17, 0
      %p100 = por %p98, %p99
      %p101 = scmp.ne.s32.totalorder %s93, %s95
      %p102 = scmp.eq.s32.totalorder %s22, 1
      %p103 = por %p101, %p102
      %p104 = scmp.ne.s32.totalorder %s95, %s96
      %p105 = scmp.eq.s32.totalorder %s22, 0
      %p106 = por %p104, %p105
      %p107 = scmp.ne.s32.totalorder %s95, %s96
      %p108 = scmp.eq.s32.totalorder %s23, 1
      %p109 = por %p107, %p108
      %p111 = scmp.ne.s32.totalorder %s96, %s110
      %p112 = scmp.eq.s32.totalorder %s23, 0
      %p113 = por %p111, %p112
      %s115 = sadd.s32 %s114, 1
      %p118 = scmp.eq.s32.totalorder %s17, 1
      %p119 = scmp.ne.s32.totalorder %s114, %s116
      %p120 = scmp.eq.s32.totalorder %s17, 0
      %p121 = por %p119, %p120
      %p122 = scmp.ne.s32.totalorder %s114, %s116
      %p123 = scmp.eq.s32.totalorder %s22, 1
      %p124 = por %p122, %p123
      %p125 = scmp.ne.s32.totalorder %s116, %s117
      %p126 = scmp.eq.s32.totalorder %s22, 0
      %p127 = por %p125, %p126
      %p128 = scmp.ne.s32.totalorder %s116, %s117
      %p129 = scmp.eq.s32.totalorder %s23, 1
      %p130 = por %p128, %p129
      %p132 = scmp.ne.s32.totalorder %s117, %s131
      %p133 = scmp.eq.s32.totalorder %s23, 0
      %p134 = por %p132, %p133
      %s136 = sadd.s32 %s135, 1
      %p139 = scmp.eq.s32.totalorder %s17, 1
      %p140 = scmp.ne.s32.totalorder %s135, %s137
      %p141 = scmp.eq.s32.totalorder %s17, 0
      %p142 = por %p140, %p141
      %p143 = scmp.ne.s32.totalorder %s135, %s137
      %p144 = scmp.eq.s32.totalorder %s22, 1
      %p145 = por %p143, %p144
      %p146 = scmp.ne.s32.totalorder %s137, %s138
      %p147 = scmp.eq.s32.totalorder %s22, 0
      %p148 = por %p146, %p147
      %p149 = scmp.ne.s32.totalorder %s137, %s138
      %p150 = scmp.eq.s32.totalorder %s23, 1
      %p151 = por %p149, %p150
      %p153 = scmp.ne.s32.totalorder %s138, %s152
      %p154 = scmp.eq.s32.totalorder %s23, 0
      %p155 = por %p153, %p154
      %s157 = sadd.s32 %s156, 1
      %p160 = scmp.eq.s32.totalorder %s17, 1
      %p161 = scmp.ne.s32.totalorder %s156, %s158
      %p162 = scmp.eq.s32.totalorder %s17, 0
      %p163 = por %p161, %p162
      %p164 = scmp.ne.s32.totalorder %s156, %s158
      %p165 = scmp.eq.s32.totalorder %s22, 1
      %p166 = por %p164, %p165
      %p167 = scmp.ne.s32.totalorder %s158, %s159
      %p168 = scmp.eq.s32.totalorder %s22, 0
      %p169 = por %p167, %p168
      %p170 = scmp.ne.s32.totalorder %s158, %s159
      %p171 = scmp.eq.s32.totalorder %s23, 1
      %p172 = por %p170, %p171
      %p174 = scmp.ne.s32.totalorder %s159, %s173
      %p175 = scmp.eq.s32.totalorder %s23, 0
      %p176 = por %p174, %p175
      %s178 = sadd.s32 %s177, 1
      %p181 = scmp.eq.s32.totalorder %s17, 1
      %p182 = scmp.ne.s32.totalorder %s177, %s179
      %p183 = scmp.eq.s32.totalorder %s17, 0
      %p184 = por %p182, %p183
      %p185 = scmp.ne.s32.totalorder %s177, %s179
      %p186 = scmp.eq.s32.totalorder %s22, 1
      %p187 = por %p185, %p186
      %p188 = scmp.ne.s32.totalorder %s179, %s180
      %p189 = scmp.eq.s32.totalorder %s22, 0
      %p190 = por %p188, %p189
      %p191 = scmp.ne.s32.totalorder %s179, %s180
      %p192 = scmp.eq.s32.totalorder %s23, 1
      %p193 = por %p191, %p192
      %p195 = scmp.ne.s32.totalorder %s180, %s194
      %p196 = scmp.eq.s32.totalorder %s23, 0
      %p197 = por %p195, %p196
      %s199 = sadd.s32 %s198, 1
      %p202 = scmp.eq.s32.totalorder %s17, 1
      %p203 = scmp.ne.s32.totalorder %s198, %s200
      %p204 = scmp.eq.s32.totalorder %s17, 0
      %p205 = por %p203, %p204
      %p206 = scmp.ne.s32.totalorder %s198, %s200
      %p207 = scmp.eq.s32.totalorder %s22, 1
      %p208 = por %p206, %p207
      %p209 = scmp.ne.s32.totalorder %s200, %s201
      %p210 = scmp.eq.s32.totalorder %s22, 0
      %p211 = por %p209, %p210
      %p212 = scmp.ne.s32.totalorder %s200, %s201
      %p213 = scmp.eq.s32.totalorder %s23, 1
      %p214 = por %p212, %p213
      %p216 = scmp.ne.s32.totalorder %s201, %s215
      %p217 = scmp.eq.s32.totalorder %s23, 0
      %p218 = por %p216, %p217
      %s219 = ssub.s32 %s17, %s24
      %p220 = scmp.eq.s32.totalorder %s219, 0
      %s222 = sadd.s32 %s221, 1
      %s223 = scalar_select %p220, %s221, %s222
      %p226 = pneg %p220
      %p227 = scmp.eq.s32.totalorder %s17, 1
      %p228 = por %p226, %p227
      %p229 = scmp.ne.s32.totalorder %s221, %s224
      %p230 = scmp.eq.s32.totalorder %s17, 0
      %p231 = por %p229, %p230
      %p232 = scmp.ne.s32.totalorder %s221, %s224
      %p233 = scmp.eq.s32.totalorder %s22, 1
      %p234 = por %p232, %p233
      %p235 = scmp.ne.s32.totalorder %s224, %s225
      %p236 = scmp.eq.s32.totalorder %s22, 0
      %p237 = por %p235, %p236
      %p238 = scmp.ne.s32.totalorder %s224, %s225
      %p239 = scmp.eq.s32.totalorder %s23, 1
      %p240 = por %p238, %p239
      %p242 = scmp.ne.s32.totalorder %s225, %s241
      %p243 = scmp.eq.s32.totalorder %s23, 0
      %p244 = por %p242, %p243
      %p245 = scmp.le.s32.totalorder 1, %s17
      %p246 = scmp.lt.s32.totalorder %s17, 3
      %p247 = pnand %p245, %p246
      %p248 = pneg %p247
      // Predicated region
      $region9: #{mlp_diffusion.1} parent=5 // pred_check
        _
      $region10: #{mlp_diffusion.1} parent=5 // pred_check_branch
        %250 = sbr.rel (%p247) target = $region12
      $region11: #{mlp_diffusion.1} parent=5 // pred_region
        %s251 = ssub.s32 %s17, 1
        // Predicated region
        $region13: #{mlp_diffusion.1} parent=11 // pred_check
          %p252 = pneg %p64
        $region14: #{mlp_diffusion.1} parent=11 // pred_check_branch
          %254 = sbr.rel (%p252) target = $region16
        $region15: #{mlp_diffusion.1} parent=11 // pred_region
          _
        $region16: #{mlp_diffusion.1} parent=11 // pred_fallthru
          _
        // Predicated region
        $region17: #{mlp_diffusion.1} parent=11 // pred_check
          %p255 = pneg %p85
        $region18: #{mlp_diffusion.1} parent=11 // pred_check_branch
          %257 = sbr.rel (%p255) target = $region20
        $region19: #{mlp_diffusion.1} parent=11 // pred_region
          _
        $region20: #{mlp_diffusion.1} parent=11 // pred_fallthru
          _
        // Predicated region
        $region21: #{mlp_diffusion.1} parent=11 // pred_check
          %p258 = pneg %p106
        $region22: #{mlp_diffusion.1} parent=11 // pred_check_branch
          %260 = sbr.rel (%p258) target = $region24
        $region23: #{mlp_diffusion.1} parent=11 // pred_region
          %s262 = ssub.s32 32768, 32768
          %263 = vsyncadd [#allocation3], %s262
          %s264 = sshll.u32 [#allocation2], 4
          %s265 = int_to_ptr.vmem [resolvable:$true] %s264
          %270 = dma.hbm_to_vmem [thread:$0]  %s3, 32768, %s265, [#allocation3], 512, 512, 32
        $region24: #{mlp_diffusion.1} parent=11 // pred_fallthru
          _
        // Predicated region
        $region25: #{mlp_diffusion.1} parent=11 // pred_check
          %p271 = pneg %p127
        $region26: #{mlp_diffusion.1} parent=11 // pred_check_branch
          %273 = sbr.rel (%p271) target = $region28
        $region27: #{mlp_diffusion.1} parent=11 // pred_region
          _
        $region28: #{mlp_diffusion.1} parent=11 // pred_fallthru
          _
        // Predicated region
        $region29: #{mlp_diffusion.1} parent=11 // pred_check
          %p274 = pneg %p148
        $region30: #{mlp_diffusion.1} parent=11 // pred_check_branch
          %276 = sbr.rel (%p274) target = $region32
        $region31: #{mlp_diffusion.1} parent=11 // pred_region
          %s278 = ssub.s32 32768, 32768
          %279 = vsyncadd [#allocation5], %s278
          %s280 = sshll.u32 [#allocation4], 4
          %s281 = int_to_ptr.vmem [resolvable:$true] %s280
          %286 = dma.hbm_to_vmem [thread:$0]  %s5, 32768, %s281, [#allocation5], 512, 512, 32
        $region32: #{mlp_diffusion.1} parent=11 // pred_fallthru
          _
        // Predicated region
        $region33: #{mlp_diffusion.1} parent=11 // pred_check
          %p287 = pneg %p169
        $region34: #{mlp_diffusion.1} parent=11 // pred_check_branch
          %289 = sbr.rel (%p287) target = $region36
        $region35: #{mlp_diffusion.1} parent=11 // pred_region
          _
        $region36: #{mlp_diffusion.1} parent=11 // pred_fallthru
          _
        // Predicated region
        $region37: #{mlp_diffusion.1} parent=11 // pred_check
          %p290 = pneg %p190
        $region38: #{mlp_diffusion.1} parent=11 // pred_check_branch
          %292 = sbr.rel (%p290) target = $region40
        $region39: #{mlp_diffusion.1} parent=11 // pred_region
          _
        $region40: #{mlp_diffusion.1} parent=11 // pred_fallthru
          _
        // Predicated region
        $region41: #{mlp_diffusion.1} parent=11 // pred_check
          %p293 = pneg %p211
        $region42: #{mlp_diffusion.1} parent=11 // pred_check_branch
          %295 = sbr.rel (%p293) target = $region44
        $region43: #{mlp_diffusion.1} parent=11 // pred_region
          _
        $region44: #{mlp_diffusion.1} parent=11 // pred_fallthru
          _
      $region12: #{mlp_diffusion.1} parent=5 // pred_fallthru
        _
      %p296 = scmp.lt.s32.totalorder %s17, 2
      // Predicated region
      $region45: #{mlp_diffusion.1} parent=5 // pred_check
        %p297 = pneg %p296
      $region46: #{mlp_diffusion.1} parent=5 // pred_check_branch
        %299 = sbr.rel (%p297) target = $region48
      $region47: #{mlp_diffusion.1} parent=5 // pred_region
        // Predicated region
        $region49: #{mlp_diffusion.1} parent=47 // pred_check
          %p300 = pneg %p37
        $region50: #{mlp_diffusion.1} parent=47 // pred_check_branch
          %302 = sbr.rel (%p300) target = $region52
        $region51: #{mlp_diffusion.1} parent=47 // pred_region
          %s303 = smul.u32 32, %s17
          %p304 = scmp.lt.s32.totalorder %s303, 63
          %s305 = scalar_select %p304, %s303, 63
          %s306 = smul.addr %s305, 8
          %s307 = scalar_lea.vmem %s0, %s306
          %s308 = smul.u32 32, %s17
        $region52: #{mlp_diffusion.1} parent=47 // pred_fallthru
          _
      $region48: #{mlp_diffusion.1} parent=5 // pred_fallthru
        _
      %p309 = scmp.le.s32.totalorder 1, %s17
      %p310 = scmp.lt.s32.totalorder %s17, 3
      %p311 = pnand %p309, %p310
      %p312 = pneg %p311
      // Predicated region
      $region53: #{mlp_diffusion.1} parent=5 // pred_check
        _
      $region54: #{mlp_diffusion.1} parent=5 // pred_check_branch
        %314 = sbr.rel (%p311) target = $region56
      $region55: #{mlp_diffusion.1} parent=5 // pred_region
        %s315 = ssub.s32 %s17, 1
        // Predicated region
        $region57: #{mlp_diffusion.1} parent=55 // pred_check
          %p316 = pneg %p106
        $region58: #{mlp_diffusion.1} parent=55 // pred_check_branch
          %318 = sbr.rel (%p316) target = $region60
        $region59: #{mlp_diffusion.1} parent=55 // pred_region
          %319 = dma.done [#allocation3], 32768
        $region60: #{mlp_diffusion.1} parent=55 // pred_fallthru
          _
        // Predicated region
        $region61: #{mlp_diffusion.1} parent=55 // pred_check
          %p320 = pneg %p148
        $region62: #{mlp_diffusion.1} parent=55 // pred_check_branch
          %322 = sbr.rel (%p320) target = $region64
        $region63: #{mlp_diffusion.1} parent=55 // pred_region
          %323 = dma.done [#allocation5], 32768
        $region64: #{mlp_diffusion.1} parent=55 // pred_fallthru
          _
        %s324 = smul.u32 32, %s22
        %p325 = scmp.lt.s32.totalorder %s324, 63
        %s326 = scalar_select %p325, %s324, 63
        %s327 = smul.addr %s326, 8
        %s328 = scalar_lea.vmem %s0, %s327
        %p329 = pneg %p43
        %p330 = pneg %p40
        %p331 = pneg %p64
        %p332 = pneg %p61
        %p333 = pneg %p85
        %p334 = pneg %p82
        %p335 = pneg %p106
        %p336 = pneg %p103
        %p337 = pneg %p127
        %p338 = pneg %p124
        %p339 = pneg %p148
        %p340 = pneg %p145
        %p341 = pneg %p169
        %p342 = pneg %p166
        %p343 = pneg %p190
        %p344 = pneg %p187
        %p345 = pneg %p211
        %p346 = pneg %p208
        %p347 = pneg %p237
        %p348 = pneg %p234
        %s349 = smul.u32 32, %s22
        %p350 = scmp.lt.s32.totalorder %s349, 63
        %s351 = scalar_select %p350, %s349, 63
        %s352 = smul.addr %s351, 8
        %s353 = scalar_lea.vmem %s9, %s352
        %s354 = smul.u32 32, %s22
        %p355 = scmp.lt.s32.totalorder %s354, 63
        %s356 = scalar_select %p355, %s354, 63
        %s357 = smul.addr %s356, 8
        %s358 = scalar_lea.vmem %s0, %s357
        %s359 = smul.u32 32, %s22
        %s360 = smul.u32 32, %s22
        %p361 = scmp.lt.s32.totalorder %s360, 63
        %s362 = scalar_select %p361, %s360, 63
        %s363 = smul.addr %s362, 8
        %s364 = scalar_lea.vmem %s9, %s363
        %s365 = smul.u32 32, %s22
        %v366 = vld [vmem:[%s358] sm:$0xff]
        %v367 = vld [vmem:[%s358 + $0x8] sm:$0xff]
        %v368 = vld [vmem:[%s358 + $0x10] sm:$0xff]
        %v369 = vld [vmem:[%s358 + $0x18] sm:$0xff]
        %v370 = vld [vmem:[%s358 + $0x20] sm:$0xff]
        %v371 = vld [vmem:[%s358 + $0x28] sm:$0xff]
        %v372 = vld [vmem:[%s358 + $0x30] sm:$0xff]
        %v373 = vld [vmem:[%s358 + $0x38] sm:$0xff]
        %v374 = vld [vmem:[%s358 + $0x40] sm:$0xff]
        %v375 = vld [vmem:[%s358 + $0x48] sm:$0xff]
        %v376 = vld [vmem:[%s358 + $0x50] sm:$0xff]
        %v377 = vld [vmem:[%s358 + $0x58] sm:$0xff]
        %v378 = vld [vmem:[%s358 + $0x60] sm:$0xff]
        %v379 = vld [vmem:[%s358 + $0x68] sm:$0xff]
        %v380 = vld [vmem:[%s358 + $0x70] sm:$0xff]
        %v381 = vld [vmem:[%s358 + $0x78] sm:$0xff]
        %v382 = vld [vmem:[%s358 + $0x80] sm:$0xff]
        %v383 = vld [vmem:[%s358 + $0x88] sm:$0xff]
        %v384 = vld [vmem:[%s358 + $0x90] sm:$0xff]
        %v385 = vld [vmem:[%s358 + $0x98] sm:$0xff]
        %v386 = vld [vmem:[%s358 + $0xa0] sm:$0xff]
        %v387 = vld [vmem:[%s358 + $0xa8] sm:$0xff]
        %v388 = vld [vmem:[%s358 + $0xb0] sm:$0xff]
        %v389 = vld [vmem:[%s358 + $0xb8] sm:$0xff]
        %v390 = vld [vmem:[%s358 + $0xc0] sm:$0xff]
        %v391 = vld [vmem:[%s358 + $0xc8] sm:$0xff]
        %v392 = vld [vmem:[%s358 + $0xd0] sm:$0xff]
        %v393 = vld [vmem:[%s358 + $0xd8] sm:$0xff]
        %v394 = vld [vmem:[%s358 + $0xe0] sm:$0xff]
        %v395 = vld [vmem:[%s358 + $0xe8] sm:$0xff]
        %v396 = vld [vmem:[%s358 + $0xf0] sm:$0xff]
        %v397 = vld [vmem:[%s358 + $0xf8] sm:$0xff]
        %v398 = vld [vmem:[%s1] sm:$0xff]
        %v399 = vld [vmem:[%s1 + $0x8] sm:$0xff]
        %v400 = vld [vmem:[%s1 + $0x10] sm:$0xff]
        %v401 = vld [vmem:[%s1 + $0x18] sm:$0xff]
        %v402 = vld [vmem:[%s2] sm:$0xf]
        %v404 = vlaneseq
        %v405 = vshrl.u32 %v404, 7
        %v406 = vsub.s32 0, %v405
        %v407 = vrot.slane %v402, %v406
        %v408 = vlaneseq
        %v409 = vshrl.u32 %v408, 7
        %v410 = vsub.s32 1, %v409
        %v411 = vrot.slane %v402, %v410
        %v412 = vlaneseq
        %v413 = vshrl.u32 %v412, 7
        %v414 = vsub.s32 2, %v413
        %v415 = vrot.slane %v402, %v414
        %v416 = vlaneseq
        %v417 = vshrl.u32 %v416, 7
        %v418 = vsub.s32 3, %v417
        %v419 = vrot.slane %v402, %v418
        %vm424 = vcmask 64512
        %v426 = vsel %vm424, %v366, 0
        %v429 = vsel %vm424, %v367, 0
        %v432 = vsel %vm424, %v368, 0
        %v435 = vsel %vm424, %v369, 0
        %v438 = vsel %vm424, %v370, 0
        %v441 = vsel %vm424, %v371, 0
        %v444 = vsel %vm424, %v372, 0
        %v447 = vsel %vm424, %v373, 0
        %v450 = vsel %vm424, %v374, 0
        %v453 = vsel %vm424, %v375, 0
        %v456 = vsel %vm424, %v376, 0
        %v459 = vsel %vm424, %v377, 0
        %v462 = vsel %vm424, %v378, 0
        %v465 = vsel %vm424, %v379, 0
        %v468 = vsel %vm424, %v380, 0
        %v471 = vsel %vm424, %v381, 0
        %v474 = vsel %vm424, %v382, 0
        %v477 = vsel %vm424, %v383, 0
        %v480 = vsel %vm424, %v384, 0
        %v483 = vsel %vm424, %v385, 0
        %v486 = vsel %vm424, %v386, 0
        %v489 = vsel %vm424, %v387, 0
        %v492 = vsel %vm424, %v388, 0
        %v495 = vsel %vm424, %v389, 0
        %v498 = vsel %vm424, %v390, 0
        %v501 = vsel %vm424, %v391, 0
        %v504 = vsel %vm424, %v392, 0
        %v507 = vsel %vm424, %v393, 0
        %v510 = vsel %vm424, %v394, 0
        %v513 = vsel %vm424, %v395, 0
        %v516 = vsel %vm424, %v396, 0
        %v519 = vsel %vm424, %v397, 0
        %521 = vmatprep.subr.mxu0 0.0
        %522 = vmatpush1.msra.mxu0 0.0
        %523 = vmatprep.subr.mxu0 0.0
        %524 = vmatpush1.msra.mxu0 0.0
        %525 = vmatprep.subr.mxu0 0.0
        %526 = vmatpush1.msra.mxu0 0.0
        %527 = vmatprep.subr.mxu0 0.0
        %528 = vmatpush1.msra.mxu0 0.0
        %529 = vmatprep.subr.mxu0 0.0
        %530 = vmatpush1.msra.mxu0 0.0
        %531 = vmatprep.subr.mxu0 0.0
        %532 = vmatpush1.msra.mxu0 0.0
        %533 = vmatprep.subr.mxu0 0.0
        %534 = vmatpush1.msra.mxu0 0.0
        %535 = vmatprep.subr.mxu0 0.0
        %536 = vmatpush1.msra.mxu0 0.0
        %537 = vmatprep.subr.mxu0 0.0
        %538 = vmatpush1.msra.mxu0 0.0
        %539 = vmatprep.subr.mxu0 0.0
        %540 = vmatpush1.msra.mxu0 0.0
        %541 = vmatprep.subr.mxu0 0.0
        %542 = vmatpush1.msra.mxu0 0.0
        %543 = vmatprep.subr.mxu0 0.0
        %544 = vmatpush1.msra.mxu0 0.0
        %545 = vmatprep.subr.mxu0 0.0
        %546 = vmatpush1.msra.mxu0 0.0
        %547 = vmatprep.subr.mxu0 0.0
        %548 = vmatpush1.msra.mxu0 0.0
        %549 = vmatprep.subr.mxu0 0.0
        %550 = vmatpush1.msra.mxu0 0.0
        %551 = vmatprep.subr.mxu0 %v399
        %552 = vmatpush1.msra.mxu0 %v398
        %553 = vmatprep.subr.mxu0 0.0
        %554 = vmatpush2.msra.mxu0 0.0
        %555 = vmatprep.subr.mxu0 0.0
        %556 = vmatpush2.msra.mxu0 0.0
        %557 = vmatprep.subr.mxu0 0.0
        %558 = vmatpush2.msra.mxu0 0.0
        %559 = vmatprep.subr.mxu0 0.0
        %560 = vmatpush2.msra.mxu0 0.0
        %561 = vmatprep.subr.mxu0 0.0
        %562 = vmatpush2.msra.mxu0 0.0
        %563 = vmatprep.subr.mxu0 0.0
        %564 = vmatpush2.msra.mxu0 0.0
        %565 = vmatprep.subr.mxu0 0.0
        %566 = vmatpush2.msra.mxu0 0.0
        %567 = vmatprep.subr.mxu0 0.0
        %568 = vmatpush2.msra.mxu0 0.0
        %569 = vmatprep.subr.mxu0 0.0
        %570 = vmatpush2.msra.mxu0 0.0
        %571 = vmatprep.subr.mxu0 0.0
        %572 = vmatpush2.msra.mxu0 0.0
        %573 = vmatprep.subr.mxu0 0.0
        %574 = vmatpush2.msra.mxu0 0.0
        %575 = vmatprep.subr.mxu0 0.0
        %576 = vmatpush2.msra.mxu0 0.0
        %577 = vmatprep.subr.mxu0 0.0
        %578 = vmatpush2.msra.mxu0 0.0
        %579 = vmatprep.subr.mxu0 0.0
        %580 = vmatpush2.msra.mxu0 0.0
        %581 = vmatprep.subr.mxu0 0.0
        %582 = vmatpush2.msra.mxu0 0.0
        %583 = vmatprep.subr.mxu0 0.0
        %584 = vmatpush2.msra.mxu0 0.0
        %585 = vmatprep.mubr.f32.mxu0 0.0
        %586 = vmatmul.mubr.f32.gmra.mxu0 %v426
        %v587 = vpop.f32.mrf.mxu0
        %v588 = vadd.f32 %v407, %v587
        %v589 = vpop.f32.mrf.mxu0
        %v590 = vadd.f32 %v411, %v589
        %591 = vmatprep.mubr.f32.mxu0 0.0
        %592 = vmatmul.mubr.f32.gmra.mxu0 %v429
        %v593 = vpop.f32.mrf.mxu0
        %v594 = vadd.f32 %v407, %v593
        %v595 = vpop.f32.mrf.mxu0
        %v596 = vadd.f32 %v411, %v595
        %597 = vmatprep.mubr.f32.mxu0 0.0
        %598 = vmatmul.mubr.f32.gmra.mxu0 %v432
        %v599 = vpop.f32.mrf.mxu0
        %v600 = vadd.f32 %v407, %v599
        %v601 = vpop.f32.mrf.mxu0
        %v602 = vadd.f32 %v411, %v601
        %603 = vmatprep.mubr.f32.mxu0 0.0
        %604 = vmatmul.mubr.f32.gmra.mxu0 %v435
        %v605 = vpop.f32.mrf.mxu0
        %v606 = vadd.f32 %v407, %v605
        %v607 = vpop.f32.mrf.mxu0
        %v608 = vadd.f32 %v411, %v607
        %609 = vmatprep.mubr.f32.mxu0 0.0
        %610 = vmatmul.mubr.f32.gmra.mxu0 %v438
        %v611 = vpop.f32.mrf.mxu0
        %v612 = vadd.f32 %v407, %v611
        %v613 = vpop.f32.mrf.mxu0
        %v614 = vadd.f32 %v411, %v613
        %615 = vmatprep.mubr.f32.mxu0 0.0
        %616 = vmatmul.mubr.f32.gmra.mxu0 %v441
        %v617 = vpop.f32.mrf.mxu0
        %v618 = vadd.f32 %v407, %v617
        %v619 = vpop.f32.mrf.mxu0
        %v620 = vadd.f32 %v411, %v619
        %621 = vmatprep.mubr.f32.mxu0 0.0
        %622 = vmatmul.mubr.f32.gmra.mxu0 %v444
        %v623 = vpop.f32.mrf.mxu0
        %v624 = vadd.f32 %v407, %v623
        %v625 = vpop.f32.mrf.mxu0
        %v626 = vadd.f32 %v411, %v625
        %627 = vmatprep.mubr.f32.mxu0 0.0
        %628 = vmatmul.mubr.f32.gmra.mxu0 %v447
        %v629 = vpop.f32.mrf.mxu0
        %v630 = vadd.f32 %v407, %v629
        %v631 = vpop.f32.mrf.mxu0
        %v632 = vadd.f32 %v411, %v631
        %633 = vmatprep.mubr.f32.mxu0 0.0
        %634 = vmatmul.mubr.f32.gmra.mxu0 %v450
        %v635 = vpop.f32.mrf.mxu0
        %v636 = vadd.f32 %v407, %v635
        %v637 = vpop.f32.mrf.mxu0
        %v638 = vadd.f32 %v411, %v637
        %639 = vmatprep.mubr.f32.mxu0 0.0
        %640 = vmatmul.mubr.f32.gmra.mxu0 %v453
        %v641 = vpop.f32.mrf.mxu0
        %v642 = vadd.f32 %v407, %v641
        %v643 = vpop.f32.mrf.mxu0
        %v644 = vadd.f32 %v411, %v643
        %645 = vmatprep.mubr.f32.mxu0 0.0
        %646 = vmatmul.mubr.f32.gmra.mxu0 %v456
        %v647 = vpop.f32.mrf.mxu0
        %v648 = vadd.f32 %v407, %v647
        %v649 = vpop.f32.mrf.mxu0
        %v650 = vadd.f32 %v411, %v649
        %651 = vmatprep.mubr.f32.mxu0 0.0
        %652 = vmatmul.mubr.f32.gmra.mxu0 %v459
        %v653 = vpop.f32.mrf.mxu0
        %v654 = vadd.f32 %v407, %v653
        %v655 = vpop.f32.mrf.mxu0
        %v656 = vadd.f32 %v411, %v655
        %657 = vmatprep.mubr.f32.mxu0 0.0
        %658 = vmatmul.mubr.f32.gmra.mxu0 %v462
        %v659 = vpop.f32.mrf.mxu0
        %v660 = vadd.f32 %v407, %v659
        %v661 = vpop.f32.mrf.mxu0
        %v662 = vadd.f32 %v411, %v661
        %663 = vmatprep.mubr.f32.mxu0 0.0
        %664 = vmatmul.mubr.f32.gmra.mxu0 %v465
        %v665 = vpop.f32.mrf.mxu0
        %v666 = vadd.f32 %v407, %v665
        %v667 = vpop.f32.mrf.mxu0
        %v668 = vadd.f32 %v411, %v667
        %669 = vmatprep.mubr.f32.mxu0 0.0
        %670 = vmatmul.mubr.f32.gmra.mxu0 %v468
        %v671 = vpop.f32.mrf.mxu0
        %v672 = vadd.f32 %v407, %v671
        %v673 = vpop.f32.mrf.mxu0
        %v674 = vadd.f32 %v411, %v673
        %675 = vmatprep.mubr.f32.mxu0 0.0
        %676 = vmatmul.mubr.f32.gmra.mxu0 %v471
        %v677 = vpop.f32.mrf.mxu0
        %v678 = vadd.f32 %v407, %v677
        %v679 = vpop.f32.mrf.mxu0
        %v680 = vadd.f32 %v411, %v679
        %681 = vmatprep.mubr.f32.mxu0 0.0
        %682 = vmatmul.mubr.f32.gmra.mxu0 %v474
        %v683 = vpop.f32.mrf.mxu0
        %v684 = vadd.f32 %v407, %v683
        %v685 = vpop.f32.mrf.mxu0
        %v686 = vadd.f32 %v411, %v685
        %687 = vmatprep.mubr.f32.mxu0 0.0
        %688 = vmatmul.mubr.f32.gmra.mxu0 %v477
        %v689 = vpop.f32.mrf.mxu0
        %v690 = vadd.f32 %v407, %v689
        %v691 = vpop.f32.mrf.mxu0
        %v692 = vadd.f32 %v411, %v691
        %693 = vmatprep.mubr.f32.mxu0 0.0
        %694 = vmatmul.mubr.f32.gmra.mxu0 %v480
        %v695 = vpop.f32.mrf.mxu0
        %v696 = vadd.f32 %v407, %v695
        %v697 = vpop.f32.mrf.mxu0
        %v698 = vadd.f32 %v411, %v697
        %699 = vmatprep.mubr.f32.mxu0 0.0
        %700 = vmatmul.mubr.f32.gmra.mxu0 %v483
        %v701 = vpop.f32.mrf.mxu0
        %v702 = vadd.f32 %v407, %v701
        %v703 = vpop.f32.mrf.mxu0
        %v704 = vadd.f32 %v411, %v703
        %705 = vmatprep.mubr.f32.mxu0 0.0
        %706 = vmatmul.mubr.f32.gmra.mxu0 %v486
        %v707 = vpop.f32.mrf.mxu0
        %v708 = vadd.f32 %v407, %v707
        %v709 = vpop.f32.mrf.mxu0
        %v710 = vadd.f32 %v411, %v709
        %711 = vmatprep.mubr.f32.mxu0 0.0
        %712 = vmatmul.mubr.f32.gmra.mxu0 %v489
        %v713 = vpop.f32.mrf.mxu0
        %v714 = vadd.f32 %v407, %v713
        %v715 = vpop.f32.mrf.mxu0
        %v716 = vadd.f32 %v411, %v715
        %717 = vmatprep.mubr.f32.mxu0 0.0
        %718 = vmatmul.mubr.f32.gmra.mxu0 %v492
        %v719 = vpop.f32.mrf.mxu0
        %v720 = vadd.f32 %v407, %v719
        %v721 = vpop.f32.mrf.mxu0
        %v722 = vadd.f32 %v411, %v721
        %723 = vmatprep.mubr.f32.mxu0 0.0
        %724 = vmatmul.mubr.f32.gmra.mxu0 %v495
        %v725 = vpop.f32.mrf.mxu0
        %v726 = vadd.f32 %v407, %v725
        %v727 = vpop.f32.mrf.mxu0
        %v728 = vadd.f32 %v411, %v727
        %729 = vmatprep.mubr.f32.mxu0 0.0
        %730 = vmatmul.mubr.f32.gmra.mxu0 %v498
        %v731 = vpop.f32.mrf.mxu0
        %v732 = vadd.f32 %v407, %v731
        %v733 = vpop.f32.mrf.mxu0
        %v734 = vadd.f32 %v411, %v733
        %735 = vmatprep.mubr.f32.mxu0 0.0
        %736 = vmatmul.mubr.f32.gmra.mxu0 %v501
        %v737 = vpop.f32.mrf.mxu0
        %v738 = vadd.f32 %v407, %v737
        %v739 = vpop.f32.mrf.mxu0
        %v740 = vadd.f32 %v411, %v739
        %741 = vmatprep.mubr.f32.mxu0 0.0
        %742 = vmatmul.mubr.f32.gmra.mxu0 %v504
        %v743 = vpop.f32.mrf.mxu0
        %v744 = vadd.f32 %v407, %v743
        %v745 = vpop.f32.mrf.mxu0
        %v746 = vadd.f32 %v411, %v745
        %747 = vmatprep.mubr.f32.mxu0 0.0
        %748 = vmatmul.mubr.f32.gmra.mxu0 %v507
        %v749 = vpop.f32.mrf.mxu0
        %v750 = vadd.f32 %v407, %v749
        %v751 = vpop.f32.mrf.mxu0
        %v752 = vadd.f32 %v411, %v751
        %753 = vmatprep.mubr.f32.mxu0 0.0
        %754 = vmatmul.mubr.f32.gmra.mxu0 %v510
        %v755 = vpop.f32.mrf.mxu0
        %v756 = vadd.f32 %v407, %v755
        %v757 = vpop.f32.mrf.mxu0
        %v758 = vadd.f32 %v411, %v757
        %759 = vmatprep.mubr.f32.mxu0 0.0
        %760 = vmatmul.mubr.f32.gmra.mxu0 %v513
        %v761 = vpop.f32.mrf.mxu0
        %v762 = vadd.f32 %v407, %v761
        %v763 = vpop.f32.mrf.mxu0
        %v764 = vadd.f32 %v411, %v763
        %765 = vmatprep.mubr.f32.mxu0 0.0
        %766 = vmatmul.mubr.f32.gmra.mxu0 %v516
        %v767 = vpop.f32.mrf.mxu0
        %v768 = vadd.f32 %v407, %v767
        %v769 = vpop.f32.mrf.mxu0
        %v770 = vadd.f32 %v411, %v769
        %771 = vmatprep.mubr.f32.mxu0 0.0
        %772 = vmatmul.mubr.f32.gmra.mxu0 %v519
        %v773 = vpop.f32.mrf.mxu0
        %v774 = vadd.f32 %v407, %v773
        %v775 = vpop.f32.mrf.mxu0
        %v776 = vadd.f32 %v411, %v775
        %777 = vdwg.mxu0
        %778 = vmatprep.subr.mxu0 0.0
        %779 = vmatpush1.msra.mxu0 0.0
        %780 = vmatprep.subr.mxu0 0.0
        %781 = vmatpush1.msra.mxu0 0.0
        %782 = vmatprep.subr.mxu0 0.0
        %783 = vmatpush1.msra.mxu0 0.0
        %784 = vmatprep.subr.mxu0 0.0
        %785 = vmatpush1.msra.mxu0 0.0
        %786 = vmatprep.subr.mxu0 0.0
        %787 = vmatpush1.msra.mxu0 0.0
        %788 = vmatprep.subr.mxu0 0.0
        %789 = vmatpush1.msra.mxu0 0.0
        %790 = vmatprep.subr.mxu0 0.0
        %791 = vmatpush1.msra.mxu0 0.0
        %792 = vmatprep.subr.mxu0 0.0
        %793 = vmatpush1.msra.mxu0 0.0
        %794 = vmatprep.subr.mxu0 0.0
        %795 = vmatpush1.msra.mxu0 0.0
        %796 = vmatprep.subr.mxu0 0.0
        %797 = vmatpush1.msra.mxu0 0.0
        %798 = vmatprep.subr.mxu0 0.0
        %799 = vmatpush1.msra.mxu0 0.0
        %800 = vmatprep.subr.mxu0 0.0
        %801 = vmatpush1.msra.mxu0 0.0
        %802 = vmatprep.subr.mxu0 0.0
        %803 = vmatpush1.msra.mxu0 0.0
        %804 = vmatprep.subr.mxu0 0.0
        %805 = vmatpush1.msra.mxu0 0.0
        %806 = vmatprep.subr.mxu0 0.0
        %807 = vmatpush1.msra.mxu0 0.0
        %808 = vmatprep.subr.mxu0 %v401
        %809 = vmatpush1.msra.mxu0 %v400
        %810 = vmatprep.subr.mxu0 0.0
        %811 = vmatpush2.msra.mxu0 0.0
        %812 = vmatprep.subr.mxu0 0.0
        %813 = vmatpush2.msra.mxu0 0.0
        %814 = vmatprep.subr.mxu0 0.0
        %815 = vmatpush2.msra.mxu0 0.0
        %816 = vmatprep.subr.mxu0 0.0
        %817 = vmatpush2.msra.mxu0 0.0
        %818 = vmatprep.subr.mxu0 0.0
        %819 = vmatpush2.msra.mxu0 0.0
        %820 = vmatprep.subr.mxu0 0.0
        %821 = vmatpush2.msra.mxu0 0.0
        %822 = vmatprep.subr.mxu0 0.0
        %823 = vmatpush2.msra.mxu0 0.0
        %824 = vmatprep.subr.mxu0 0.0
        %825 = vmatpush2.msra.mxu0 0.0
        %826 = vmatprep.subr.mxu0 0.0
        %827 = vmatpush2.msra.mxu0 0.0
        %828 = vmatprep.subr.mxu0 0.0
        %829 = vmatpush2.msra.mxu0 0.0
        %830 = vmatprep.subr.mxu0 0.0
        %831 = vmatpush2.msra.mxu0 0.0
        %832 = vmatprep.subr.mxu0 0.0
        %833 = vmatpush2.msra.mxu0 0.0
        %834 = vmatprep.subr.mxu0 0.0
        %835 = vmatpush2.msra.mxu0 0.0
        %836 = vmatprep.subr.mxu0 0.0
        %837 = vmatpush2.msra.mxu0 0.0
        %838 = vmatprep.subr.mxu0 0.0
        %839 = vmatpush2.msra.mxu0 0.0
        %840 = vmatprep.subr.mxu0 0.0
        %841 = vmatpush2.msra.mxu0 0.0
        %842 = vmatprep.mubr.f32.mxu0 0.0
        %843 = vmatmul.mubr.f32.gmra.mxu0 %v426
        %v844 = vpop.f32.mrf.mxu0
        %v845 = vadd.f32 %v415, %v844
        %v846 = vpop.f32.mrf.mxu0
        %v847 = vadd.f32 %v419, %v846
        %848 = vmatprep.mubr.f32.mxu0 0.0
        %849 = vmatmul.mubr.f32.gmra.mxu0 %v429
        %v850 = vpop.f32.mrf.mxu0
        %v851 = vadd.f32 %v415, %v850
        %v852 = vpop.f32.mrf.mxu0
        %v853 = vadd.f32 %v419, %v852
        %854 = vmatprep.mubr.f32.mxu0 0.0
        %855 = vmatmul.mubr.f32.gmra.mxu0 %v432
        %v856 = vpop.f32.mrf.mxu0
        %v857 = vadd.f32 %v415, %v856
        %v858 = vpop.f32.mrf.mxu0
        %v859 = vadd.f32 %v419, %v858
        %860 = vmatprep.mubr.f32.mxu0 0.0
        %861 = vmatmul.mubr.f32.gmra.mxu0 %v435
        %v862 = vpop.f32.mrf.mxu0
        %v863 = vadd.f32 %v415, %v862
        %v864 = vpop.f32.mrf.mxu0
        %v865 = vadd.f32 %v419, %v864
        %866 = vmatprep.mubr.f32.mxu0 0.0
        %867 = vmatmul.mubr.f32.gmra.mxu0 %v438
        %v868 = vpop.f32.mrf.mxu0
        %v869 = vadd.f32 %v415, %v868
        %v870 = vpop.f32.mrf.mxu0
        %v871 = vadd.f32 %v419, %v870
        %872 = vmatprep.mubr.f32.mxu0 0.0
        %873 = vmatmul.mubr.f32.gmra.mxu0 %v441
        %v874 = vpop.f32.mrf.mxu0
        %v875 = vadd.f32 %v415, %v874
        %v876 = vpop.f32.mrf.mxu0
        %v877 = vadd.f32 %v419, %v876
        %878 = vmatprep.mubr.f32.mxu0 0.0
        %879 = vmatmul.mubr.f32.gmra.mxu0 %v444
        %v880 = vpop.f32.mrf.mxu0
        %v881 = vadd.f32 %v415, %v880
        %v882 = vpop.f32.mrf.mxu0
        %v883 = vadd.f32 %v419, %v882
        %884 = vmatprep.mubr.f32.mxu0 0.0
        %885 = vmatmul.mubr.f32.gmra.mxu0 %v447
        %v886 = vpop.f32.mrf.mxu0
        %v887 = vadd.f32 %v415, %v886
        %v888 = vpop.f32.mrf.mxu0
        %v889 = vadd.f32 %v419, %v888
        %890 = vmatprep.mubr.f32.mxu0 0.0
        %891 = vmatmul.mubr.f32.gmra.mxu0 %v450
        %v892 = vpop.f32.mrf.mxu0
        %v893 = vadd.f32 %v415, %v892
        %v894 = vpop.f32.mrf.mxu0
        %v895 = vadd.f32 %v419, %v894
        %896 = vmatprep.mubr.f32.mxu0 0.0
        %897 = vmatmul.mubr.f32.gmra.mxu0 %v453
        %v898 = vpop.f32.mrf.mxu0
        %v899 = vadd.f32 %v415, %v898
        %v900 = vpop.f32.mrf.mxu0
        %v901 = vadd.f32 %v419, %v900
        %902 = vmatprep.mubr.f32.mxu0 0.0
        %903 = vmatmul.mubr.f32.gmra.mxu0 %v456
        %v904 = vpop.f32.mrf.mxu0
        %v905 = vadd.f32 %v415, %v904
        %v906 = vpop.f32.mrf.mxu0
        %v907 = vadd.f32 %v419, %v906
        %908 = vmatprep.mubr.f32.mxu0 0.0
        %909 = vmatmul.mubr.f32.gmra.mxu0 %v459
        %v910 = vpop.f32.mrf.mxu0
        %v911 = vadd.f32 %v415, %v910
        %v912 = vpop.f32.mrf.mxu0
        %v913 = vadd.f32 %v419, %v912
        %914 = vmatprep.mubr.f32.mxu0 0.0
        %915 = vmatmul.mubr.f32.gmra.mxu0 %v462
        %v916 = vpop.f32.mrf.mxu0
        %v917 = vadd.f32 %v415, %v916
        %v918 = vpop.f32.mrf.mxu0
        %v919 = vadd.f32 %v419, %v918
        %920 = vmatprep.mubr.f32.mxu0 0.0
        %921 = vmatmul.mubr.f32.gmra.mxu0 %v465
        %v922 = vpop.f32.mrf.mxu0
        %v923 = vadd.f32 %v415, %v922
        %v924 = vpop.f32.mrf.mxu0
        %v925 = vadd.f32 %v419, %v924
        %926 = vmatprep.mubr.f32.mxu0 0.0
        %927 = vmatmul.mubr.f32.gmra.mxu0 %v468
        %v928 = vpop.f32.mrf.mxu0
        %v929 = vadd.f32 %v415, %v928
        %v930 = vpop.f32.mrf.mxu0
        %v931 = vadd.f32 %v419, %v930
        %932 = vmatprep.mubr.f32.mxu0 0.0
        %933 = vmatmul.mubr.f32.gmra.mxu0 %v471
        %v934 = vpop.f32.mrf.mxu0
        %v935 = vadd.f32 %v415, %v934
        %v936 = vpop.f32.mrf.mxu0
        %v937 = vadd.f32 %v419, %v936
        %938 = vmatprep.mubr.f32.mxu0 0.0
        %939 = vmatmul.mubr.f32.gmra.mxu0 %v474
        %v940 = vpop.f32.mrf.mxu0
        %v941 = vadd.f32 %v415, %v940
        %v942 = vpop.f32.mrf.mxu0
        %v943 = vadd.f32 %v419, %v942
        %944 = vmatprep.mubr.f32.mxu0 0.0
        %945 = vmatmul.mubr.f32.gmra.mxu0 %v477
        %v946 = vpop.f32.mrf.mxu0
        %v947 = vadd.f32 %v415, %v946
        %v948 = vpop.f32.mrf.mxu0
        %v949 = vadd.f32 %v419, %v948
        %950 = vmatprep.mubr.f32.mxu0 0.0
        %951 = vmatmul.mubr.f32.gmra.mxu0 %v480
        %v952 = vpop.f32.mrf.mxu0
        %v953 = vadd.f32 %v415, %v952
        %v954 = vpop.f32.mrf.mxu0
        %v955 = vadd.f32 %v419, %v954
        %956 = vmatprep.mubr.f32.mxu0 0.0
        %957 = vmatmul.mubr.f32.gmra.mxu0 %v483
        %v958 = vpop.f32.mrf.mxu0
        %v959 = vadd.f32 %v415, %v958
        %v960 = vpop.f32.mrf.mxu0
        %v961 = vadd.f32 %v419, %v960
        %962 = vmatprep.mubr.f32.mxu0 0.0
        %963 = vmatmul.mubr.f32.gmra.mxu0 %v486
        %v964 = vpop.f32.mrf.mxu0
        %v965 = vadd.f32 %v415, %v964
        %v966 = vpop.f32.mrf.mxu0
        %v967 = vadd.f32 %v419, %v966
        %968 = vmatprep.mubr.f32.mxu0 0.0
        %969 = vmatmul.mubr.f32.gmra.mxu0 %v489
        %v970 = vpop.f32.mrf.mxu0
        %v971 = vadd.f32 %v415, %v970
        %v972 = vpop.f32.mrf.mxu0
        %v973 = vadd.f32 %v419, %v972
        %974 = vmatprep.mubr.f32.mxu0 0.0
        %975 = vmatmul.mubr.f32.gmra.mxu0 %v492
        %v976 = vpop.f32.mrf.mxu0
        %v977 = vadd.f32 %v415, %v976
        %v978 = vpop.f32.mrf.mxu0
        %v979 = vadd.f32 %v419, %v978
        %980 = vmatprep.mubr.f32.mxu0 0.0
        %981 = vmatmul.mubr.f32.gmra.mxu0 %v495
        %v982 = vpop.f32.mrf.mxu0
        %v983 = vadd.f32 %v415, %v982
        %v984 = vpop.f32.mrf.mxu0
        %v985 = vadd.f32 %v419, %v984
        %986 = vmatprep.mubr.f32.mxu0 0.0
        %987 = vmatmul.mubr.f32.gmra.mxu0 %v498
        %v988 = vpop.f32.mrf.mxu0
        %v989 = vadd.f32 %v415, %v988
        %v990 = vpop.f32.mrf.mxu0
        %v991 = vadd.f32 %v419, %v990
        %992 = vmatprep.mubr.f32.mxu0 0.0
        %993 = vmatmul.mubr.f32.gmra.mxu0 %v501
        %v994 = vpop.f32.mrf.mxu0
        %v995 = vadd.f32 %v415, %v994
        %v996 = vpop.f32.mrf.mxu0
        %v997 = vadd.f32 %v419, %v996
        %998 = vmatprep.mubr.f32.mxu0 0.0
        %999 = vmatmul.mubr.f32.gmra.mxu0 %v504
        %v1000 = vpop.f32.mrf.mxu0
        %v1001 = vadd.f32 %v415, %v1000
        %v1002 = vpop.f32.mrf.mxu0
        %v1003 = vadd.f32 %v419, %v1002
        %1004 = vmatprep.mubr.f32.mxu0 0.0
        %1005 = vmatmul.mubr.f32.gmra.mxu0 %v507
        %v1006 = vpop.f32.mrf.mxu0
        %v1007 = vadd.f32 %v415, %v1006
        %v1008 = vpop.f32.mrf.mxu0
        %v1009 = vadd.f32 %v419, %v1008
        %1010 = vmatprep.mubr.f32.mxu0 0.0
        %1011 = vmatmul.mubr.f32.gmra.mxu0 %v510
        %v1012 = vpop.f32.mrf.mxu0
        %v1013 = vadd.f32 %v415, %v1012
        %v1014 = vpop.f32.mrf.mxu0
        %v1015 = vadd.f32 %v419, %v1014
        %1016 = vmatprep.mubr.f32.mxu0 0.0
        %1017 = vmatmul.mubr.f32.gmra.mxu0 %v513
        %v1018 = vpop.f32.mrf.mxu0
        %v1019 = vadd.f32 %v415, %v1018
        %v1020 = vpop.f32.mrf.mxu0
        %v1021 = vadd.f32 %v419, %v1020
        %1022 = vmatprep.mubr.f32.mxu0 0.0
        %1023 = vmatmul.mubr.f32.gmra.mxu0 %v516
        %v1024 = vpop.f32.mrf.mxu0
        %v1025 = vadd.f32 %v415, %v1024
        %v1026 = vpop.f32.mrf.mxu0
        %v1027 = vadd.f32 %v419, %v1026
        %1028 = vmatprep.mubr.f32.mxu0 0.0
        %1029 = vmatmul.mubr.f32.gmra.mxu0 %v519
        %v1030 = vpop.f32.mrf.mxu0
        %v1031 = vadd.f32 %v415, %v1030
        %v1032 = vpop.f32.mrf.mxu0
        %v1033 = vadd.f32 %v419, %v1032
        %1034 = vdwg.mxu0
        %v1035 = vmax.f32 %v588, 0.0
        %v1036 = vmax.f32 %v590, 0.0
        %v1037 = vmax.f32 %v845, 0.0
        %v1038 = vmax.f32 %v847, 0.0
        %v1039 = vmax.f32 %v594, 0.0
        %v1040 = vmax.f32 %v596, 0.0
        %v1041 = vmax.f32 %v851, 0.0
        %v1042 = vmax.f32 %v853, 0.0
        %v1043 = vmax.f32 %v600, 0.0
        %v1044 = vmax.f32 %v602, 0.0
        %v1045 = vmax.f32 %v857, 0.0
        %v1046 = vmax.f32 %v859, 0.0
        %v1047 = vmax.f32 %v606, 0.0
        %v1048 = vmax.f32 %v608, 0.0
        %v1049 = vmax.f32 %v863, 0.0
        %v1050 = vmax.f32 %v865, 0.0
        %v1051 = vmax.f32 %v612, 0.0
        %v1052 = vmax.f32 %v614, 0.0
        %v1053 = vmax.f32 %v869, 0.0
        %v1054 = vmax.f32 %v871, 0.0
        %v1055 = vmax.f32 %v618, 0.0
        %v1056 = vmax.f32 %v620, 0.0
        %v1057 = vmax.f32 %v875, 0.0
        %v1058 = vmax.f32 %v877, 0.0
        %v1059 = vmax.f32 %v624, 0.0
        %v1060 = vmax.f32 %v626, 0.0
        %v1061 = vmax.f32 %v881, 0.0
        %v1062 = vmax.f32 %v883, 0.0
        %v1063 = vmax.f32 %v630, 0.0
        %v1064 = vmax.f32 %v632, 0.0
        %v1065 = vmax.f32 %v887, 0.0
        %v1066 = vmax.f32 %v889, 0.0
        %v1067 = vmax.f32 %v636, 0.0
        %v1068 = vmax.f32 %v638, 0.0
        %v1069 = vmax.f32 %v893, 0.0
        %v1070 = vmax.f32 %v895, 0.0
        %v1071 = vmax.f32 %v642, 0.0
        %v1072 = vmax.f32 %v644, 0.0
        %v1073 = vmax.f32 %v899, 0.0
        %v1074 = vmax.f32 %v901, 0.0
        %v1075 = vmax.f32 %v648, 0.0
        %v1076 = vmax.f32 %v650, 0.0
        %v1077 = vmax.f32 %v905, 0.0
        %v1078 = vmax.f32 %v907, 0.0
        %v1079 = vmax.f32 %v654, 0.0
        %v1080 = vmax.f32 %v656, 0.0
        %v1081 = vmax.f32 %v911, 0.0
        %v1082 = vmax.f32 %v913, 0.0
        %v1083 = vmax.f32 %v660, 0.0
        %v1084 = vmax.f32 %v662, 0.0
        %v1085 = vmax.f32 %v917, 0.0
        %v1086 = vmax.f32 %v919, 0.0
        %v1087 = vmax.f32 %v666, 0.0
        %v1088 = vmax.f32 %v668, 0.0
        %v1089 = vmax.f32 %v923, 0.0
        %v1090 = vmax.f32 %v925, 0.0
        %v1091 = vmax.f32 %v672, 0.0
        %v1092 = vmax.f32 %v674, 0.0
        %v1093 = vmax.f32 %v929, 0.0
        %v1094 = vmax.f32 %v931, 0.0
        %v1095 = vmax.f32 %v678, 0.0
        %v1096 = vmax.f32 %v680, 0.0
        %v1097 = vmax.f32 %v935, 0.0
        %v1098 = vmax.f32 %v937, 0.0
        %v1099 = vmax.f32 %v684, 0.0
        %v1100 = vmax.f32 %v686, 0.0
        %v1101 = vmax.f32 %v941, 0.0
        %v1102 = vmax.f32 %v943, 0.0
        %v1103 = vmax.f32 %v690, 0.0
        %v1104 = vmax.f32 %v692, 0.0
        %v1105 = vmax.f32 %v947, 0.0
        %v1106 = vmax.f32 %v949, 0.0
        %v1107 = vmax.f32 %v696, 0.0
        %v1108 = vmax.f32 %v698, 0.0
        %v1109 = vmax.f32 %v953, 0.0
        %v1110 = vmax.f32 %v955, 0.0
        %v1111 = vmax.f32 %v702, 0.0
        %v1112 = vmax.f32 %v704, 0.0
        %v1113 = vmax.f32 %v959, 0.0
        %v1114 = vmax.f32 %v961, 0.0
        %v1115 = vmax.f32 %v708, 0.0
        %v1116 = vmax.f32 %v710, 0.0
        %v1117 = vmax.f32 %v965, 0.0
        %v1118 = vmax.f32 %v967, 0.0
        %v1119 = vmax.f32 %v714, 0.0
        %v1120 = vmax.f32 %v716, 0.0
        %v1121 = vmax.f32 %v971, 0.0
        %v1122 = vmax.f32 %v973, 0.0
        %v1123 = vmax.f32 %v720, 0.0
        %v1124 = vmax.f32 %v722, 0.0
        %v1125 = vmax.f32 %v977, 0.0
        %v1126 = vmax.f32 %v979, 0.0
        %v1127 = vmax.f32 %v726, 0.0
        %v1128 = vmax.f32 %v728, 0.0
        %v1129 = vmax.f32 %v983, 0.0
        %v1130 = vmax.f32 %v985, 0.0
        %v1131 = vmax.f32 %v732, 0.0
        %v1132 = vmax.f32 %v734, 0.0
        %v1133 = vmax.f32 %v989, 0.0
        %v1134 = vmax.f32 %v991, 0.0
        %v1135 = vmax.f32 %v738, 0.0
        %v1136 = vmax.f32 %v740, 0.0
        %v1137 = vmax.f32 %v995, 0.0
        %v1138 = vmax.f32 %v997, 0.0
        %v1139 = vmax.f32 %v744, 0.0
        %v1140 = vmax.f32 %v746, 0.0
        %v1141 = vmax.f32 %v1001, 0.0
        %v1142 = vmax.f32 %v1003, 0.0
        %v1143 = vmax.f32 %v750, 0.0
        %v1144 = vmax.f32 %v752, 0.0
        %v1145 = vmax.f32 %v1007, 0.0
        %v1146 = vmax.f32 %v1009, 0.0
        %v1147 = vmax.f32 %v756, 0.0
        %v1148 = vmax.f32 %v758, 0.0
        %v1149 = vmax.f32 %v1013, 0.0
        %v1150 = vmax.f32 %v1015, 0.0
        %v1151 = vmax.f32 %v762, 0.0
        %v1152 = vmax.f32 %v764, 0.0
        %v1153 = vmax.f32 %v1019, 0.0
        %v1154 = vmax.f32 %v1021, 0.0
        %v1155 = vmax.f32 %v768, 0.0
        %v1156 = vmax.f32 %v770, 0.0
        %v1157 = vmax.f32 %v1025, 0.0
        %v1158 = vmax.f32 %v1027, 0.0
        %v1159 = vmax.f32 %v774, 0.0
        %v1160 = vmax.f32 %v776, 0.0
        %v1161 = vmax.f32 %v1031, 0.0
        %v1162 = vmax.f32 %v1033, 0.0
        %v1163 = vld [vmem:[#allocation2] sm:$0xff]
        %v1164 = vld [vmem:[#allocation2 + $0x8] sm:$0xff]
        %v1165 = vld [vmem:[#allocation2 + $0x10] sm:$0xff]
        %v1166 = vld [vmem:[#allocation2 + $0x18] sm:$0xff]
        %v1167 = vld [vmem:[#allocation2 + $0x20] sm:$0xff]
        %v1168 = vld [vmem:[#allocation2 + $0x28] sm:$0xff]
        %v1169 = vld [vmem:[#allocation2 + $0x30] sm:$0xff]
        %v1170 = vld [vmem:[#allocation2 + $0x38] sm:$0xff]
        %v1171 = vld [vmem:[#allocation2 + $0x40] sm:$0xff]
        %v1172 = vld [vmem:[#allocation2 + $0x48] sm:$0xff]
        %v1173 = vld [vmem:[#allocation2 + $0x50] sm:$0xff]
        %v1174 = vld [vmem:[#allocation2 + $0x58] sm:$0xff]
        %v1175 = vld [vmem:[#allocation2 + $0x60] sm:$0xff]
        %v1176 = vld [vmem:[#allocation2 + $0x68] sm:$0xff]
        %v1177 = vld [vmem:[#allocation2 + $0x70] sm:$0xff]
        %v1178 = vld [vmem:[#allocation2 + $0x78] sm:$0xff]
        %v1179 = vld [vmem:[#allocation2 + $0x80] sm:$0xff]
        %v1180 = vld [vmem:[#allocation2 + $0x88] sm:$0xff]
        %v1181 = vld [vmem:[#allocation2 + $0x90] sm:$0xff]
        %v1182 = vld [vmem:[#allocation2 + $0x98] sm:$0xff]
        %v1183 = vld [vmem:[#allocation2 + $0xa0] sm:$0xff]
        %v1184 = vld [vmem:[#allocation2 + $0xa8] sm:$0xff]
        %v1185 = vld [vmem:[#allocation2 + $0xb0] sm:$0xff]
        %v1186 = vld [vmem:[#allocation2 + $0xb8] sm:$0xff]
        %v1187 = vld [vmem:[#allocation2 + $0xc0] sm:$0xff]
        %v1188 = vld [vmem:[#allocation2 + $0xc8] sm:$0xff]
        %v1189 = vld [vmem:[#allocation2 + $0xd0] sm:$0xff]
        %v1190 = vld [vmem:[#allocation2 + $0xd8] sm:$0xff]
        %v1191 = vld [vmem:[#allocation2 + $0xe0] sm:$0xff]
        %v1192 = vld [vmem:[#allocation2 + $0xe8] sm:$0xff]
        %v1193 = vld [vmem:[#allocation2 + $0xf0] sm:$0xff]
        %v1194 = vld [vmem:[#allocation2 + $0xf8] sm:$0xff]
        %v1195 = vld [vmem:[#allocation2 + $0x100] sm:$0xff]
        %v1196 = vld [vmem:[#allocation2 + $0x108] sm:$0xff]
        %v1197 = vld [vmem:[#allocation2 + $0x110] sm:$0xff]
        %v1198 = vld [vmem:[#allocation2 + $0x118] sm:$0xff]
        %v1199 = vld [vmem:[#allocation2 + $0x120] sm:$0xff]
        %v1200 = vld [vmem:[#allocation2 + $0x128] sm:$0xff]
        %v1201 = vld [vmem:[#allocation2 + $0x130] sm:$0xff]
        %v1202 = vld [vmem:[#allocation2 + $0x138] sm:$0xff]
        %v1203 = vld [vmem:[#allocation2 + $0x140] sm:$0xff]
        %v1204 = vld [vmem:[#allocation2 + $0x148] sm:$0xff]
        %v1205 = vld [vmem:[#allocation2 + $0x150] sm:$0xff]
        %v1206 = vld [vmem:[#allocation2 + $0x158] sm:$0xff]
        %v1207 = vld [vmem:[#allocation2 + $0x160] sm:$0xff]
        %v1208 = vld [vmem:[#allocation2 + $0x168] sm:$0xff]
        %v1209 = vld [vmem:[#allocation2 + $0x170] sm:$0xff]
        %v1210 = vld [vmem:[#allocation2 + $0x178] sm:$0xff]
        %v1211 = vld [vmem:[#allocation2 + $0x180] sm:$0xff]
        %v1212 = vld [vmem:[#allocation2 + $0x188] sm:$0xff]
        %v1213 = vld [vmem:[#allocation2 + $0x190] sm:$0xff]
        %v1214 = vld [vmem:[#allocation2 + $0x198] sm:$0xff]
        %v1215 = vld [vmem:[#allocation2 + $0x1a0] sm:$0xff]
        %v1216 = vld [vmem:[#allocation2 + $0x1a8] sm:$0xff]
        %v1217 = vld [vmem:[#allocation2 + $0x1b0] sm:$0xff]
        %v1218 = vld [vmem:[#allocation2 + $0x1b8] sm:$0xff]
        %v1219 = vld [vmem:[#allocation2 + $0x1c0] sm:$0xff]
        %v1220 = vld [vmem:[#allocation2 + $0x1c8] sm:$0xff]
        %v1221 = vld [vmem:[#allocation2 + $0x1d0] sm:$0xff]
        %v1222 = vld [vmem:[#allocation2 + $0x1d8] sm:$0xff]
        %v1223 = vld [vmem:[#allocation2 + $0x1e0] sm:$0xff]
        %v1224 = vld [vmem:[#allocation2 + $0x1e8] sm:$0xff]
        %v1225 = vld [vmem:[#allocation2 + $0x1f0] sm:$0xff]
        %v1226 = vld [vmem:[#allocation2 + $0x1f8] sm:$0xff]
        %v1227 = vld [vmem:[#allocation2 + $0x200] sm:$0xff]
        %v1228 = vld [vmem:[#allocation2 + $0x208] sm:$0xff]
        %v1229 = vld [vmem:[#allocation2 + $0x210] sm:$0xff]
        %v1230 = vld [vmem:[#allocation2 + $0x218] sm:$0xff]
        %v1231 = vld [vmem:[#allocation2 + $0x220] sm:$0xff]
        %v1232 = vld [vmem:[#allocation2 + $0x228] sm:$0xff]
        %v1233 = vld [vmem:[#allocation2 + $0x230] sm:$0xff]
        %v1234 = vld [vmem:[#allocation2 + $0x238] sm:$0xff]
        %v1235 = vld [vmem:[#allocation2 + $0x240] sm:$0xff]
        %v1236 = vld [vmem:[#allocation2 + $0x248] sm:$0xff]
        %v1237 = vld [vmem:[#allocation2 + $0x250] sm:$0xff]
        %v1238 = vld [vmem:[#allocation2 + $0x258] sm:$0xff]
        %v1239 = vld [vmem:[#allocation2 + $0x260] sm:$0xff]
        %v1240 = vld [vmem:[#allocation2 + $0x268] sm:$0xff]
        %v1241 = vld [vmem:[#allocation2 + $0x270] sm:$0xff]
        %v1242 = vld [vmem:[#allocation2 + $0x278] sm:$0xff]
        %v1243 = vld [vmem:[#allocation2 + $0x280] sm:$0xff]
        %v1244 = vld [vmem:[#allocation2 + $0x288] sm:$0xff]
        %v1245 = vld [vmem:[#allocation2 + $0x290] sm:$0xff]
        %v1246 = vld [vmem:[#allocation2 + $0x298] sm:$0xff]
        %v1247 = vld [vmem:[#allocation2 + $0x2a0] sm:$0xff]
        %v1248 = vld [vmem:[#allocation2 + $0x2a8] sm:$0xff]
        %v1249 = vld [vmem:[#allocation2 + $0x2b0] sm:$0xff]
        %v1250 = vld [vmem:[#allocation2 + $0x2b8] sm:$0xff]
        %v1251 = vld [vmem:[#allocation2 + $0x2c0] sm:$0xff]
        %v1252 = vld [vmem:[#allocation2 + $0x2c8] sm:$0xff]
        %v1253 = vld [vmem:[#allocation2 + $0x2d0] sm:$0xff]
        %v1254 = vld [vmem:[#allocation2 + $0x2d8] sm:$0xff]
        %v1255 = vld [vmem:[#allocation2 + $0x2e0] sm:$0xff]
        %v1256 = vld [vmem:[#allocation2 + $0x2e8] sm:$0xff]
        %v1257 = vld [vmem:[#allocation2 + $0x2f0] sm:$0xff]
        %v1258 = vld [vmem:[#allocation2 + $0x2f8] sm:$0xff]
        %v1259 = vld [vmem:[#allocation2 + $0x300] sm:$0xff]
        %v1260 = vld [vmem:[#allocation2 + $0x308] sm:$0xff]
        %v1261 = vld [vmem:[#allocation2 + $0x310] sm:$0xff]
        %v1262 = vld [vmem:[#allocation2 + $0x318] sm:$0xff]
        %v1263 = vld [vmem:[#allocation2 + $0x320] sm:$0xff]
        %v1264 = vld [vmem:[#allocation2 + $0x328] sm:$0xff]
        %v1265 = vld [vmem:[#allocation2 + $0x330] sm:$0xff]
        %v1266 = vld [vmem:[#allocation2 + $0x338] sm:$0xff]
        %v1267 = vld [vmem:[#allocation2 + $0x340] sm:$0xff]
        %v1268 = vld [vmem:[#allocation2 + $0x348] sm:$0xff]
        %v1269 = vld [vmem:[#allocation2 + $0x350] sm:$0xff]
        %v1270 = vld [vmem:[#allocation2 + $0x358] sm:$0xff]
        %v1271 = vld [vmem:[#allocation2 + $0x360] sm:$0xff]
        %v1272 = vld [vmem:[#allocation2 + $0x368] sm:$0xff]
        %v1273 = vld [vmem:[#allocation2 + $0x370] sm:$0xff]
        %v1274 = vld [vmem:[#allocation2 + $0x378] sm:$0xff]
        %v1275 = vld [vmem:[#allocation2 + $0x380] sm:$0xff]
        %v1276 = vld [vmem:[#allocation2 + $0x388] sm:$0xff]
        %v1277 = vld [vmem:[#allocation2 + $0x390] sm:$0xff]
        %v1278 = vld [vmem:[#allocation2 + $0x398] sm:$0xff]
        %v1279 = vld [vmem:[#allocation2 + $0x3a0] sm:$0xff]
        %v1280 = vld [vmem:[#allocation2 + $0x3a8] sm:$0xff]
        %v1281 = vld [vmem:[#allocation2 + $0x3b0] sm:$0xff]
        %v1282 = vld [vmem:[#allocation2 + $0x3b8] sm:$0xff]
        %v1283 = vld [vmem:[#allocation2 + $0x3c0] sm:$0xff]
        %v1284 = vld [vmem:[#allocation2 + $0x3c8] sm:$0xff]
        %v1285 = vld [vmem:[#allocation2 + $0x3d0] sm:$0xff]
        %v1286 = vld [vmem:[#allocation2 + $0x3d8] sm:$0xff]
        %v1287 = vld [vmem:[#allocation2 + $0x3e0] sm:$0xff]
        %v1288 = vld [vmem:[#allocation2 + $0x3e8] sm:$0xff]
        %v1289 = vld [vmem:[#allocation2 + $0x3f0] sm:$0xff]
        %v1290 = vld [vmem:[#allocation2 + $0x3f8] sm:$0xff]
        %v1291 = vld [vmem:[#allocation2 + $0x400] sm:$0xff]
        %v1292 = vld [vmem:[#allocation2 + $0x408] sm:$0xff]
        %v1293 = vld [vmem:[#allocation2 + $0x410] sm:$0xff]
        %v1294 = vld [vmem:[#allocation2 + $0x418] sm:$0xff]
        %v1295 = vld [vmem:[#allocation2 + $0x420] sm:$0xff]
        %v1296 = vld [vmem:[#allocation2 + $0x428] sm:$0xff]
        %v1297 = vld [vmem:[#allocation2 + $0x430] sm:$0xff]
        %v1298 = vld [vmem:[#allocation2 + $0x438] sm:$0xff]
        %v1299 = vld [vmem:[#allocation2 + $0x440] sm:$0xff]
        %v1300 = vld [vmem:[#allocation2 + $0x448] sm:$0xff]
        %v1301 = vld [vmem:[#allocation2 + $0x450] sm:$0xff]
        %v1302 = vld [vmem:[#allocation2 + $0x458] sm:$0xff]
        %v1303 = vld [vmem:[#allocation2 + $0x460] sm:$0xff]
        %v1304 = vld [vmem:[#allocation2 + $0x468] sm:$0xff]
        %v1305 = vld [vmem:[#allocation2 + $0x470] sm:$0xff]
        %v1306 = vld [vmem:[#allocation2 + $0x478] sm:$0xff]
        %v1307 = vld [vmem:[#allocation2 + $0x480] sm:$0xff]
        %v1308 = vld [vmem:[#allocation2 + $0x488] sm:$0xff]
        %v1309 = vld [vmem:[#allocation2 + $0x490] sm:$0xff]
        %v1310 = vld [vmem:[#allocation2 + $0x498] sm:$0xff]
        %v1311 = vld [vmem:[#allocation2 + $0x4a0] sm:$0xff]
        %v1312 = vld [vmem:[#allocation2 + $0x4a8] sm:$0xff]
        %v1313 = vld [vmem:[#allocation2 + $0x4b0] sm:$0xff]
        %v1314 = vld [vmem:[#allocation2 + $0x4b8] sm:$0xff]
        %v1315 = vld [vmem:[#allocation2 + $0x4c0] sm:$0xff]
        %v1316 = vld [vmem:[#allocation2 + $0x4c8] sm:$0xff]
        %v1317 = vld [vmem:[#allocation2 + $0x4d0] sm:$0xff]
        %v1318 = vld [vmem:[#allocation2 + $0x4d8] sm:$0xff]
        %v1319 = vld [vmem:[#allocation2 + $0x4e0] sm:$0xff]
        %v1320 = vld [vmem:[#allocation2 + $0x4e8] sm:$0xff]
        %v1321 = vld [vmem:[#allocation2 + $0x4f0] sm:$0xff]
        %v1322 = vld [vmem:[#allocation2 + $0x4f8] sm:$0xff]
        %v1323 = vld [vmem:[#allocation2 + $0x500] sm:$0xff]
        %v1324 = vld [vmem:[#allocation2 + $0x508] sm:$0xff]
        %v1325 = vld [vmem:[#allocation2 + $0x510] sm:$0xff]
        %v1326 = vld [vmem:[#allocation2 + $0x518] sm:$0xff]
        %v1327 = vld [vmem:[#allocation2 + $0x520] sm:$0xff]
        %v1328 = vld [vmem:[#allocation2 + $0x528] sm:$0xff]
        %v1329 = vld [vmem:[#allocation2 + $0x530] sm:$0xff]
        %v1330 = vld [vmem:[#allocation2 + $0x538] sm:$0xff]
        %v1331 = vld [vmem:[#allocation2 + $0x540] sm:$0xff]
        %v1332 = vld [vmem:[#allocation2 + $0x548] sm:$0xff]
        %v1333 = vld [vmem:[#allocation2 + $0x550] sm:$0xff]
        %v1334 = vld [vmem:[#allocation2 + $0x558] sm:$0xff]
        %v1335 = vld [vmem:[#allocation2 + $0x560] sm:$0xff]
        %v1336 = vld [vmem:[#allocation2 + $0x568] sm:$0xff]
        %v1337 = vld [vmem:[#allocation2 + $0x570] sm:$0xff]
        %v1338 = vld [vmem:[#allocation2 + $0x578] sm:$0xff]
        %v1339 = vld [vmem:[#allocation2 + $0x580] sm:$0xff]
        %v1340 = vld [vmem:[#allocation2 + $0x588] sm:$0xff]
        %v1341 = vld [vmem:[#allocation2 + $0x590] sm:$0xff]
        %v1342 = vld [vmem:[#allocation2 + $0x598] sm:$0xff]
        %v1343 = vld [vmem:[#allocation2 + $0x5a0] sm:$0xff]
        %v1344 = vld [vmem:[#allocation2 + $0x5a8] sm:$0xff]
        %v1345 = vld [vmem:[#allocation2 + $0x5b0] sm:$0xff]
        %v1346 = vld [vmem:[#allocation2 + $0x5b8] sm:$0xff]
        %v1347 = vld [vmem:[#allocation2 + $0x5c0] sm:$0xff]
        %v1348 = vld [vmem:[#allocation2 + $0x5c8] sm:$0xff]
        %v1349 = vld [vmem:[#allocation2 + $0x5d0] sm:$0xff]
        %v1350 = vld [vmem:[#allocation2 + $0x5d8] sm:$0xff]
        %v1351 = vld [vmem:[#allocation2 + $0x5e0] sm:$0xff]
        %v1352 = vld [vmem:[#allocation2 + $0x5e8] sm:$0xff]
        %v1353 = vld [vmem:[#allocation2 + $0x5f0] sm:$0xff]
        %v1354 = vld [vmem:[#allocation2 + $0x5f8] sm:$0xff]
        %v1355 = vld [vmem:[#allocation2 + $0x600] sm:$0xff]
        %v1356 = vld [vmem:[#allocation2 + $0x608] sm:$0xff]
        %v1357 = vld [vmem:[#allocation2 + $0x610] sm:$0xff]
        %v1358 = vld [vmem:[#allocation2 + $0x618] sm:$0xff]
        %v1359 = vld [vmem:[#allocation2 + $0x620] sm:$0xff]
        %v1360 = vld [vmem:[#allocation2 + $0x628] sm:$0xff]
        %v1361 = vld [vmem:[#allocation2 + $0x630] sm:$0xff]
        %v1362 = vld [vmem:[#allocation2 + $0x638] sm:$0xff]
        %v1363 = vld [vmem:[#allocation2 + $0x640] sm:$0xff]
        %v1364 = vld [vmem:[#allocation2 + $0x648] sm:$0xff]
        %v1365 = vld [vmem:[#allocation2 + $0x650] sm:$0xff]
        %v1366 = vld [vmem:[#allocation2 + $0x658] sm:$0xff]
        %v1367 = vld [vmem:[#allocation2 + $0x660] sm:$0xff]
        %v1368 = vld [vmem:[#allocation2 + $0x668] sm:$0xff]
        %v1369 = vld [vmem:[#allocation2 + $0x670] sm:$0xff]
        %v1370 = vld [vmem:[#allocation2 + $0x678] sm:$0xff]
        %v1371 = vld [vmem:[#allocation2 + $0x680] sm:$0xff]
        %v1372 = vld [vmem:[#allocation2 + $0x688] sm:$0xff]
        %v1373 = vld [vmem:[#allocation2 + $0x690] sm:$0xff]
        %v1374 = vld [vmem:[#allocation2 + $0x698] sm:$0xff]
        %v1375 = vld [vmem:[#allocation2 + $0x6a0] sm:$0xff]
        %v1376 = vld [vmem:[#allocation2 + $0x6a8] sm:$0xff]
        %v1377 = vld [vmem:[#allocation2 + $0x6b0] sm:$0xff]
        %v1378 = vld [vmem:[#allocation2 + $0x6b8] sm:$0xff]
        %v1379 = vld [vmem:[#allocation2 + $0x6c0] sm:$0xff]
        %v1380 = vld [vmem:[#allocation2 + $0x6c8] sm:$0xff]
        %v1381 = vld [vmem:[#allocation2 + $0x6d0] sm:$0xff]
        %v1382 = vld [vmem:[#allocation2 + $0x6d8] sm:$0xff]
        %v1383 = vld [vmem:[#allocation2 + $0x6e0] sm:$0xff]
        %v1384 = vld [vmem:[#allocation2 + $0x6e8] sm:$0xff]
        %v1385 = vld [vmem:[#allocation2 + $0x6f0] sm:$0xff]
        %v1386 = vld [vmem:[#allocation2 + $0x6f8] sm:$0xff]
        %v1387 = vld [vmem:[#allocation2 + $0x700] sm:$0xff]
        %v1388 = vld [vmem:[#allocation2 + $0x708] sm:$0xff]
        %v1389 = vld [vmem:[#allocation2 + $0x710] sm:$0xff]
        %v1390 = vld [vmem:[#allocation2 + $0x718] sm:$0xff]
        %v1391 = vld [vmem:[#allocation2 + $0x720] sm:$0xff]
        %v1392 = vld [vmem:[#allocation2 + $0x728] sm:$0xff]
        %v1393 = vld [vmem:[#allocation2 + $0x730] sm:$0xff]
        %v1394 = vld [vmem:[#allocation2 + $0x738] sm:$0xff]
        %v1395 = vld [vmem:[#allocation2 + $0x740] sm:$0xff]
        %v1396 = vld [vmem:[#allocation2 + $0x748] sm:$0xff]
        %v1397 = vld [vmem:[#allocation2 + $0x750] sm:$0xff]
        %v1398 = vld [vmem:[#allocation2 + $0x758] sm:$0xff]
        %v1399 = vld [vmem:[#allocation2 + $0x760] sm:$0xff]
        %v1400 = vld [vmem:[#allocation2 + $0x768] sm:$0xff]
        %v1401 = vld [vmem:[#allocation2 + $0x770] sm:$0xff]
        %v1402 = vld [vmem:[#allocation2 + $0x778] sm:$0xff]
        %v1403 = vld [vmem:[#allocation2 + $0x780] sm:$0xff]
        %v1404 = vld [vmem:[#allocation2 + $0x788] sm:$0xff]
        %v1405 = vld [vmem:[#allocation2 + $0x790] sm:$0xff]
        %v1406 = vld [vmem:[#allocation2 + $0x798] sm:$0xff]
        %v1407 = vld [vmem:[#allocation2 + $0x7a0] sm:$0xff]
        %v1408 = vld [vmem:[#allocation2 + $0x7a8] sm:$0xff]
        %v1409 = vld [vmem:[#allocation2 + $0x7b0] sm:$0xff]
        %v1410 = vld [vmem:[#allocation2 + $0x7b8] sm:$0xff]
        %v1411 = vld [vmem:[#allocation2 + $0x7c0] sm:$0xff]
        %v1412 = vld [vmem:[#allocation2 + $0x7c8] sm:$0xff]
        %v1413 = vld [vmem:[#allocation2 + $0x7d0] sm:$0xff]
        %v1414 = vld [vmem:[#allocation2 + $0x7d8] sm:$0xff]
        %v1415 = vld [vmem:[#allocation2 + $0x7e0] sm:$0xff]
        %v1416 = vld [vmem:[#allocation2 + $0x7e8] sm:$0xff]
        %v1417 = vld [vmem:[#allocation2 + $0x7f0] sm:$0xff]
        %v1418 = vld [vmem:[#allocation2 + $0x7f8] sm:$0xff]
        %v1419 = vld [vmem:[%s4] sm:$0xf]
        %v1421 = vlaneseq
        %v1422 = vshrl.u32 %v1421, 7
        %v1423 = vsub.s32 0, %v1422
        %v1424 = vrot.slane %v1419, %v1423
        %v1425 = vlaneseq
        %v1426 = vshrl.u32 %v1425, 7
        %v1427 = vsub.s32 1, %v1426
        %v1428 = vrot.slane %v1419, %v1427
        %v1429 = vlaneseq
        %v1430 = vshrl.u32 %v1429, 7
        %v1431 = vsub.s32 2, %v1430
        %v1432 = vrot.slane %v1419, %v1431
        %v1433 = vlaneseq
        %v1434 = vshrl.u32 %v1433, 7
        %v1435 = vsub.s32 3, %v1434
        %v1436 = vrot.slane %v1419, %v1435
        %1441 = vmatprep.subr.mxu0 %v1224
        %1442 = vmatpush1.msra.mxu0 %v1223
        %1443 = vmatprep.subr.mxu0 %v1220
        %1444 = vmatpush1.msra.mxu0 %v1219
        %1445 = vmatprep.subr.mxu0 %v1216
        %1446 = vmatpush1.msra.mxu0 %v1215
        %1447 = vmatprep.subr.mxu0 %v1212
        %1448 = vmatpush1.msra.mxu0 %v1211
        %1449 = vmatprep.subr.mxu0 %v1208
        %1450 = vmatpush1.msra.mxu0 %v1207
        %1451 = vmatprep.subr.mxu0 %v1204
        %1452 = vmatpush1.msra.mxu0 %v1203
        %1453 = vmatprep.subr.mxu0 %v1200
        %1454 = vmatpush1.msra.mxu0 %v1199
        %1455 = vmatprep.subr.mxu0 %v1196
        %1456 = vmatpush1.msra.mxu0 %v1195
        %1457 = vmatprep.subr.mxu0 %v1192
        %1458 = vmatpush1.msra.mxu0 %v1191
        %1459 = vmatprep.subr.mxu0 %v1188
        %1460 = vmatpush1.msra.mxu0 %v1187
        %1461 = vmatprep.subr.mxu0 %v1184
        %1462 = vmatpush1.msra.mxu0 %v1183
        %1463 = vmatprep.subr.mxu0 %v1180
        %1464 = vmatpush1.msra.mxu0 %v1179
        %1465 = vmatprep.subr.mxu0 %v1176
        %1466 = vmatpush1.msra.mxu0 %v1175
        %1467 = vmatprep.subr.mxu0 %v1172
        %1468 = vmatpush1.msra.mxu0 %v1171
        %1469 = vmatprep.subr.mxu0 %v1168
        %1470 = vmatpush1.msra.mxu0 %v1167
        %1471 = vmatprep.subr.mxu0 %v1164
        %1472 = vmatpush1.msra.mxu0 %v1163
        %1473 = vmatprep.subr.mxu0 %v1288
        %1474 = vmatpush2.msra.mxu0 %v1287
        %1475 = vmatprep.subr.mxu0 %v1284
        %1476 = vmatpush2.msra.mxu0 %v1283
        %1477 = vmatprep.subr.mxu0 %v1280
        %1478 = vmatpush2.msra.mxu0 %v1279
        %1479 = vmatprep.subr.mxu0 %v1276
        %1480 = vmatpush2.msra.mxu0 %v1275
        %1481 = vmatprep.subr.mxu0 %v1272
        %1482 = vmatpush2.msra.mxu0 %v1271
        %1483 = vmatprep.subr.mxu0 %v1268
        %1484 = vmatpush2.msra.mxu0 %v1267
        %1485 = vmatprep.subr.mxu0 %v1264
        %1486 = vmatpush2.msra.mxu0 %v1263
        %1487 = vmatprep.subr.mxu0 %v1260
        %1488 = vmatpush2.msra.mxu0 %v1259
        %1489 = vmatprep.subr.mxu0 %v1256
        %1490 = vmatpush2.msra.mxu0 %v1255
        %1491 = vmatprep.subr.mxu0 %v1252
        %1492 = vmatpush2.msra.mxu0 %v1251
        %1493 = vmatprep.subr.mxu0 %v1248
        %1494 = vmatpush2.msra.mxu0 %v1247
        %1495 = vmatprep.subr.mxu0 %v1244
        %1496 = vmatpush2.msra.mxu0 %v1243
        %1497 = vmatprep.subr.mxu0 %v1240
        %1498 = vmatpush2.msra.mxu0 %v1239
        %1499 = vmatprep.subr.mxu0 %v1236
        %1500 = vmatpush2.msra.mxu0 %v1235
        %1501 = vmatprep.subr.mxu0 %v1232
        %1502 = vmatpush2.msra.mxu0 %v1231
        %1503 = vmatprep.subr.mxu0 %v1228
        %1504 = vmatpush2.msra.mxu0 %v1227
        %1505 = vmatprep.mubr.f32.mxu0 %v1036
        %1506 = vmatmul.mubr.f32.gmra.mxu0 %v1035
        %v1507 = vpop.f32.mrf.mxu0
        %v1508 = vadd.f32 %v1424, %v1507
        %v1509 = vpop.f32.mrf.mxu0
        %v1510 = vadd.f32 %v1428, %v1509
        %1511 = vmatprep.mubr.f32.mxu0 %v1040
        %1512 = vmatmul.mubr.f32.gmra.mxu0 %v1039
        %v1513 = vpop.f32.mrf.mxu0
        %v1514 = vadd.f32 %v1424, %v1513
        %v1515 = vpop.f32.mrf.mxu0
        %v1516 = vadd.f32 %v1428, %v1515
        %1517 = vmatprep.mubr.f32.mxu0 %v1044
        %1518 = vmatmul.mubr.f32.gmra.mxu0 %v1043
        %v1519 = vpop.f32.mrf.mxu0
        %v1520 = vadd.f32 %v1424, %v1519
        %v1521 = vpop.f32.mrf.mxu0
        %v1522 = vadd.f32 %v1428, %v1521
        %1523 = vmatprep.mubr.f32.mxu0 %v1048
        %1524 = vmatmul.mubr.f32.gmra.mxu0 %v1047
        %v1525 = vpop.f32.mrf.mxu0
        %v1526 = vadd.f32 %v1424, %v1525
        %v1527 = vpop.f32.mrf.mxu0
        %v1528 = vadd.f32 %v1428, %v1527
        %1529 = vmatprep.mubr.f32.mxu0 %v1052
        %1530 = vmatmul.mubr.f32.gmra.mxu0 %v1051
        %v1531 = vpop.f32.mrf.mxu0
        %v1532 = vadd.f32 %v1424, %v1531
        %v1533 = vpop.f32.mrf.mxu0
        %v1534 = vadd.f32 %v1428, %v1533
        %1535 = vmatprep.mubr.f32.mxu0 %v1056
        %1536 = vmatmul.mubr.f32.gmra.mxu0 %v1055
        %v1537 = vpop.f32.mrf.mxu0
        %v1538 = vadd.f32 %v1424, %v1537
        %v1539 = vpop.f32.mrf.mxu0
        %v1540 = vadd.f32 %v1428, %v1539
        %1541 = vmatprep.mubr.f32.mxu0 %v1060
        %1542 = vmatmul.mubr.f32.gmra.mxu0 %v1059
        %v1543 = vpop.f32.mrf.mxu0
        %v1544 = vadd.f32 %v1424, %v1543
        %v1545 = vpop.f32.mrf.mxu0
        %v1546 = vadd.f32 %v1428, %v1545
        %1547 = vmatprep.mubr.f32.mxu0 %v1064
        %1548 = vmatmul.mubr.f32.gmra.mxu0 %v1063
        %v1549 = vpop.f32.mrf.mxu0
        %v1550 = vadd.f32 %v1424, %v1549
        %v1551 = vpop.f32.mrf.mxu0
        %v1552 = vadd.f32 %v1428, %v1551
        %1553 = vmatprep.mubr.f32.mxu0 %v1068
        %1554 = vmatmul.mubr.f32.gmra.mxu0 %v1067
        %v1555 = vpop.f32.mrf.mxu0
        %v1556 = vadd.f32 %v1424, %v1555
        %v1557 = vpop.f32.mrf.mxu0
        %v1558 = vadd.f32 %v1428, %v1557
        %1559 = vmatprep.mubr.f32.mxu0 %v1072
        %1560 = vmatmul.mubr.f32.gmra.mxu0 %v1071
        %v1561 = vpop.f32.mrf.mxu0
        %v1562 = vadd.f32 %v1424, %v1561
        %v1563 = vpop.f32.mrf.mxu0
        %v1564 = vadd.f32 %v1428, %v1563
        %1565 = vmatprep.mubr.f32.mxu0 %v1076
        %1566 = vmatmul.mubr.f32.gmra.mxu0 %v1075
        %v1567 = vpop.f32.mrf.mxu0
        %v1568 = vadd.f32 %v1424, %v1567
        %v1569 = vpop.f32.mrf.mxu0
        %v1570 = vadd.f32 %v1428, %v1569
        %1571 = vmatprep.mubr.f32.mxu0 %v1080
        %1572 = vmatmul.mubr.f32.gmra.mxu0 %v1079
        %v1573 = vpop.f32.mrf.mxu0
        %v1574 = vadd.f32 %v1424, %v1573
        %v1575 = vpop.f32.mrf.mxu0
        %v1576 = vadd.f32 %v1428, %v1575
        %1577 = vmatprep.mubr.f32.mxu0 %v1084
        %1578 = vmatmul.mubr.f32.gmra.mxu0 %v1083
        %v1579 = vpop.f32.mrf.mxu0
        %v1580 = vadd.f32 %v1424, %v1579
        %v1581 = vpop.f32.mrf.mxu0
        %v1582 = vadd.f32 %v1428, %v1581
        %1583 = vmatprep.mubr.f32.mxu0 %v1088
        %1584 = vmatmul.mubr.f32.gmra.mxu0 %v1087
        %v1585 = vpop.f32.mrf.mxu0
        %v1586 = vadd.f32 %v1424, %v1585
        %v1587 = vpop.f32.mrf.mxu0
        %v1588 = vadd.f32 %v1428, %v1587
        %1589 = vmatprep.mubr.f32.mxu0 %v1092
        %1590 = vmatmul.mubr.f32.gmra.mxu0 %v1091
        %v1591 = vpop.f32.mrf.mxu0
        %v1592 = vadd.f32 %v1424, %v1591
        %v1593 = vpop.f32.mrf.mxu0
        %v1594 = vadd.f32 %v1428, %v1593
        %1595 = vmatprep.mubr.f32.mxu0 %v1096
        %1596 = vmatmul.mubr.f32.gmra.mxu0 %v1095
        %v1597 = vpop.f32.mrf.mxu0
        %v1598 = vadd.f32 %v1424, %v1597
        %v1599 = vpop.f32.mrf.mxu0
        %v1600 = vadd.f32 %v1428, %v1599
        %1601 = vmatprep.mubr.f32.mxu0 %v1100
        %1602 = vmatmul.mubr.f32.gmra.mxu0 %v1099
        %v1603 = vpop.f32.mrf.mxu0
        %v1604 = vadd.f32 %v1424, %v1603
        %v1605 = vpop.f32.mrf.mxu0
        %v1606 = vadd.f32 %v1428, %v1605
        %1607 = vmatprep.mubr.f32.mxu0 %v1104
        %1608 = vmatmul.mubr.f32.gmra.mxu0 %v1103
        %v1609 = vpop.f32.mrf.mxu0
        %v1610 = vadd.f32 %v1424, %v1609
        %v1611 = vpop.f32.mrf.mxu0
        %v1612 = vadd.f32 %v1428, %v1611
        %1613 = vmatprep.mubr.f32.mxu0 %v1108
        %1614 = vmatmul.mubr.f32.gmra.mxu0 %v1107
        %v1615 = vpop.f32.mrf.mxu0
        %v1616 = vadd.f32 %v1424, %v1615
        %v1617 = vpop.f32.mrf.mxu0
        %v1618 = vadd.f32 %v1428, %v1617
        %1619 = vmatprep.mubr.f32.mxu0 %v1112
        %1620 = vmatmul.mubr.f32.gmra.mxu0 %v1111
        %v1621 = vpop.f32.mrf.mxu0
        %v1622 = vadd.f32 %v1424, %v1621
        %v1623 = vpop.f32.mrf.mxu0
        %v1624 = vadd.f32 %v1428, %v1623
        %1625 = vmatprep.mubr.f32.mxu0 %v1116
        %1626 = vmatmul.mubr.f32.gmra.mxu0 %v1115
        %v1627 = vpop.f32.mrf.mxu0
        %v1628 = vadd.f32 %v1424, %v1627
        %v1629 = vpop.f32.mrf.mxu0
        %v1630 = vadd.f32 %v1428, %v1629
        %1631 = vmatprep.mubr.f32.mxu0 %v1120
        %1632 = vmatmul.mubr.f32.gmra.mxu0 %v1119
        %v1633 = vpop.f32.mrf.mxu0
        %v1634 = vadd.f32 %v1424, %v1633
        %v1635 = vpop.f32.mrf.mxu0
        %v1636 = vadd.f32 %v1428, %v1635
        %1637 = vmatprep.mubr.f32.mxu0 %v1124
        %1638 = vmatmul.mubr.f32.gmra.mxu0 %v1123
        %v1639 = vpop.f32.mrf.mxu0
        %v1640 = vadd.f32 %v1424, %v1639
        %v1641 = vpop.f32.mrf.mxu0
        %v1642 = vadd.f32 %v1428, %v1641
        %1643 = vmatprep.mubr.f32.mxu0 %v1128
        %1644 = vmatmul.mubr.f32.gmra.mxu0 %v1127
        %v1645 = vpop.f32.mrf.mxu0
        %v1646 = vadd.f32 %v1424, %v1645
        %v1647 = vpop.f32.mrf.mxu0
        %v1648 = vadd.f32 %v1428, %v1647
        %1649 = vmatprep.mubr.f32.mxu0 %v1132
        %1650 = vmatmul.mubr.f32.gmra.mxu0 %v1131
        %v1651 = vpop.f32.mrf.mxu0
        %v1652 = vadd.f32 %v1424, %v1651
        %v1653 = vpop.f32.mrf.mxu0
        %v1654 = vadd.f32 %v1428, %v1653
        %1655 = vmatprep.mubr.f32.mxu0 %v1136
        %1656 = vmatmul.mubr.f32.gmra.mxu0 %v1135
        %v1657 = vpop.f32.mrf.mxu0
        %v1658 = vadd.f32 %v1424, %v1657
        %v1659 = vpop.f32.mrf.mxu0
        %v1660 = vadd.f32 %v1428, %v1659
        %1661 = vmatprep.mubr.f32.mxu0 %v1140
        %1662 = vmatmul.mubr.f32.gmra.mxu0 %v1139
        %v1663 = vpop.f32.mrf.mxu0
        %v1664 = vadd.f32 %v1424, %v1663
        %v1665 = vpop.f32.mrf.mxu0
        %v1666 = vadd.f32 %v1428, %v1665
        %1667 = vmatprep.mubr.f32.mxu0 %v1144
        %1668 = vmatmul.mubr.f32.gmra.mxu0 %v1143
        %v1669 = vpop.f32.mrf.mxu0
        %v1670 = vadd.f32 %v1424, %v1669
        %v1671 = vpop.f32.mrf.mxu0
        %v1672 = vadd.f32 %v1428, %v1671
        %1673 = vmatprep.mubr.f32.mxu0 %v1148
        %1674 = vmatmul.mubr.f32.gmra.mxu0 %v1147
        %v1675 = vpop.f32.mrf.mxu0
        %v1676 = vadd.f32 %v1424, %v1675
        %v1677 = vpop.f32.mrf.mxu0
        %v1678 = vadd.f32 %v1428, %v1677
        %1679 = vmatprep.mubr.f32.mxu0 %v1152
        %1680 = vmatmul.mubr.f32.gmra.mxu0 %v1151
        %v1681 = vpop.f32.mrf.mxu0
        %v1682 = vadd.f32 %v1424, %v1681
        %v1683 = vpop.f32.mrf.mxu0
        %v1684 = vadd.f32 %v1428, %v1683
        %1685 = vmatprep.mubr.f32.mxu0 %v1156
        %1686 = vmatmul.mubr.f32.gmra.mxu0 %v1155
        %v1687 = vpop.f32.mrf.mxu0
        %v1688 = vadd.f32 %v1424, %v1687
        %v1689 = vpop.f32.mrf.mxu0
        %v1690 = vadd.f32 %v1428, %v1689
        %1691 = vmatprep.mubr.f32.mxu0 %v1160
        %1692 = vmatmul.mubr.f32.gmra.mxu0 %v1159
        %v1693 = vpop.f32.mrf.mxu0
        %v1694 = vadd.f32 %v1424, %v1693
        %v1695 = vpop.f32.mrf.mxu0
        %v1696 = vadd.f32 %v1428, %v1695
        %1697 = vdwg.mxu0
        %1698 = vmatprep.subr.mxu0 %v1352
        %1699 = vmatpush1.msra.mxu0 %v1351
        %1700 = vmatprep.subr.mxu0 %v1348
        %1701 = vmatpush1.msra.mxu0 %v1347
        %1702 = vmatprep.subr.mxu0 %v1344
        %1703 = vmatpush1.msra.mxu0 %v1343
        %1704 = vmatprep.subr.mxu0 %v1340
        %1705 = vmatpush1.msra.mxu0 %v1339
        %1706 = vmatprep.subr.mxu0 %v1336
        %1707 = vmatpush1.msra.mxu0 %v1335
        %1708 = vmatprep.subr.mxu0 %v1332
        %1709 = vmatpush1.msra.mxu0 %v1331
        %1710 = vmatprep.subr.mxu0 %v1328
        %1711 = vmatpush1.msra.mxu0 %v1327
        %1712 = vmatprep.subr.mxu0 %v1324
        %1713 = vmatpush1.msra.mxu0 %v1323
        %1714 = vmatprep.subr.mxu0 %v1320
        %1715 = vmatpush1.msra.mxu0 %v1319
        %1716 = vmatprep.subr.mxu0 %v1316
        %1717 = vmatpush1.msra.mxu0 %v1315
        %1718 = vmatprep.subr.mxu0 %v1312
        %1719 = vmatpush1.msra.mxu0 %v1311
        %1720 = vmatprep.subr.mxu0 %v1308
        %1721 = vmatpush1.msra.mxu0 %v1307
        %1722 = vmatprep.subr.mxu0 %v1304
        %1723 = vmatpush1.msra.mxu0 %v1303
        %1724 = vmatprep.subr.mxu0 %v1300
        %1725 = vmatpush1.msra.mxu0 %v1299
        %1726 = vmatprep.subr.mxu0 %v1296
        %1727 = vmatpush1.msra.mxu0 %v1295
        %1728 = vmatprep.subr.mxu0 %v1292
        %1729 = vmatpush1.msra.mxu0 %v1291
        %1730 = vmatprep.subr.mxu0 %v1416
        %1731 = vmatpush2.msra.mxu0 %v1415
        %1732 = vmatprep.subr.mxu0 %v1412
        %1733 = vmatpush2.msra.mxu0 %v1411
        %1734 = vmatprep.subr.mxu0 %v1408
        %1735 = vmatpush2.msra.mxu0 %v1407
        %1736 = vmatprep.subr.mxu0 %v1404
        %1737 = vmatpush2.msra.mxu0 %v1403
        %1738 = vmatprep.subr.mxu0 %v1400
        %1739 = vmatpush2.msra.mxu0 %v1399
        %1740 = vmatprep.subr.mxu0 %v1396
        %1741 = vmatpush2.msra.mxu0 %v1395
        %1742 = vmatprep.subr.mxu0 %v1392
        %1743 = vmatpush2.msra.mxu0 %v1391
        %1744 = vmatprep.subr.mxu0 %v1388
        %1745 = vmatpush2.msra.mxu0 %v1387
        %1746 = vmatprep.subr.mxu0 %v1384
        %1747 = vmatpush2.msra.mxu0 %v1383
        %1748 = vmatprep.subr.mxu0 %v1380
        %1749 = vmatpush2.msra.mxu0 %v1379
        %1750 = vmatprep.subr.mxu0 %v1376
        %1751 = vmatpush2.msra.mxu0 %v1375
        %1752 = vmatprep.subr.mxu0 %v1372
        %1753 = vmatpush2.msra.mxu0 %v1371
        %1754 = vmatprep.subr.mxu0 %v1368
        %1755 = vmatpush2.msra.mxu0 %v1367
        %1756 = vmatprep.subr.mxu0 %v1364
        %1757 = vmatpush2.msra.mxu0 %v1363
        %1758 = vmatprep.subr.mxu0 %v1360
        %1759 = vmatpush2.msra.mxu0 %v1359
        %1760 = vmatprep.subr.mxu0 %v1356
        %1761 = vmatpush2.msra.mxu0 %v1355
        %1762 = vmatprep.mubr.f32.mxu0 %v1038
        %1763 = vmatmul.mubr.f32.gmra.mxu0 %v1037
        %v1764 = vpop.f32.mrf.mxu0
        %v1765 = vadd.f32 %v1508, %v1764
        %v1766 = vpop.f32.mrf.mxu0
        %v1767 = vadd.f32 %v1510, %v1766
        %1768 = vmatprep.mubr.f32.mxu0 %v1042
        %1769 = vmatmul.mubr.f32.gmra.mxu0 %v1041
        %v1770 = vpop.f32.mrf.mxu0
        %v1771 = vadd.f32 %v1514, %v1770
        %v1772 = vpop.f32.mrf.mxu0
        %v1773 = vadd.f32 %v1516, %v1772
        %1774 = vmatprep.mubr.f32.mxu0 %v1046
        %1775 = vmatmul.mubr.f32.gmra.mxu0 %v1045
        %v1776 = vpop.f32.mrf.mxu0
        %v1777 = vadd.f32 %v1520, %v1776
        %v1778 = vpop.f32.mrf.mxu0
        %v1779 = vadd.f32 %v1522, %v1778
        %1780 = vmatprep.mubr.f32.mxu0 %v1050
        %1781 = vmatmul.mubr.f32.gmra.mxu0 %v1049
        %v1782 = vpop.f32.mrf.mxu0
        %v1783 = vadd.f32 %v1526, %v1782
        %v1784 = vpop.f32.mrf.mxu0
        %v1785 = vadd.f32 %v1528, %v1784
        %1786 = vmatprep.mubr.f32.mxu0 %v1054
        %1787 = vmatmul.mubr.f32.gmra.mxu0 %v1053
        %v1788 = vpop.f32.mrf.mxu0
        %v1789 = vadd.f32 %v1532, %v1788
        %v1790 = vpop.f32.mrf.mxu0
        %v1791 = vadd.f32 %v1534, %v1790
        %1792 = vmatprep.mubr.f32.mxu0 %v1058
        %1793 = vmatmul.mubr.f32.gmra.mxu0 %v1057
        %v1794 = vpop.f32.mrf.mxu0
        %v1795 = vadd.f32 %v1538, %v1794
        %v1796 = vpop.f32.mrf.mxu0
        %v1797 = vadd.f32 %v1540, %v1796
        %1798 = vmatprep.mubr.f32.mxu0 %v1062
        %1799 = vmatmul.mubr.f32.gmra.mxu0 %v1061
        %v1800 = vpop.f32.mrf.mxu0
        %v1801 = vadd.f32 %v1544, %v1800
        %v1802 = vpop.f32.mrf.mxu0
        %v1803 = vadd.f32 %v1546, %v1802
        %1804 = vmatprep.mubr.f32.mxu0 %v1066
        %1805 = vmatmul.mubr.f32.gmra.mxu0 %v1065
        %v1806 = vpop.f32.mrf.mxu0
        %v1807 = vadd.f32 %v1550, %v1806
        %v1808 = vpop.f32.mrf.mxu0
        %v1809 = vadd.f32 %v1552, %v1808
        %1810 = vmatprep.mubr.f32.mxu0 %v1070
        %1811 = vmatmul.mubr.f32.gmra.mxu0 %v1069
        %v1812 = vpop.f32.mrf.mxu0
        %v1813 = vadd.f32 %v1556, %v1812
        %v1814 = vpop.f32.mrf.mxu0
        %v1815 = vadd.f32 %v1558, %v1814
        %1816 = vmatprep.mubr.f32.mxu0 %v1074
        %1817 = vmatmul.mubr.f32.gmra.mxu0 %v1073
        %v1818 = vpop.f32.mrf.mxu0
        %v1819 = vadd.f32 %v1562, %v1818
        %v1820 = vpop.f32.mrf.mxu0
        %v1821 = vadd.f32 %v1564, %v1820
        %1822 = vmatprep.mubr.f32.mxu0 %v1078
        %1823 = vmatmul.mubr.f32.gmra.mxu0 %v1077
        %v1824 = vpop.f32.mrf.mxu0
        %v1825 = vadd.f32 %v1568, %v1824
        %v1826 = vpop.f32.mrf.mxu0
        %v1827 = vadd.f32 %v1570, %v1826
        %1828 = vmatprep.mubr.f32.mxu0 %v1082
        %1829 = vmatmul.mubr.f32.gmra.mxu0 %v1081
        %v1830 = vpop.f32.mrf.mxu0
        %v1831 = vadd.f32 %v1574, %v1830
        %v1832 = vpop.f32.mrf.mxu0
        %v1833 = vadd.f32 %v1576, %v1832
        %1834 = vmatprep.mubr.f32.mxu0 %v1086
        %1835 = vmatmul.mubr.f32.gmra.mxu0 %v1085
        %v1836 = vpop.f32.mrf.mxu0
        %v1837 = vadd.f32 %v1580, %v1836
        %v1838 = vpop.f32.mrf.mxu0
        %v1839 = vadd.f32 %v1582, %v1838
        %1840 = vmatprep.mubr.f32.mxu0 %v1090
        %1841 = vmatmul.mubr.f32.gmra.mxu0 %v1089
        %v1842 = vpop.f32.mrf.mxu0
        %v1843 = vadd.f32 %v1586, %v1842
        %v1844 = vpop.f32.mrf.mxu0
        %v1845 = vadd.f32 %v1588, %v1844
        %1846 = vmatprep.mubr.f32.mxu0 %v1094
        %1847 = vmatmul.mubr.f32.gmra.mxu0 %v1093
        %v1848 = vpop.f32.mrf.mxu0
        %v1849 = vadd.f32 %v1592, %v1848
        %v1850 = vpop.f32.mrf.mxu0
        %v1851 = vadd.f32 %v1594, %v1850
        %1852 = vmatprep.mubr.f32.mxu0 %v1098
        %1853 = vmatmul.mubr.f32.gmra.mxu0 %v1097
        %v1854 = vpop.f32.mrf.mxu0
        %v1855 = vadd.f32 %v1598, %v1854
        %v1856 = vpop.f32.mrf.mxu0
        %v1857 = vadd.f32 %v1600, %v1856
        %1858 = vmatprep.mubr.f32.mxu0 %v1102
        %1859 = vmatmul.mubr.f32.gmra.mxu0 %v1101
        %v1860 = vpop.f32.mrf.mxu0
        %v1861 = vadd.f32 %v1604, %v1860
        %v1862 = vpop.f32.mrf.mxu0
        %v1863 = vadd.f32 %v1606, %v1862
        %1864 = vmatprep.mubr.f32.mxu0 %v1106
        %1865 = vmatmul.mubr.f32.gmra.mxu0 %v1105
        %v1866 = vpop.f32.mrf.mxu0
        %v1867 = vadd.f32 %v1610, %v1866
        %v1868 = vpop.f32.mrf.mxu0
        %v1869 = vadd.f32 %v1612, %v1868
        %1870 = vmatprep.mubr.f32.mxu0 %v1110
        %1871 = vmatmul.mubr.f32.gmra.mxu0 %v1109
        %v1872 = vpop.f32.mrf.mxu0
        %v1873 = vadd.f32 %v1616, %v1872
        %v1874 = vpop.f32.mrf.mxu0
        %v1875 = vadd.f32 %v1618, %v1874
        %1876 = vmatprep.mubr.f32.mxu0 %v1114
        %1877 = vmatmul.mubr.f32.gmra.mxu0 %v1113
        %v1878 = vpop.f32.mrf.mxu0
        %v1879 = vadd.f32 %v1622, %v1878
        %v1880 = vpop.f32.mrf.mxu0
        %v1881 = vadd.f32 %v1624, %v1880
        %1882 = vmatprep.mubr.f32.mxu0 %v1118
        %1883 = vmatmul.mubr.f32.gmra.mxu0 %v1117
        %v1884 = vpop.f32.mrf.mxu0
        %v1885 = vadd.f32 %v1628, %v1884
        %v1886 = vpop.f32.mrf.mxu0
        %v1887 = vadd.f32 %v1630, %v1886
        %1888 = vmatprep.mubr.f32.mxu0 %v1122
        %1889 = vmatmul.mubr.f32.gmra.mxu0 %v1121
        %v1890 = vpop.f32.mrf.mxu0
        %v1891 = vadd.f32 %v1634, %v1890
        %v1892 = vpop.f32.mrf.mxu0
        %v1893 = vadd.f32 %v1636, %v1892
        %1894 = vmatprep.mubr.f32.mxu0 %v1126
        %1895 = vmatmul.mubr.f32.gmra.mxu0 %v1125
        %v1896 = vpop.f32.mrf.mxu0
        %v1897 = vadd.f32 %v1640, %v1896
        %v1898 = vpop.f32.mrf.mxu0
        %v1899 = vadd.f32 %v1642, %v1898
        %1900 = vmatprep.mubr.f32.mxu0 %v1130
        %1901 = vmatmul.mubr.f32.gmra.mxu0 %v1129
        %v1902 = vpop.f32.mrf.mxu0
        %v1903 = vadd.f32 %v1646, %v1902
        %v1904 = vpop.f32.mrf.mxu0
        %v1905 = vadd.f32 %v1648, %v1904
        %1906 = vmatprep.mubr.f32.mxu0 %v1134
        %1907 = vmatmul.mubr.f32.gmra.mxu0 %v1133
        %v1908 = vpop.f32.mrf.mxu0
        %v1909 = vadd.f32 %v1652, %v1908
        %v1910 = vpop.f32.mrf.mxu0
        %v1911 = vadd.f32 %v1654, %v1910
        %1912 = vmatprep.mubr.f32.mxu0 %v1138
        %1913 = vmatmul.mubr.f32.gmra.mxu0 %v1137
        %v1914 = vpop.f32.mrf.mxu0
        %v1915 = vadd.f32 %v1658, %v1914
        %v1916 = vpop.f32.mrf.mxu0
        %v1917 = vadd.f32 %v1660, %v1916
        %1918 = vmatprep.mubr.f32.mxu0 %v1142
        %1919 = vmatmul.mubr.f32.gmra.mxu0 %v1141
        %v1920 = vpop.f32.mrf.mxu0
        %v1921 = vadd.f32 %v1664, %v1920
        %v1922 = vpop.f32.mrf.mxu0
        %v1923 = vadd.f32 %v1666, %v1922
        %1924 = vmatprep.mubr.f32.mxu0 %v1146
        %1925 = vmatmul.mubr.f32.gmra.mxu0 %v1145
        %v1926 = vpop.f32.mrf.mxu0
        %v1927 = vadd.f32 %v1670, %v1926
        %v1928 = vpop.f32.mrf.mxu0
        %v1929 = vadd.f32 %v1672, %v1928
        %1930 = vmatprep.mubr.f32.mxu0 %v1150
        %1931 = vmatmul.mubr.f32.gmra.mxu0 %v1149
        %v1932 = vpop.f32.mrf.mxu0
        %v1933 = vadd.f32 %v1676, %v1932
        %v1934 = vpop.f32.mrf.mxu0
        %v1935 = vadd.f32 %v1678, %v1934
        %1936 = vmatprep.mubr.f32.mxu0 %v1154
        %1937 = vmatmul.mubr.f32.gmra.mxu0 %v1153
        %v1938 = vpop.f32.mrf.mxu0
        %v1939 = vadd.f32 %v1682, %v1938
        %v1940 = vpop.f32.mrf.mxu0
        %v1941 = vadd.f32 %v1684, %v1940
        %1942 = vmatprep.mubr.f32.mxu0 %v1158
        %1943 = vmatmul.mubr.f32.gmra.mxu0 %v1157
        %v1944 = vpop.f32.mrf.mxu0
        %v1945 = vadd.f32 %v1688, %v1944
        %v1946 = vpop.f32.mrf.mxu0
        %v1947 = vadd.f32 %v1690, %v1946
        %1948 = vmatprep.mubr.f32.mxu0 %v1162
        %1949 = vmatmul.mubr.f32.gmra.mxu0 %v1161
        %v1950 = vpop.f32.mrf.mxu0
        %v1951 = vadd.f32 %v1694, %v1950
        %v1952 = vpop.f32.mrf.mxu0
        %v1953 = vadd.f32 %v1696, %v1952
        %1954 = vdwg.mxu0
        %1955 = vmatprep.subr.mxu0 %v1226
        %1956 = vmatpush1.msra.mxu0 %v1225
        %1957 = vmatprep.subr.mxu0 %v1222
        %1958 = vmatpush1.msra.mxu0 %v1221
        %1959 = vmatprep.subr.mxu0 %v1218
        %1960 = vmatpush1.msra.mxu0 %v1217
        %1961 = vmatprep.subr.mxu0 %v1214
        %1962 = vmatpush1.msra.mxu0 %v1213
        %1963 = vmatprep.subr.mxu0 %v1210
        %1964 = vmatpush1.msra.mxu0 %v1209
        %1965 = vmatprep.subr.mxu0 %v1206
        %1966 = vmatpush1.msra.mxu0 %v1205
        %1967 = vmatprep.subr.mxu0 %v1202
        %1968 = vmatpush1.msra.mxu0 %v1201
        %1969 = vmatprep.subr.mxu0 %v1198
        %1970 = vmatpush1.msra.mxu0 %v1197
        %1971 = vmatprep.subr.mxu0 %v1194
        %1972 = vmatpush1.msra.mxu0 %v1193
        %1973 = vmatprep.subr.mxu0 %v1190
        %1974 = vmatpush1.msra.mxu0 %v1189
        %1975 = vmatprep.subr.mxu0 %v1186
        %1976 = vmatpush1.msra.mxu0 %v1185
        %1977 = vmatprep.subr.mxu0 %v1182
        %1978 = vmatpush1.msra.mxu0 %v1181
        %1979 = vmatprep.subr.mxu0 %v1178
        %1980 = vmatpush1.msra.mxu0 %v1177
        %1981 = vmatprep.subr.mxu0 %v1174
        %1982 = vmatpush1.msra.mxu0 %v1173
        %1983 = vmatprep.subr.mxu0 %v1170
        %1984 = vmatpush1.msra.mxu0 %v1169
        %1985 = vmatprep.subr.mxu0 %v1166
        %1986 = vmatpush1.msra.mxu0 %v1165
        %1987 = vmatprep.subr.mxu0 %v1290
        %1988 = vmatpush2.msra.mxu0 %v1289
        %1989 = vmatprep.subr.mxu0 %v1286
        %1990 = vmatpush2.msra.mxu0 %v1285
        %1991 = vmatprep.subr.mxu0 %v1282
        %1992 = vmatpush2.msra.mxu0 %v1281
        %1993 = vmatprep.subr.mxu0 %v1278
        %1994 = vmatpush2.msra.mxu0 %v1277
        %1995 = vmatprep.subr.mxu0 %v1274
        %1996 = vmatpush2.msra.mxu0 %v1273
        %1997 = vmatprep.subr.mxu0 %v1270
        %1998 = vmatpush2.msra.mxu0 %v1269
        %1999 = vmatprep.subr.mxu0 %v1266
        %2000 = vmatpush2.msra.mxu0 %v1265
        %2001 = vmatprep.subr.mxu0 %v1262
        %2002 = vmatpush2.msra.mxu0 %v1261
        %2003 = vmatprep.subr.mxu0 %v1258
        %2004 = vmatpush2.msra.mxu0 %v1257
        %2005 = vmatprep.subr.mxu0 %v1254
        %2006 = vmatpush2.msra.mxu0 %v1253
        %2007 = vmatprep.subr.mxu0 %v1250
        %2008 = vmatpush2.msra.mxu0 %v1249
        %2009 = vmatprep.subr.mxu0 %v1246
        %2010 = vmatpush2.msra.mxu0 %v1245
        %2011 = vmatprep.subr.mxu0 %v1242
        %2012 = vmatpush2.msra.mxu0 %v1241
        %2013 = vmatprep.subr.mxu0 %v1238
        %2014 = vmatpush2.msra.mxu0 %v1237
        %2015 = vmatprep.subr.mxu0 %v1234
        %2016 = vmatpush2.msra.mxu0 %v1233
        %2017 = vmatprep.subr.mxu0 %v1230
        %2018 = vmatpush2.msra.mxu0 %v1229
        %2019 = vmatprep.mubr.f32.mxu0 %v1036
        %2020 = vmatmul.mubr.f32.gmra.mxu0 %v1035
        %v2021 = vpop.f32.mrf.mxu0
        %v2022 = vadd.f32 %v1432, %v2021
        %v2023 = vpop.f32.mrf.mxu0
        %v2024 = vadd.f32 %v1436, %v2023
        %2025 = vmatprep.mubr.f32.mxu0 %v1040
        %2026 = vmatmul.mubr.f32.gmra.mxu0 %v1039
        %v2027 = vpop.f32.mrf.mxu0
        %v2028 = vadd.f32 %v1432, %v2027
        %v2029 = vpop.f32.mrf.mxu0
        %v2030 = vadd.f32 %v1436, %v2029
        %2031 = vmatprep.mubr.f32.mxu0 %v1044
        %2032 = vmatmul.mubr.f32.gmra.mxu0 %v1043
        %v2033 = vpop.f32.mrf.mxu0
        %v2034 = vadd.f32 %v1432, %v2033
        %v2035 = vpop.f32.mrf.mxu0
        %v2036 = vadd.f32 %v1436, %v2035
        %2037 = vmatprep.mubr.f32.mxu0 %v1048
        %2038 = vmatmul.mubr.f32.gmra.mxu0 %v1047
        %v2039 = vpop.f32.mrf.mxu0
        %v2040 = vadd.f32 %v1432, %v2039
        %v2041 = vpop.f32.mrf.mxu0
        %v2042 = vadd.f32 %v1436, %v2041
        %2043 = vmatprep.mubr.f32.mxu0 %v1052
        %2044 = vmatmul.mubr.f32.gmra.mxu0 %v1051
        %v2045 = vpop.f32.mrf.mxu0
        %v2046 = vadd.f32 %v1432, %v2045
        %v2047 = vpop.f32.mrf.mxu0
        %v2048 = vadd.f32 %v1436, %v2047
        %2049 = vmatprep.mubr.f32.mxu0 %v1056
        %2050 = vmatmul.mubr.f32.gmra.mxu0 %v1055
        %v2051 = vpop.f32.mrf.mxu0
        %v2052 = vadd.f32 %v1432, %v2051
        %v2053 = vpop.f32.mrf.mxu0
        %v2054 = vadd.f32 %v1436, %v2053
        %2055 = vmatprep.mubr.f32.mxu0 %v1060
        %2056 = vmatmul.mubr.f32.gmra.mxu0 %v1059
        %v2057 = vpop.f32.mrf.mxu0
        %v2058 = vadd.f32 %v1432, %v2057
        %v2059 = vpop.f32.mrf.mxu0
        %v2060 = vadd.f32 %v1436, %v2059
        %2061 = vmatprep.mubr.f32.mxu0 %v1064
        %2062 = vmatmul.mubr.f32.gmra.mxu0 %v1063
        %v2063 = vpop.f32.mrf.mxu0
        %v2064 = vadd.f32 %v1432, %v2063
        %v2065 = vpop.f32.mrf.mxu0
        %v2066 = vadd.f32 %v1436, %v2065
        %2067 = vmatprep.mubr.f32.mxu0 %v1068
        %2068 = vmatmul.mubr.f32.gmra.mxu0 %v1067
        %v2069 = vpop.f32.mrf.mxu0
        %v2070 = vadd.f32 %v1432, %v2069
        %v2071 = vpop.f32.mrf.mxu0
        %v2072 = vadd.f32 %v1436, %v2071
        %2073 = vmatprep.mubr.f32.mxu0 %v1072
        %2074 = vmatmul.mubr.f32.gmra.mxu0 %v1071
        %v2075 = vpop.f32.mrf.mxu0
        %v2076 = vadd.f32 %v1432, %v2075
        %v2077 = vpop.f32.mrf.mxu0
        %v2078 = vadd.f32 %v1436, %v2077
        %2079 = vmatprep.mubr.f32.mxu0 %v1076
        %2080 = vmatmul.mubr.f32.gmra.mxu0 %v1075
        %v2081 = vpop.f32.mrf.mxu0
        %v2082 = vadd.f32 %v1432, %v2081
        %v2083 = vpop.f32.mrf.mxu0
        %v2084 = vadd.f32 %v1436, %v2083
        %2085 = vmatprep.mubr.f32.mxu0 %v1080
        %2086 = vmatmul.mubr.f32.gmra.mxu0 %v1079
        %v2087 = vpop.f32.mrf.mxu0
        %v2088 = vadd.f32 %v1432, %v2087
        %v2089 = vpop.f32.mrf.mxu0
        %v2090 = vadd.f32 %v1436, %v2089
        %2091 = vmatprep.mubr.f32.mxu0 %v1084
        %2092 = vmatmul.mubr.f32.gmra.mxu0 %v1083
        %v2093 = vpop.f32.mrf.mxu0
        %v2094 = vadd.f32 %v1432, %v2093
        %v2095 = vpop.f32.mrf.mxu0
        %v2096 = vadd.f32 %v1436, %v2095
        %2097 = vmatprep.mubr.f32.mxu0 %v1088
        %2098 = vmatmul.mubr.f32.gmra.mxu0 %v1087
        %v2099 = vpop.f32.mrf.mxu0
        %v2100 = vadd.f32 %v1432, %v2099
        %v2101 = vpop.f32.mrf.mxu0
        %v2102 = vadd.f32 %v1436, %v2101
        %2103 = vmatprep.mubr.f32.mxu0 %v1092
        %2104 = vmatmul.mubr.f32.gmra.mxu0 %v1091
        %v2105 = vpop.f32.mrf.mxu0
        %v2106 = vadd.f32 %v1432, %v2105
        %v2107 = vpop.f32.mrf.mxu0
        %v2108 = vadd.f32 %v1436, %v2107
        %2109 = vmatprep.mubr.f32.mxu0 %v1096
        %2110 = vmatmul.mubr.f32.gmra.mxu0 %v1095
        %v2111 = vpop.f32.mrf.mxu0
        %v2112 = vadd.f32 %v1432, %v2111
        %v2113 = vpop.f32.mrf.mxu0
        %v2114 = vadd.f32 %v1436, %v2113
        %2115 = vmatprep.mubr.f32.mxu0 %v1100
        %2116 = vmatmul.mubr.f32.gmra.mxu0 %v1099
        %v2117 = vpop.f32.mrf.mxu0
        %v2118 = vadd.f32 %v1432, %v2117
        %v2119 = vpop.f32.mrf.mxu0
        %v2120 = vadd.f32 %v1436, %v2119
        %2121 = vmatprep.mubr.f32.mxu0 %v1104
        %2122 = vmatmul.mubr.f32.gmra.mxu0 %v1103
        %v2123 = vpop.f32.mrf.mxu0
        %v2124 = vadd.f32 %v1432, %v2123
        %v2125 = vpop.f32.mrf.mxu0
        %v2126 = vadd.f32 %v1436, %v2125
        %2127 = vmatprep.mubr.f32.mxu0 %v1108
        %2128 = vmatmul.mubr.f32.gmra.mxu0 %v1107
        %v2129 = vpop.f32.mrf.mxu0
        %v2130 = vadd.f32 %v1432, %v2129
        %v2131 = vpop.f32.mrf.mxu0
        %v2132 = vadd.f32 %v1436, %v2131
        %2133 = vmatprep.mubr.f32.mxu0 %v1112
        %2134 = vmatmul.mubr.f32.gmra.mxu0 %v1111
        %v2135 = vpop.f32.mrf.mxu0
        %v2136 = vadd.f32 %v1432, %v2135
        %v2137 = vpop.f32.mrf.mxu0
        %v2138 = vadd.f32 %v1436, %v2137
        %2139 = vmatprep.mubr.f32.mxu0 %v1116
        %2140 = vmatmul.mubr.f32.gmra.mxu0 %v1115
        %v2141 = vpop.f32.mrf.mxu0
        %v2142 = vadd.f32 %v1432, %v2141
        %v2143 = vpop.f32.mrf.mxu0
        %v2144 = vadd.f32 %v1436, %v2143
        %2145 = vmatprep.mubr.f32.mxu0 %v1120
        %2146 = vmatmul.mubr.f32.gmra.mxu0 %v1119
        %v2147 = vpop.f32.mrf.mxu0
        %v2148 = vadd.f32 %v1432, %v2147
        %v2149 = vpop.f32.mrf.mxu0
        %v2150 = vadd.f32 %v1436, %v2149
        %2151 = vmatprep.mubr.f32.mxu0 %v1124
        %2152 = vmatmul.mubr.f32.gmra.mxu0 %v1123
        %v2153 = vpop.f32.mrf.mxu0
        %v2154 = vadd.f32 %v1432, %v2153
        %v2155 = vpop.f32.mrf.mxu0
        %v2156 = vadd.f32 %v1436, %v2155
        %2157 = vmatprep.mubr.f32.mxu0 %v1128
        %2158 = vmatmul.mubr.f32.gmra.mxu0 %v1127
        %v2159 = vpop.f32.mrf.mxu0
        %v2160 = vadd.f32 %v1432, %v2159
        %v2161 = vpop.f32.mrf.mxu0
        %v2162 = vadd.f32 %v1436, %v2161
        %2163 = vmatprep.mubr.f32.mxu0 %v1132
        %2164 = vmatmul.mubr.f32.gmra.mxu0 %v1131
        %v2165 = vpop.f32.mrf.mxu0
        %v2166 = vadd.f32 %v1432, %v2165
        %v2167 = vpop.f32.mrf.mxu0
        %v2168 = vadd.f32 %v1436, %v2167
        %2169 = vmatprep.mubr.f32.mxu0 %v1136
        %2170 = vmatmul.mubr.f32.gmra.mxu0 %v1135
        %v2171 = vpop.f32.mrf.mxu0
        %v2172 = vadd.f32 %v1432, %v2171
        %v2173 = vpop.f32.mrf.mxu0
        %v2174 = vadd.f32 %v1436, %v2173
        %2175 = vmatprep.mubr.f32.mxu0 %v1140
        %2176 = vmatmul.mubr.f32.gmra.mxu0 %v1139
        %v2177 = vpop.f32.mrf.mxu0
        %v2178 = vadd.f32 %v1432, %v2177
        %v2179 = vpop.f32.mrf.mxu0
        %v2180 = vadd.f32 %v1436, %v2179
        %2181 = vmatprep.mubr.f32.mxu0 %v1144
        %2182 = vmatmul.mubr.f32.gmra.mxu0 %v1143
        %v2183 = vpop.f32.mrf.mxu0
        %v2184 = vadd.f32 %v1432, %v2183
        %v2185 = vpop.f32.mrf.mxu0
        %v2186 = vadd.f32 %v1436, %v2185
        %2187 = vmatprep.mubr.f32.mxu0 %v1148
        %2188 = vmatmul.mubr.f32.gmra.mxu0 %v1147
        %v2189 = vpop.f32.mrf.mxu0
        %v2190 = vadd.f32 %v1432, %v2189
        %v2191 = vpop.f32.mrf.mxu0
        %v2192 = vadd.f32 %v1436, %v2191
        %2193 = vmatprep.mubr.f32.mxu0 %v1152
        %2194 = vmatmul.mubr.f32.gmra.mxu0 %v1151
        %v2195 = vpop.f32.mrf.mxu0
        %v2196 = vadd.f32 %v1432, %v2195
        %v2197 = vpop.f32.mrf.mxu0
        %v2198 = vadd.f32 %v1436, %v2197
        %2199 = vmatprep.mubr.f32.mxu0 %v1156
        %2200 = vmatmul.mubr.f32.gmra.mxu0 %v1155
        %v2201 = vpop.f32.mrf.mxu0
        %v2202 = vadd.f32 %v1432, %v2201
        %v2203 = vpop.f32.mrf.mxu0
        %v2204 = vadd.f32 %v1436, %v2203
        %2205 = vmatprep.mubr.f32.mxu0 %v1160
        %2206 = vmatmul.mubr.f32.gmra.mxu0 %v1159
        %v2207 = vpop.f32.mrf.mxu0
        %v2208 = vadd.f32 %v1432, %v2207
        %v2209 = vpop.f32.mrf.mxu0
        %v2210 = vadd.f32 %v1436, %v2209
        %2211 = vdwg.mxu0
        %2212 = vmatprep.subr.mxu0 %v1354
        %2213 = vmatpush1.msra.mxu0 %v1353
        %2214 = vmatprep.subr.mxu0 %v1350
        %2215 = vmatpush1.msra.mxu0 %v1349
        %2216 = vmatprep.subr.mxu0 %v1346
        %2217 = vmatpush1.msra.mxu0 %v1345
        %2218 = vmatprep.subr.mxu0 %v1342
        %2219 = vmatpush1.msra.mxu0 %v1341
        %2220 = vmatprep.subr.mxu0 %v1338
        %2221 = vmatpush1.msra.mxu0 %v1337
        %2222 = vmatprep.subr.mxu0 %v1334
        %2223 = vmatpush1.msra.mxu0 %v1333
        %2224 = vmatprep.subr.mxu0 %v1330
        %2225 = vmatpush1.msra.mxu0 %v1329
        %2226 = vmatprep.subr.mxu0 %v1326
        %2227 = vmatpush1.msra.mxu0 %v1325
        %2228 = vmatprep.subr.mxu0 %v1322
        %2229 = vmatpush1.msra.mxu0 %v1321
        %2230 = vmatprep.subr.mxu0 %v1318
        %2231 = vmatpush1.msra.mxu0 %v1317
        %2232 = vmatprep.subr.mxu0 %v1314
        %2233 = vmatpush1.msra.mxu0 %v1313
        %2234 = vmatprep.subr.mxu0 %v1310
        %2235 = vmatpush1.msra.mxu0 %v1309
        %2236 = vmatprep.subr.mxu0 %v1306
        %2237 = vmatpush1.msra.mxu0 %v1305
        %2238 = vmatprep.subr.mxu0 %v1302
        %2239 = vmatpush1.msra.mxu0 %v1301
        %2240 = vmatprep.subr.mxu0 %v1298
        %2241 = vmatpush1.msra.mxu0 %v1297
        %2242 = vmatprep.subr.mxu0 %v1294
        %2243 = vmatpush1.msra.mxu0 %v1293
        %2244 = vmatprep.subr.mxu0 %v1418
        %2245 = vmatpush2.msra.mxu0 %v1417
        %2246 = vmatprep.subr.mxu0 %v1414
        %2247 = vmatpush2.msra.mxu0 %v1413
        %2248 = vmatprep.subr.mxu0 %v1410
        %2249 = vmatpush2.msra.mxu0 %v1409
        %2250 = vmatprep.subr.mxu0 %v1406
        %2251 = vmatpush2.msra.mxu0 %v1405
        %2252 = vmatprep.subr.mxu0 %v1402
        %2253 = vmatpush2.msra.mxu0 %v1401
        %2254 = vmatprep.subr.mxu0 %v1398
        %2255 = vmatpush2.msra.mxu0 %v1397
        %2256 = vmatprep.subr.mxu0 %v1394
        %2257 = vmatpush2.msra.mxu0 %v1393
        %2258 = vmatprep.subr.mxu0 %v1390
        %2259 = vmatpush2.msra.mxu0 %v1389
        %2260 = vmatprep.subr.mxu0 %v1386
        %2261 = vmatpush2.msra.mxu0 %v1385
        %2262 = vmatprep.subr.mxu0 %v1382
        %2263 = vmatpush2.msra.mxu0 %v1381
        %2264 = vmatprep.subr.mxu0 %v1378
        %2265 = vmatpush2.msra.mxu0 %v1377
        %2266 = vmatprep.subr.mxu0 %v1374
        %2267 = vmatpush2.msra.mxu0 %v1373
        %2268 = vmatprep.subr.mxu0 %v1370
        %2269 = vmatpush2.msra.mxu0 %v1369
        %2270 = vmatprep.subr.mxu0 %v1366
        %2271 = vmatpush2.msra.mxu0 %v1365
        %2272 = vmatprep.subr.mxu0 %v1362
        %2273 = vmatpush2.msra.mxu0 %v1361
        %2274 = vmatprep.subr.mxu0 %v1358
        %2275 = vmatpush2.msra.mxu0 %v1357
        %2276 = vmatprep.mubr.f32.mxu0 %v1038
        %2277 = vmatmul.mubr.f32.gmra.mxu0 %v1037
        %v2278 = vpop.f32.mrf.mxu0
        %v2279 = vadd.f32 %v2022, %v2278
        %v2280 = vpop.f32.mrf.mxu0
        %v2281 = vadd.f32 %v2024, %v2280
        %2282 = vmatprep.mubr.f32.mxu0 %v1042
        %2283 = vmatmul.mubr.f32.gmra.mxu0 %v1041
        %v2284 = vpop.f32.mrf.mxu0
        %v2285 = vadd.f32 %v2028, %v2284
        %v2286 = vpop.f32.mrf.mxu0
        %v2287 = vadd.f32 %v2030, %v2286
        %2288 = vmatprep.mubr.f32.mxu0 %v1046
        %2289 = vmatmul.mubr.f32.gmra.mxu0 %v1045
        %v2290 = vpop.f32.mrf.mxu0
        %v2291 = vadd.f32 %v2034, %v2290
        %v2292 = vpop.f32.mrf.mxu0
        %v2293 = vadd.f32 %v2036, %v2292
        %2294 = vmatprep.mubr.f32.mxu0 %v1050
        %2295 = vmatmul.mubr.f32.gmra.mxu0 %v1049
        %v2296 = vpop.f32.mrf.mxu0
        %v2297 = vadd.f32 %v2040, %v2296
        %v2298 = vpop.f32.mrf.mxu0
        %v2299 = vadd.f32 %v2042, %v2298
        %2300 = vmatprep.mubr.f32.mxu0 %v1054
        %2301 = vmatmul.mubr.f32.gmra.mxu0 %v1053
        %v2302 = vpop.f32.mrf.mxu0
        %v2303 = vadd.f32 %v2046, %v2302
        %v2304 = vpop.f32.mrf.mxu0
        %v2305 = vadd.f32 %v2048, %v2304
        %2306 = vmatprep.mubr.f32.mxu0 %v1058
        %2307 = vmatmul.mubr.f32.gmra.mxu0 %v1057
        %v2308 = vpop.f32.mrf.mxu0
        %v2309 = vadd.f32 %v2052, %v2308
        %v2310 = vpop.f32.mrf.mxu0
        %v2311 = vadd.f32 %v2054, %v2310
        %2312 = vmatprep.mubr.f32.mxu0 %v1062
        %2313 = vmatmul.mubr.f32.gmra.mxu0 %v1061
        %v2314 = vpop.f32.mrf.mxu0
        %v2315 = vadd.f32 %v2058, %v2314
        %v2316 = vpop.f32.mrf.mxu0
        %v2317 = vadd.f32 %v2060, %v2316
        %2318 = vmatprep.mubr.f32.mxu0 %v1066
        %2319 = vmatmul.mubr.f32.gmra.mxu0 %v1065
        %v2320 = vpop.f32.mrf.mxu0
        %v2321 = vadd.f32 %v2064, %v2320
        %v2322 = vpop.f32.mrf.mxu0
        %v2323 = vadd.f32 %v2066, %v2322
        %2324 = vmatprep.mubr.f32.mxu0 %v1070
        %2325 = vmatmul.mubr.f32.gmra.mxu0 %v1069
        %v2326 = vpop.f32.mrf.mxu0
        %v2327 = vadd.f32 %v2070, %v2326
        %v2328 = vpop.f32.mrf.mxu0
        %v2329 = vadd.f32 %v2072, %v2328
        %2330 = vmatprep.mubr.f32.mxu0 %v1074
        %2331 = vmatmul.mubr.f32.gmra.mxu0 %v1073
        %v2332 = vpop.f32.mrf.mxu0
        %v2333 = vadd.f32 %v2076, %v2332
        %v2334 = vpop.f32.mrf.mxu0
        %v2335 = vadd.f32 %v2078, %v2334
        %2336 = vmatprep.mubr.f32.mxu0 %v1078
        %2337 = vmatmul.mubr.f32.gmra.mxu0 %v1077
        %v2338 = vpop.f32.mrf.mxu0
        %v2339 = vadd.f32 %v2082, %v2338
        %v2340 = vpop.f32.mrf.mxu0
        %v2341 = vadd.f32 %v2084, %v2340
        %2342 = vmatprep.mubr.f32.mxu0 %v1082
        %2343 = vmatmul.mubr.f32.gmra.mxu0 %v1081
        %v2344 = vpop.f32.mrf.mxu0
        %v2345 = vadd.f32 %v2088, %v2344
        %v2346 = vpop.f32.mrf.mxu0
        %v2347 = vadd.f32 %v2090, %v2346
        %2348 = vmatprep.mubr.f32.mxu0 %v1086
        %2349 = vmatmul.mubr.f32.gmra.mxu0 %v1085
        %v2350 = vpop.f32.mrf.mxu0
        %v2351 = vadd.f32 %v2094, %v2350
        %v2352 = vpop.f32.mrf.mxu0
        %v2353 = vadd.f32 %v2096, %v2352
        %2354 = vmatprep.mubr.f32.mxu0 %v1090
        %2355 = vmatmul.mubr.f32.gmra.mxu0 %v1089
        %v2356 = vpop.f32.mrf.mxu0
        %v2357 = vadd.f32 %v2100, %v2356
        %v2358 = vpop.f32.mrf.mxu0
        %v2359 = vadd.f32 %v2102, %v2358
        %2360 = vmatprep.mubr.f32.mxu0 %v1094
        %2361 = vmatmul.mubr.f32.gmra.mxu0 %v1093
        %v2362 = vpop.f32.mrf.mxu0
        %v2363 = vadd.f32 %v2106, %v2362
        %v2364 = vpop.f32.mrf.mxu0
        %v2365 = vadd.f32 %v2108, %v2364
        %2366 = vmatprep.mubr.f32.mxu0 %v1098
        %2367 = vmatmul.mubr.f32.gmra.mxu0 %v1097
        %v2368 = vpop.f32.mrf.mxu0
        %v2369 = vadd.f32 %v2112, %v2368
        %v2370 = vpop.f32.mrf.mxu0
        %v2371 = vadd.f32 %v2114, %v2370
        %2372 = vmatprep.mubr.f32.mxu0 %v1102
        %2373 = vmatmul.mubr.f32.gmra.mxu0 %v1101
        %v2374 = vpop.f32.mrf.mxu0
        %v2375 = vadd.f32 %v2118, %v2374
        %v2376 = vpop.f32.mrf.mxu0
        %v2377 = vadd.f32 %v2120, %v2376
        %2378 = vmatprep.mubr.f32.mxu0 %v1106
        %2379 = vmatmul.mubr.f32.gmra.mxu0 %v1105
        %v2380 = vpop.f32.mrf.mxu0
        %v2381 = vadd.f32 %v2124, %v2380
        %v2382 = vpop.f32.mrf.mxu0
        %v2383 = vadd.f32 %v2126, %v2382
        %2384 = vmatprep.mubr.f32.mxu0 %v1110
        %2385 = vmatmul.mubr.f32.gmra.mxu0 %v1109
        %v2386 = vpop.f32.mrf.mxu0
        %v2387 = vadd.f32 %v2130, %v2386
        %v2388 = vpop.f32.mrf.mxu0
        %v2389 = vadd.f32 %v2132, %v2388
        %2390 = vmatprep.mubr.f32.mxu0 %v1114
        %2391 = vmatmul.mubr.f32.gmra.mxu0 %v1113
        %v2392 = vpop.f32.mrf.mxu0
        %v2393 = vadd.f32 %v2136, %v2392
        %v2394 = vpop.f32.mrf.mxu0
        %v2395 = vadd.f32 %v2138, %v2394
        %2396 = vmatprep.mubr.f32.mxu0 %v1118
        %2397 = vmatmul.mubr.f32.gmra.mxu0 %v1117
        %v2398 = vpop.f32.mrf.mxu0
        %v2399 = vadd.f32 %v2142, %v2398
        %v2400 = vpop.f32.mrf.mxu0
        %v2401 = vadd.f32 %v2144, %v2400
        %2402 = vmatprep.mubr.f32.mxu0 %v1122
        %2403 = vmatmul.mubr.f32.gmra.mxu0 %v1121
        %v2404 = vpop.f32.mrf.mxu0
        %v2405 = vadd.f32 %v2148, %v2404
        %v2406 = vpop.f32.mrf.mxu0
        %v2407 = vadd.f32 %v2150, %v2406
        %2408 = vmatprep.mubr.f32.mxu0 %v1126
        %2409 = vmatmul.mubr.f32.gmra.mxu0 %v1125
        %v2410 = vpop.f32.mrf.mxu0
        %v2411 = vadd.f32 %v2154, %v2410
        %v2412 = vpop.f32.mrf.mxu0
        %v2413 = vadd.f32 %v2156, %v2412
        %2414 = vmatprep.mubr.f32.mxu0 %v1130
        %2415 = vmatmul.mubr.f32.gmra.mxu0 %v1129
        %v2416 = vpop.f32.mrf.mxu0
        %v2417 = vadd.f32 %v2160, %v2416
        %v2418 = vpop.f32.mrf.mxu0
        %v2419 = vadd.f32 %v2162, %v2418
        %2420 = vmatprep.mubr.f32.mxu0 %v1134
        %2421 = vmatmul.mubr.f32.gmra.mxu0 %v1133
        %v2422 = vpop.f32.mrf.mxu0
        %v2423 = vadd.f32 %v2166, %v2422
        %v2424 = vpop.f32.mrf.mxu0
        %v2425 = vadd.f32 %v2168, %v2424
        %2426 = vmatprep.mubr.f32.mxu0 %v1138
        %2427 = vmatmul.mubr.f32.gmra.mxu0 %v1137
        %v2428 = vpop.f32.mrf.mxu0
        %v2429 = vadd.f32 %v2172, %v2428
        %v2430 = vpop.f32.mrf.mxu0
        %v2431 = vadd.f32 %v2174, %v2430
        %2432 = vmatprep.mubr.f32.mxu0 %v1142
        %2433 = vmatmul.mubr.f32.gmra.mxu0 %v1141
        %v2434 = vpop.f32.mrf.mxu0
        %v2435 = vadd.f32 %v2178, %v2434
        %v2436 = vpop.f32.mrf.mxu0
        %v2437 = vadd.f32 %v2180, %v2436
        %2438 = vmatprep.mubr.f32.mxu0 %v1146
        %2439 = vmatmul.mubr.f32.gmra.mxu0 %v1145
        %v2440 = vpop.f32.mrf.mxu0
        %v2441 = vadd.f32 %v2184, %v2440
        %v2442 = vpop.f32.mrf.mxu0
        %v2443 = vadd.f32 %v2186, %v2442
        %2444 = vmatprep.mubr.f32.mxu0 %v1150
        %2445 = vmatmul.mubr.f32.gmra.mxu0 %v1149
        %v2446 = vpop.f32.mrf.mxu0
        %v2447 = vadd.f32 %v2190, %v2446
        %v2448 = vpop.f32.mrf.mxu0
        %v2449 = vadd.f32 %v2192, %v2448
        %2450 = vmatprep.mubr.f32.mxu0 %v1154
        %2451 = vmatmul.mubr.f32.gmra.mxu0 %v1153
        %v2452 = vpop.f32.mrf.mxu0
        %v2453 = vadd.f32 %v2196, %v2452
        %v2454 = vpop.f32.mrf.mxu0
        %v2455 = vadd.f32 %v2198, %v2454
        %2456 = vmatprep.mubr.f32.mxu0 %v1158
        %2457 = vmatmul.mubr.f32.gmra.mxu0 %v1157
        %v2458 = vpop.f32.mrf.mxu0
        %v2459 = vadd.f32 %v2202, %v2458
        %v2460 = vpop.f32.mrf.mxu0
        %v2461 = vadd.f32 %v2204, %v2460
        %2462 = vmatprep.mubr.f32.mxu0 %v1162
        %2463 = vmatmul.mubr.f32.gmra.mxu0 %v1161
        %v2464 = vpop.f32.mrf.mxu0
        %v2465 = vadd.f32 %v2208, %v2464
        %v2466 = vpop.f32.mrf.mxu0
        %v2467 = vadd.f32 %v2210, %v2466
        %2468 = vdwg.mxu0
        %v2469 = vmax.f32 %v1765, 0.0
        %v2470 = vmax.f32 %v1767, 0.0
        %v2471 = vmax.f32 %v2279, 0.0
        %v2472 = vmax.f32 %v2281, 0.0
        %v2473 = vmax.f32 %v1771, 0.0
        %v2474 = vmax.f32 %v1773, 0.0
        %v2475 = vmax.f32 %v2285, 0.0
        %v2476 = vmax.f32 %v2287, 0.0
        %v2477 = vmax.f32 %v1777, 0.0
        %v2478 = vmax.f32 %v1779, 0.0
        %v2479 = vmax.f32 %v2291, 0.0
        %v2480 = vmax.f32 %v2293, 0.0
        %v2481 = vmax.f32 %v1783, 0.0
        %v2482 = vmax.f32 %v1785, 0.0
        %v2483 = vmax.f32 %v2297, 0.0
        %v2484 = vmax.f32 %v2299, 0.0
        %v2485 = vmax.f32 %v1789, 0.0
        %v2486 = vmax.f32 %v1791, 0.0
        %v2487 = vmax.f32 %v2303, 0.0
        %v2488 = vmax.f32 %v2305, 0.0
        %v2489 = vmax.f32 %v1795, 0.0
        %v2490 = vmax.f32 %v1797, 0.0
        %v2491 = vmax.f32 %v2309, 0.0
        %v2492 = vmax.f32 %v2311, 0.0
        %v2493 = vmax.f32 %v1801, 0.0
        %v2494 = vmax.f32 %v1803, 0.0
        %v2495 = vmax.f32 %v2315, 0.0
        %v2496 = vmax.f32 %v2317, 0.0
        %v2497 = vmax.f32 %v1807, 0.0
        %v2498 = vmax.f32 %v1809, 0.0
        %v2499 = vmax.f32 %v2321, 0.0
        %v2500 = vmax.f32 %v2323, 0.0
        %v2501 = vmax.f32 %v1813, 0.0
        %v2502 = vmax.f32 %v1815, 0.0
        %v2503 = vmax.f32 %v2327, 0.0
        %v2504 = vmax.f32 %v2329, 0.0
        %v2505 = vmax.f32 %v1819, 0.0
        %v2506 = vmax.f32 %v1821, 0.0
        %v2507 = vmax.f32 %v2333, 0.0
        %v2508 = vmax.f32 %v2335, 0.0
        %v2509 = vmax.f32 %v1825, 0.0
        %v2510 = vmax.f32 %v1827, 0.0
        %v2511 = vmax.f32 %v2339, 0.0
        %v2512 = vmax.f32 %v2341, 0.0
        %v2513 = vmax.f32 %v1831, 0.0
        %v2514 = vmax.f32 %v1833, 0.0
        %v2515 = vmax.f32 %v2345, 0.0
        %v2516 = vmax.f32 %v2347, 0.0
        %v2517 = vmax.f32 %v1837, 0.0
        %v2518 = vmax.f32 %v1839, 0.0
        %v2519 = vmax.f32 %v2351, 0.0
        %v2520 = vmax.f32 %v2353, 0.0
        %v2521 = vmax.f32 %v1843, 0.0
        %v2522 = vmax.f32 %v1845, 0.0
        %v2523 = vmax.f32 %v2357, 0.0
        %v2524 = vmax.f32 %v2359, 0.0
        %v2525 = vmax.f32 %v1849, 0.0
        %v2526 = vmax.f32 %v1851, 0.0
        %v2527 = vmax.f32 %v2363, 0.0
        %v2528 = vmax.f32 %v2365, 0.0
        %v2529 = vmax.f32 %v1855, 0.0
        %v2530 = vmax.f32 %v1857, 0.0
        %v2531 = vmax.f32 %v2369, 0.0
        %v2532 = vmax.f32 %v2371, 0.0
        %v2533 = vmax.f32 %v1861, 0.0
        %v2534 = vmax.f32 %v1863, 0.0
        %v2535 = vmax.f32 %v2375, 0.0
        %v2536 = vmax.f32 %v2377, 0.0
        %v2537 = vmax.f32 %v1867, 0.0
        %v2538 = vmax.f32 %v1869, 0.0
        %v2539 = vmax.f32 %v2381, 0.0
        %v2540 = vmax.f32 %v2383, 0.0
        %v2541 = vmax.f32 %v1873, 0.0
        %v2542 = vmax.f32 %v1875, 0.0
        %v2543 = vmax.f32 %v2387, 0.0
        %v2544 = vmax.f32 %v2389, 0.0
        %v2545 = vmax.f32 %v1879, 0.0
        %v2546 = vmax.f32 %v1881, 0.0
        %v2547 = vmax.f32 %v2393, 0.0
        %v2548 = vmax.f32 %v2395, 0.0
        %v2549 = vmax.f32 %v1885, 0.0
        %v2550 = vmax.f32 %v1887, 0.0
        %v2551 = vmax.f32 %v2399, 0.0
        %v2552 = vmax.f32 %v2401, 0.0
        %v2553 = vmax.f32 %v1891, 0.0
        %v2554 = vmax.f32 %v1893, 0.0
        %v2555 = vmax.f32 %v2405, 0.0
        %v2556 = vmax.f32 %v2407, 0.0
        %v2557 = vmax.f32 %v1897, 0.0
        %v2558 = vmax.f32 %v1899, 0.0
        %v2559 = vmax.f32 %v2411, 0.0
        %v2560 = vmax.f32 %v2413, 0.0
        %v2561 = vmax.f32 %v1903, 0.0
        %v2562 = vmax.f32 %v1905, 0.0
        %v2563 = vmax.f32 %v2417, 0.0
        %v2564 = vmax.f32 %v2419, 0.0
        %v2565 = vmax.f32 %v1909, 0.0
        %v2566 = vmax.f32 %v1911, 0.0
        %v2567 = vmax.f32 %v2423, 0.0
        %v2568 = vmax.f32 %v2425, 0.0
        %v2569 = vmax.f32 %v1915, 0.0
        %v2570 = vmax.f32 %v1917, 0.0
        %v2571 = vmax.f32 %v2429, 0.0
        %v2572 = vmax.f32 %v2431, 0.0
        %v2573 = vmax.f32 %v1921, 0.0
        %v2574 = vmax.f32 %v1923, 0.0
        %v2575 = vmax.f32 %v2435, 0.0
        %v2576 = vmax.f32 %v2437, 0.0
        %v2577 = vmax.f32 %v1927, 0.0
        %v2578 = vmax.f32 %v1929, 0.0
        %v2579 = vmax.f32 %v2441, 0.0
        %v2580 = vmax.f32 %v2443, 0.0
        %v2581 = vmax.f32 %v1933, 0.0
        %v2582 = vmax.f32 %v1935, 0.0
        %v2583 = vmax.f32 %v2447, 0.0
        %v2584 = vmax.f32 %v2449, 0.0
        %v2585 = vmax.f32 %v1939, 0.0
        %v2586 = vmax.f32 %v1941, 0.0
        %v2587 = vmax.f32 %v2453, 0.0
        %v2588 = vmax.f32 %v2455, 0.0
        %v2589 = vmax.f32 %v1945, 0.0
        %v2590 = vmax.f32 %v1947, 0.0
        %v2591 = vmax.f32 %v2459, 0.0
        %v2592 = vmax.f32 %v2461, 0.0
        %v2593 = vmax.f32 %v1951, 0.0
        %v2594 = vmax.f32 %v1953, 0.0
        %v2595 = vmax.f32 %v2465, 0.0
        %v2596 = vmax.f32 %v2467, 0.0
        %v2597 = vld [vmem:[#allocation4] sm:$0xff]
        %v2598 = vld [vmem:[#allocation4 + $0x8] sm:$0xff]
        %v2599 = vld [vmem:[#allocation4 + $0x10] sm:$0xff]
        %v2600 = vld [vmem:[#allocation4 + $0x18] sm:$0xff]
        %v2601 = vld [vmem:[#allocation4 + $0x20] sm:$0xff]
        %v2602 = vld [vmem:[#allocation4 + $0x28] sm:$0xff]
        %v2603 = vld [vmem:[#allocation4 + $0x30] sm:$0xff]
        %v2604 = vld [vmem:[#allocation4 + $0x38] sm:$0xff]
        %v2605 = vld [vmem:[#allocation4 + $0x40] sm:$0xff]
        %v2606 = vld [vmem:[#allocation4 + $0x48] sm:$0xff]
        %v2607 = vld [vmem:[#allocation4 + $0x50] sm:$0xff]
        %v2608 = vld [vmem:[#allocation4 + $0x58] sm:$0xff]
        %v2609 = vld [vmem:[#allocation4 + $0x60] sm:$0xff]
        %v2610 = vld [vmem:[#allocation4 + $0x68] sm:$0xff]
        %v2611 = vld [vmem:[#allocation4 + $0x70] sm:$0xff]
        %v2612 = vld [vmem:[#allocation4 + $0x78] sm:$0xff]
        %v2613 = vld [vmem:[#allocation4 + $0x80] sm:$0xff]
        %v2614 = vld [vmem:[#allocation4 + $0x88] sm:$0xff]
        %v2615 = vld [vmem:[#allocation4 + $0x90] sm:$0xff]
        %v2616 = vld [vmem:[#allocation4 + $0x98] sm:$0xff]
        %v2617 = vld [vmem:[#allocation4 + $0xa0] sm:$0xff]
        %v2618 = vld [vmem:[#allocation4 + $0xa8] sm:$0xff]
        %v2619 = vld [vmem:[#allocation4 + $0xb0] sm:$0xff]
        %v2620 = vld [vmem:[#allocation4 + $0xb8] sm:$0xff]
        %v2621 = vld [vmem:[#allocation4 + $0xc0] sm:$0xff]
        %v2622 = vld [vmem:[#allocation4 + $0xc8] sm:$0xff]
        %v2623 = vld [vmem:[#allocation4 + $0xd0] sm:$0xff]
        %v2624 = vld [vmem:[#allocation4 + $0xd8] sm:$0xff]
        %v2625 = vld [vmem:[#allocation4 + $0xe0] sm:$0xff]
        %v2626 = vld [vmem:[#allocation4 + $0xe8] sm:$0xff]
        %v2627 = vld [vmem:[#allocation4 + $0xf0] sm:$0xff]
        %v2628 = vld [vmem:[#allocation4 + $0xf8] sm:$0xff]
        %v2629 = vld [vmem:[#allocation4 + $0x100] sm:$0xff]
        %v2630 = vld [vmem:[#allocation4 + $0x108] sm:$0xff]
        %v2631 = vld [vmem:[#allocation4 + $0x110] sm:$0xff]
        %v2632 = vld [vmem:[#allocation4 + $0x118] sm:$0xff]
        %v2633 = vld [vmem:[#allocation4 + $0x120] sm:$0xff]
        %v2634 = vld [vmem:[#allocation4 + $0x128] sm:$0xff]
        %v2635 = vld [vmem:[#allocation4 + $0x130] sm:$0xff]
        %v2636 = vld [vmem:[#allocation4 + $0x138] sm:$0xff]
        %v2637 = vld [vmem:[#allocation4 + $0x140] sm:$0xff]
        %v2638 = vld [vmem:[#allocation4 + $0x148] sm:$0xff]
        %v2639 = vld [vmem:[#allocation4 + $0x150] sm:$0xff]
        %v2640 = vld [vmem:[#allocation4 + $0x158] sm:$0xff]
        %v2641 = vld [vmem:[#allocation4 + $0x160] sm:$0xff]
        %v2642 = vld [vmem:[#allocation4 + $0x168] sm:$0xff]
        %v2643 = vld [vmem:[#allocation4 + $0x170] sm:$0xff]
        %v2644 = vld [vmem:[#allocation4 + $0x178] sm:$0xff]
        %v2645 = vld [vmem:[#allocation4 + $0x180] sm:$0xff]
        %v2646 = vld [vmem:[#allocation4 + $0x188] sm:$0xff]
        %v2647 = vld [vmem:[#allocation4 + $0x190] sm:$0xff]
        %v2648 = vld [vmem:[#allocation4 + $0x198] sm:$0xff]
        %v2649 = vld [vmem:[#allocation4 + $0x1a0] sm:$0xff]
        %v2650 = vld [vmem:[#allocation4 + $0x1a8] sm:$0xff]
        %v2651 = vld [vmem:[#allocation4 + $0x1b0] sm:$0xff]
        %v2652 = vld [vmem:[#allocation4 + $0x1b8] sm:$0xff]
        %v2653 = vld [vmem:[#allocation4 + $0x1c0] sm:$0xff]
        %v2654 = vld [vmem:[#allocation4 + $0x1c8] sm:$0xff]
        %v2655 = vld [vmem:[#allocation4 + $0x1d0] sm:$0xff]
        %v2656 = vld [vmem:[#allocation4 + $0x1d8] sm:$0xff]
        %v2657 = vld [vmem:[#allocation4 + $0x1e0] sm:$0xff]
        %v2658 = vld [vmem:[#allocation4 + $0x1e8] sm:$0xff]
        %v2659 = vld [vmem:[#allocation4 + $0x1f0] sm:$0xff]
        %v2660 = vld [vmem:[#allocation4 + $0x1f8] sm:$0xff]
        %v2661 = vld [vmem:[#allocation4 + $0x200] sm:$0xff]
        %v2662 = vld [vmem:[#allocation4 + $0x208] sm:$0xff]
        %v2663 = vld [vmem:[#allocation4 + $0x210] sm:$0xff]
        %v2664 = vld [vmem:[#allocation4 + $0x218] sm:$0xff]
        %v2665 = vld [vmem:[#allocation4 + $0x220] sm:$0xff]
        %v2666 = vld [vmem:[#allocation4 + $0x228] sm:$0xff]
        %v2667 = vld [vmem:[#allocation4 + $0x230] sm:$0xff]
        %v2668 = vld [vmem:[#allocation4 + $0x238] sm:$0xff]
        %v2669 = vld [vmem:[#allocation4 + $0x240] sm:$0xff]
        %v2670 = vld [vmem:[#allocation4 + $0x248] sm:$0xff]
        %v2671 = vld [vmem:[#allocation4 + $0x250] sm:$0xff]
        %v2672 = vld [vmem:[#allocation4 + $0x258] sm:$0xff]
        %v2673 = vld [vmem:[#allocation4 + $0x260] sm:$0xff]
        %v2674 = vld [vmem:[#allocation4 + $0x268] sm:$0xff]
        %v2675 = vld [vmem:[#allocation4 + $0x270] sm:$0xff]
        %v2676 = vld [vmem:[#allocation4 + $0x278] sm:$0xff]
        %v2677 = vld [vmem:[#allocation4 + $0x280] sm:$0xff]
        %v2678 = vld [vmem:[#allocation4 + $0x288] sm:$0xff]
        %v2679 = vld [vmem:[#allocation4 + $0x290] sm:$0xff]
        %v2680 = vld [vmem:[#allocation4 + $0x298] sm:$0xff]
        %v2681 = vld [vmem:[#allocation4 + $0x2a0] sm:$0xff]
        %v2682 = vld [vmem:[#allocation4 + $0x2a8] sm:$0xff]
        %v2683 = vld [vmem:[#allocation4 + $0x2b0] sm:$0xff]
        %v2684 = vld [vmem:[#allocation4 + $0x2b8] sm:$0xff]
        %v2685 = vld [vmem:[#allocation4 + $0x2c0] sm:$0xff]
        %v2686 = vld [vmem:[#allocation4 + $0x2c8] sm:$0xff]
        %v2687 = vld [vmem:[#allocation4 + $0x2d0] sm:$0xff]
        %v2688 = vld [vmem:[#allocation4 + $0x2d8] sm:$0xff]
        %v2689 = vld [vmem:[#allocation4 + $0x2e0] sm:$0xff]
        %v2690 = vld [vmem:[#allocation4 + $0x2e8] sm:$0xff]
        %v2691 = vld [vmem:[#allocation4 + $0x2f0] sm:$0xff]
        %v2692 = vld [vmem:[#allocation4 + $0x2f8] sm:$0xff]
        %v2693 = vld [vmem:[#allocation4 + $0x300] sm:$0xff]
        %v2694 = vld [vmem:[#allocation4 + $0x308] sm:$0xff]
        %v2695 = vld [vmem:[#allocation4 + $0x310] sm:$0xff]
        %v2696 = vld [vmem:[#allocation4 + $0x318] sm:$0xff]
        %v2697 = vld [vmem:[#allocation4 + $0x320] sm:$0xff]
        %v2698 = vld [vmem:[#allocation4 + $0x328] sm:$0xff]
        %v2699 = vld [vmem:[#allocation4 + $0x330] sm:$0xff]
        %v2700 = vld [vmem:[#allocation4 + $0x338] sm:$0xff]
        %v2701 = vld [vmem:[#allocation4 + $0x340] sm:$0xff]
        %v2702 = vld [vmem:[#allocation4 + $0x348] sm:$0xff]
        %v2703 = vld [vmem:[#allocation4 + $0x350] sm:$0xff]
        %v2704 = vld [vmem:[#allocation4 + $0x358] sm:$0xff]
        %v2705 = vld [vmem:[#allocation4 + $0x360] sm:$0xff]
        %v2706 = vld [vmem:[#allocation4 + $0x368] sm:$0xff]
        %v2707 = vld [vmem:[#allocation4 + $0x370] sm:$0xff]
        %v2708 = vld [vmem:[#allocation4 + $0x378] sm:$0xff]
        %v2709 = vld [vmem:[#allocation4 + $0x380] sm:$0xff]
        %v2710 = vld [vmem:[#allocation4 + $0x388] sm:$0xff]
        %v2711 = vld [vmem:[#allocation4 + $0x390] sm:$0xff]
        %v2712 = vld [vmem:[#allocation4 + $0x398] sm:$0xff]
        %v2713 = vld [vmem:[#allocation4 + $0x3a0] sm:$0xff]
        %v2714 = vld [vmem:[#allocation4 + $0x3a8] sm:$0xff]
        %v2715 = vld [vmem:[#allocation4 + $0x3b0] sm:$0xff]
        %v2716 = vld [vmem:[#allocation4 + $0x3b8] sm:$0xff]
        %v2717 = vld [vmem:[#allocation4 + $0x3c0] sm:$0xff]
        %v2718 = vld [vmem:[#allocation4 + $0x3c8] sm:$0xff]
        %v2719 = vld [vmem:[#allocation4 + $0x3d0] sm:$0xff]
        %v2720 = vld [vmem:[#allocation4 + $0x3d8] sm:$0xff]
        %v2721 = vld [vmem:[#allocation4 + $0x3e0] sm:$0xff]
        %v2722 = vld [vmem:[#allocation4 + $0x3e8] sm:$0xff]
        %v2723 = vld [vmem:[#allocation4 + $0x3f0] sm:$0xff]
        %v2724 = vld [vmem:[#allocation4 + $0x3f8] sm:$0xff]
        %v2725 = vld [vmem:[#allocation4 + $0x400] sm:$0xff]
        %v2726 = vld [vmem:[#allocation4 + $0x408] sm:$0xff]
        %v2727 = vld [vmem:[#allocation4 + $0x410] sm:$0xff]
        %v2728 = vld [vmem:[#allocation4 + $0x418] sm:$0xff]
        %v2729 = vld [vmem:[#allocation4 + $0x420] sm:$0xff]
        %v2730 = vld [vmem:[#allocation4 + $0x428] sm:$0xff]
        %v2731 = vld [vmem:[#allocation4 + $0x430] sm:$0xff]
        %v2732 = vld [vmem:[#allocation4 + $0x438] sm:$0xff]
        %v2733 = vld [vmem:[#allocation4 + $0x440] sm:$0xff]
        %v2734 = vld [vmem:[#allocation4 + $0x448] sm:$0xff]
        %v2735 = vld [vmem:[#allocation4 + $0x450] sm:$0xff]
        %v2736 = vld [vmem:[#allocation4 + $0x458] sm:$0xff]
        %v2737 = vld [vmem:[#allocation4 + $0x460] sm:$0xff]
        %v2738 = vld [vmem:[#allocation4 + $0x468] sm:$0xff]
        %v2739 = vld [vmem:[#allocation4 + $0x470] sm:$0xff]
        %v2740 = vld [vmem:[#allocation4 + $0x478] sm:$0xff]
        %v2741 = vld [vmem:[#allocation4 + $0x480] sm:$0xff]
        %v2742 = vld [vmem:[#allocation4 + $0x488] sm:$0xff]
        %v2743 = vld [vmem:[#allocation4 + $0x490] sm:$0xff]
        %v2744 = vld [vmem:[#allocation4 + $0x498] sm:$0xff]
        %v2745 = vld [vmem:[#allocation4 + $0x4a0] sm:$0xff]
        %v2746 = vld [vmem:[#allocation4 + $0x4a8] sm:$0xff]
        %v2747 = vld [vmem:[#allocation4 + $0x4b0] sm:$0xff]
        %v2748 = vld [vmem:[#allocation4 + $0x4b8] sm:$0xff]
        %v2749 = vld [vmem:[#allocation4 + $0x4c0] sm:$0xff]
        %v2750 = vld [vmem:[#allocation4 + $0x4c8] sm:$0xff]
        %v2751 = vld [vmem:[#allocation4 + $0x4d0] sm:$0xff]
        %v2752 = vld [vmem:[#allocation4 + $0x4d8] sm:$0xff]
        %v2753 = vld [vmem:[#allocation4 + $0x4e0] sm:$0xff]
        %v2754 = vld [vmem:[#allocation4 + $0x4e8] sm:$0xff]
        %v2755 = vld [vmem:[#allocation4 + $0x4f0] sm:$0xff]
        %v2756 = vld [vmem:[#allocation4 + $0x4f8] sm:$0xff]
        %v2757 = vld [vmem:[#allocation4 + $0x500] sm:$0xff]
        %v2758 = vld [vmem:[#allocation4 + $0x508] sm:$0xff]
        %v2759 = vld [vmem:[#allocation4 + $0x510] sm:$0xff]
        %v2760 = vld [vmem:[#allocation4 + $0x518] sm:$0xff]
        %v2761 = vld [vmem:[#allocation4 + $0x520] sm:$0xff]
        %v2762 = vld [vmem:[#allocation4 + $0x528] sm:$0xff]
        %v2763 = vld [vmem:[#allocation4 + $0x530] sm:$0xff]
        %v2764 = vld [vmem:[#allocation4 + $0x538] sm:$0xff]
        %v2765 = vld [vmem:[#allocation4 + $0x540] sm:$0xff]
        %v2766 = vld [vmem:[#allocation4 + $0x548] sm:$0xff]
        %v2767 = vld [vmem:[#allocation4 + $0x550] sm:$0xff]
        %v2768 = vld [vmem:[#allocation4 + $0x558] sm:$0xff]
        %v2769 = vld [vmem:[#allocation4 + $0x560] sm:$0xff]
        %v2770 = vld [vmem:[#allocation4 + $0x568] sm:$0xff]
        %v2771 = vld [vmem:[#allocation4 + $0x570] sm:$0xff]
        %v2772 = vld [vmem:[#allocation4 + $0x578] sm:$0xff]
        %v2773 = vld [vmem:[#allocation4 + $0x580] sm:$0xff]
        %v2774 = vld [vmem:[#allocation4 + $0x588] sm:$0xff]
        %v2775 = vld [vmem:[#allocation4 + $0x590] sm:$0xff]
        %v2776 = vld [vmem:[#allocation4 + $0x598] sm:$0xff]
        %v2777 = vld [vmem:[#allocation4 + $0x5a0] sm:$0xff]
        %v2778 = vld [vmem:[#allocation4 + $0x5a8] sm:$0xff]
        %v2779 = vld [vmem:[#allocation4 + $0x5b0] sm:$0xff]
        %v2780 = vld [vmem:[#allocation4 + $0x5b8] sm:$0xff]
        %v2781 = vld [vmem:[#allocation4 + $0x5c0] sm:$0xff]
        %v2782 = vld [vmem:[#allocation4 + $0x5c8] sm:$0xff]
        %v2783 = vld [vmem:[#allocation4 + $0x5d0] sm:$0xff]
        %v2784 = vld [vmem:[#allocation4 + $0x5d8] sm:$0xff]
        %v2785 = vld [vmem:[#allocation4 + $0x5e0] sm:$0xff]
        %v2786 = vld [vmem:[#allocation4 + $0x5e8] sm:$0xff]
        %v2787 = vld [vmem:[#allocation4 + $0x5f0] sm:$0xff]
        %v2788 = vld [vmem:[#allocation4 + $0x5f8] sm:$0xff]
        %v2789 = vld [vmem:[#allocation4 + $0x600] sm:$0xff]
        %v2790 = vld [vmem:[#allocation4 + $0x608] sm:$0xff]
        %v2791 = vld [vmem:[#allocation4 + $0x610] sm:$0xff]
        %v2792 = vld [vmem:[#allocation4 + $0x618] sm:$0xff]
        %v2793 = vld [vmem:[#allocation4 + $0x620] sm:$0xff]
        %v2794 = vld [vmem:[#allocation4 + $0x628] sm:$0xff]
        %v2795 = vld [vmem:[#allocation4 + $0x630] sm:$0xff]
        %v2796 = vld [vmem:[#allocation4 + $0x638] sm:$0xff]
        %v2797 = vld [vmem:[#allocation4 + $0x640] sm:$0xff]
        %v2798 = vld [vmem:[#allocation4 + $0x648] sm:$0xff]
        %v2799 = vld [vmem:[#allocation4 + $0x650] sm:$0xff]
        %v2800 = vld [vmem:[#allocation4 + $0x658] sm:$0xff]
        %v2801 = vld [vmem:[#allocation4 + $0x660] sm:$0xff]
        %v2802 = vld [vmem:[#allocation4 + $0x668] sm:$0xff]
        %v2803 = vld [vmem:[#allocation4 + $0x670] sm:$0xff]
        %v2804 = vld [vmem:[#allocation4 + $0x678] sm:$0xff]
        %v2805 = vld [vmem:[#allocation4 + $0x680] sm:$0xff]
        %v2806 = vld [vmem:[#allocation4 + $0x688] sm:$0xff]
        %v2807 = vld [vmem:[#allocation4 + $0x690] sm:$0xff]
        %v2808 = vld [vmem:[#allocation4 + $0x698] sm:$0xff]
        %v2809 = vld [vmem:[#allocation4 + $0x6a0] sm:$0xff]
        %v2810 = vld [vmem:[#allocation4 + $0x6a8] sm:$0xff]
        %v2811 = vld [vmem:[#allocation4 + $0x6b0] sm:$0xff]
        %v2812 = vld [vmem:[#allocation4 + $0x6b8] sm:$0xff]
        %v2813 = vld [vmem:[#allocation4 + $0x6c0] sm:$0xff]
        %v2814 = vld [vmem:[#allocation4 + $0x6c8] sm:$0xff]
        %v2815 = vld [vmem:[#allocation4 + $0x6d0] sm:$0xff]
        %v2816 = vld [vmem:[#allocation4 + $0x6d8] sm:$0xff]
        %v2817 = vld [vmem:[#allocation4 + $0x6e0] sm:$0xff]
        %v2818 = vld [vmem:[#allocation4 + $0x6e8] sm:$0xff]
        %v2819 = vld [vmem:[#allocation4 + $0x6f0] sm:$0xff]
        %v2820 = vld [vmem:[#allocation4 + $0x6f8] sm:$0xff]
        %v2821 = vld [vmem:[#allocation4 + $0x700] sm:$0xff]
        %v2822 = vld [vmem:[#allocation4 + $0x708] sm:$0xff]
        %v2823 = vld [vmem:[#allocation4 + $0x710] sm:$0xff]
        %v2824 = vld [vmem:[#allocation4 + $0x718] sm:$0xff]
        %v2825 = vld [vmem:[#allocation4 + $0x720] sm:$0xff]
        %v2826 = vld [vmem:[#allocation4 + $0x728] sm:$0xff]
        %v2827 = vld [vmem:[#allocation4 + $0x730] sm:$0xff]
        %v2828 = vld [vmem:[#allocation4 + $0x738] sm:$0xff]
        %v2829 = vld [vmem:[#allocation4 + $0x740] sm:$0xff]
        %v2830 = vld [vmem:[#allocation4 + $0x748] sm:$0xff]
        %v2831 = vld [vmem:[#allocation4 + $0x750] sm:$0xff]
        %v2832 = vld [vmem:[#allocation4 + $0x758] sm:$0xff]
        %v2833 = vld [vmem:[#allocation4 + $0x760] sm:$0xff]
        %v2834 = vld [vmem:[#allocation4 + $0x768] sm:$0xff]
        %v2835 = vld [vmem:[#allocation4 + $0x770] sm:$0xff]
        %v2836 = vld [vmem:[#allocation4 + $0x778] sm:$0xff]
        %v2837 = vld [vmem:[#allocation4 + $0x780] sm:$0xff]
        %v2838 = vld [vmem:[#allocation4 + $0x788] sm:$0xff]
        %v2839 = vld [vmem:[#allocation4 + $0x790] sm:$0xff]
        %v2840 = vld [vmem:[#allocation4 + $0x798] sm:$0xff]
        %v2841 = vld [vmem:[#allocation4 + $0x7a0] sm:$0xff]
        %v2842 = vld [vmem:[#allocation4 + $0x7a8] sm:$0xff]
        %v2843 = vld [vmem:[#allocation4 + $0x7b0] sm:$0xff]
        %v2844 = vld [vmem:[#allocation4 + $0x7b8] sm:$0xff]
        %v2845 = vld [vmem:[#allocation4 + $0x7c0] sm:$0xff]
        %v2846 = vld [vmem:[#allocation4 + $0x7c8] sm:$0xff]
        %v2847 = vld [vmem:[#allocation4 + $0x7d0] sm:$0xff]
        %v2848 = vld [vmem:[#allocation4 + $0x7d8] sm:$0xff]
        %v2849 = vld [vmem:[#allocation4 + $0x7e0] sm:$0xff]
        %v2850 = vld [vmem:[#allocation4 + $0x7e8] sm:$0xff]
        %v2851 = vld [vmem:[#allocation4 + $0x7f0] sm:$0xff]
        %v2852 = vld [vmem:[#allocation4 + $0x7f8] sm:$0xff]
        %v2853 = vld [vmem:[%s6] sm:$0xf]
        %v2855 = vlaneseq
        %v2856 = vshrl.u32 %v2855, 7
        %v2857 = vsub.s32 0, %v2856
        %v2858 = vrot.slane %v2853, %v2857
        %v2859 = vlaneseq
        %v2860 = vshrl.u32 %v2859, 7
        %v2861 = vsub.s32 1, %v2860
        %v2862 = vrot.slane %v2853, %v2861
        %v2863 = vlaneseq
        %v2864 = vshrl.u32 %v2863, 7
        %v2865 = vsub.s32 2, %v2864
        %v2866 = vrot.slane %v2853, %v2865
        %v2867 = vlaneseq
        %v2868 = vshrl.u32 %v2867, 7
        %v2869 = vsub.s32 3, %v2868
        %v2870 = vrot.slane %v2853, %v2869
        %2875 = vmatprep.subr.mxu0 %v2658
        %2876 = vmatpush1.msra.mxu0 %v2657
        %2877 = vmatprep.subr.mxu0 %v2654
        %2878 = vmatpush1.msra.mxu0 %v2653
        %2879 = vmatprep.subr.mxu0 %v2650
        %2880 = vmatpush1.msra.mxu0 %v2649
        %2881 = vmatprep.subr.mxu0 %v2646
        %2882 = vmatpush1.msra.mxu0 %v2645
        %2883 = vmatprep.subr.mxu0 %v2642
        %2884 = vmatpush1.msra.mxu0 %v2641
        %2885 = vmatprep.subr.mxu0 %v2638
        %2886 = vmatpush1.msra.mxu0 %v2637
        %2887 = vmatprep.subr.mxu0 %v2634
        %2888 = vmatpush1.msra.mxu0 %v2633
        %2889 = vmatprep.subr.mxu0 %v2630
        %2890 = vmatpush1.msra.mxu0 %v2629
        %2891 = vmatprep.subr.mxu0 %v2626
        %2892 = vmatpush1.msra.mxu0 %v2625
        %2893 = vmatprep.subr.mxu0 %v2622
        %2894 = vmatpush1.msra.mxu0 %v2621
        %2895 = vmatprep.subr.mxu0 %v2618
        %2896 = vmatpush1.msra.mxu0 %v2617
        %2897 = vmatprep.subr.mxu0 %v2614
        %2898 = vmatpush1.msra.mxu0 %v2613
        %2899 = vmatprep.subr.mxu0 %v2610
        %2900 = vmatpush1.msra.mxu0 %v2609
        %2901 = vmatprep.subr.mxu0 %v2606
        %2902 = vmatpush1.msra.mxu0 %v2605
        %2903 = vmatprep.subr.mxu0 %v2602
        %2904 = vmatpush1.msra.mxu0 %v2601
        %2905 = vmatprep.subr.mxu0 %v2598
        %2906 = vmatpush1.msra.mxu0 %v2597
        %2907 = vmatprep.subr.mxu0 %v2722
        %2908 = vmatpush2.msra.mxu0 %v2721
        %2909 = vmatprep.subr.mxu0 %v2718
        %2910 = vmatpush2.msra.mxu0 %v2717
        %2911 = vmatprep.subr.mxu0 %v2714
        %2912 = vmatpush2.msra.mxu0 %v2713
        %2913 = vmatprep.subr.mxu0 %v2710
        %2914 = vmatpush2.msra.mxu0 %v2709
        %2915 = vmatprep.subr.mxu0 %v2706
        %2916 = vmatpush2.msra.mxu0 %v2705
        %2917 = vmatprep.subr.mxu0 %v2702
        %2918 = vmatpush2.msra.mxu0 %v2701
        %2919 = vmatprep.subr.mxu0 %v2698
        %2920 = vmatpush2.msra.mxu0 %v2697
        %2921 = vmatprep.subr.mxu0 %v2694
        %2922 = vmatpush2.msra.mxu0 %v2693
        %2923 = vmatprep.subr.mxu0 %v2690
        %2924 = vmatpush2.msra.mxu0 %v2689
        %2925 = vmatprep.subr.mxu0 %v2686
        %2926 = vmatpush2.msra.mxu0 %v2685
        %2927 = vmatprep.subr.mxu0 %v2682
        %2928 = vmatpush2.msra.mxu0 %v2681
        %2929 = vmatprep.subr.mxu0 %v2678
        %2930 = vmatpush2.msra.mxu0 %v2677
        %2931 = vmatprep.subr.mxu0 %v2674
        %2932 = vmatpush2.msra.mxu0 %v2673
        %2933 = vmatprep.subr.mxu0 %v2670
        %2934 = vmatpush2.msra.mxu0 %v2669
        %2935 = vmatprep.subr.mxu0 %v2666
        %2936 = vmatpush2.msra.mxu0 %v2665
        %2937 = vmatprep.subr.mxu0 %v2662
        %2938 = vmatpush2.msra.mxu0 %v2661
        %2939 = vmatprep.mubr.f32.mxu0 %v2470
        %2940 = vmatmul.mubr.f32.gmra.mxu0 %v2469
        %v2941 = vpop.f32.mrf.mxu0
        %v2942 = vadd.f32 %v2858, %v2941
        %v2943 = vpop.f32.mrf.mxu0
        %v2944 = vadd.f32 %v2862, %v2943
        %2945 = vmatprep.mubr.f32.mxu0 %v2474
        %2946 = vmatmul.mubr.f32.gmra.mxu0 %v2473
        %v2947 = vpop.f32.mrf.mxu0
        %v2948 = vadd.f32 %v2858, %v2947
        %v2949 = vpop.f32.mrf.mxu0
        %v2950 = vadd.f32 %v2862, %v2949
        %2951 = vmatprep.mubr.f32.mxu0 %v2478
        %2952 = vmatmul.mubr.f32.gmra.mxu0 %v2477
        %v2953 = vpop.f32.mrf.mxu0
        %v2954 = vadd.f32 %v2858, %v2953
        %v2955 = vpop.f32.mrf.mxu0
        %v2956 = vadd.f32 %v2862, %v2955
        %2957 = vmatprep.mubr.f32.mxu0 %v2482
        %2958 = vmatmul.mubr.f32.gmra.mxu0 %v2481
        %v2959 = vpop.f32.mrf.mxu0
        %v2960 = vadd.f32 %v2858, %v2959
        %v2961 = vpop.f32.mrf.mxu0
        %v2962 = vadd.f32 %v2862, %v2961
        %2963 = vmatprep.mubr.f32.mxu0 %v2486
        %2964 = vmatmul.mubr.f32.gmra.mxu0 %v2485
        %v2965 = vpop.f32.mrf.mxu0
        %v2966 = vadd.f32 %v2858, %v2965
        %v2967 = vpop.f32.mrf.mxu0
        %v2968 = vadd.f32 %v2862, %v2967
        %2969 = vmatprep.mubr.f32.mxu0 %v2490
        %2970 = vmatmul.mubr.f32.gmra.mxu0 %v2489
        %v2971 = vpop.f32.mrf.mxu0
        %v2972 = vadd.f32 %v2858, %v2971
        %v2973 = vpop.f32.mrf.mxu0
        %v2974 = vadd.f32 %v2862, %v2973
        %2975 = vmatprep.mubr.f32.mxu0 %v2494
        %2976 = vmatmul.mubr.f32.gmra.mxu0 %v2493
        %v2977 = vpop.f32.mrf.mxu0
        %v2978 = vadd.f32 %v2858, %v2977
        %v2979 = vpop.f32.mrf.mxu0
        %v2980 = vadd.f32 %v2862, %v2979
        %2981 = vmatprep.mubr.f32.mxu0 %v2498
        %2982 = vmatmul.mubr.f32.gmra.mxu0 %v2497
        %v2983 = vpop.f32.mrf.mxu0
        %v2984 = vadd.f32 %v2858, %v2983
        %v2985 = vpop.f32.mrf.mxu0
        %v2986 = vadd.f32 %v2862, %v2985
        %2987 = vmatprep.mubr.f32.mxu0 %v2502
        %2988 = vmatmul.mubr.f32.gmra.mxu0 %v2501
        %v2989 = vpop.f32.mrf.mxu0
        %v2990 = vadd.f32 %v2858, %v2989
        %v2991 = vpop.f32.mrf.mxu0
        %v2992 = vadd.f32 %v2862, %v2991
        %2993 = vmatprep.mubr.f32.mxu0 %v2506
        %2994 = vmatmul.mubr.f32.gmra.mxu0 %v2505
        %v2995 = vpop.f32.mrf.mxu0
        %v2996 = vadd.f32 %v2858, %v2995
        %v2997 = vpop.f32.mrf.mxu0
        %v2998 = vadd.f32 %v2862, %v2997
        %2999 = vmatprep.mubr.f32.mxu0 %v2510
        %3000 = vmatmul.mubr.f32.gmra.mxu0 %v2509
        %v3001 = vpop.f32.mrf.mxu0
        %v3002 = vadd.f32 %v2858, %v3001
        %v3003 = vpop.f32.mrf.mxu0
        %v3004 = vadd.f32 %v2862, %v3003
        %3005 = vmatprep.mubr.f32.mxu0 %v2514
        %3006 = vmatmul.mubr.f32.gmra.mxu0 %v2513
        %v3007 = vpop.f32.mrf.mxu0
        %v3008 = vadd.f32 %v2858, %v3007
        %v3009 = vpop.f32.mrf.mxu0
        %v3010 = vadd.f32 %v2862, %v3009
        %3011 = vmatprep.mubr.f32.mxu0 %v2518
        %3012 = vmatmul.mubr.f32.gmra.mxu0 %v2517
        %v3013 = vpop.f32.mrf.mxu0
        %v3014 = vadd.f32 %v2858, %v3013
        %v3015 = vpop.f32.mrf.mxu0
        %v3016 = vadd.f32 %v2862, %v3015
        %3017 = vmatprep.mubr.f32.mxu0 %v2522
        %3018 = vmatmul.mubr.f32.gmra.mxu0 %v2521
        %v3019 = vpop.f32.mrf.mxu0
        %v3020 = vadd.f32 %v2858, %v3019
        %v3021 = vpop.f32.mrf.mxu0
        %v3022 = vadd.f32 %v2862, %v3021
        %3023 = vmatprep.mubr.f32.mxu0 %v2526
        %3024 = vmatmul.mubr.f32.gmra.mxu0 %v2525
        %v3025 = vpop.f32.mrf.mxu0
        %v3026 = vadd.f32 %v2858, %v3025
        %v3027 = vpop.f32.mrf.mxu0
        %v3028 = vadd.f32 %v2862, %v3027
        %3029 = vmatprep.mubr.f32.mxu0 %v2530
        %3030 = vmatmul.mubr.f32.gmra.mxu0 %v2529
        %v3031 = vpop.f32.mrf.mxu0
        %v3032 = vadd.f32 %v2858, %v3031
        %v3033 = vpop.f32.mrf.mxu0
        %v3034 = vadd.f32 %v2862, %v3033
        %3035 = vmatprep.mubr.f32.mxu0 %v2534
        %3036 = vmatmul.mubr.f32.gmra.mxu0 %v2533
        %v3037 = vpop.f32.mrf.mxu0
        %v3038 = vadd.f32 %v2858, %v3037
        %v3039 = vpop.f32.mrf.mxu0
        %v3040 = vadd.f32 %v2862, %v3039
        %3041 = vmatprep.mubr.f32.mxu0 %v2538
        %3042 = vmatmul.mubr.f32.gmra.mxu0 %v2537
        %v3043 = vpop.f32.mrf.mxu0
        %v3044 = vadd.f32 %v2858, %v3043
        %v3045 = vpop.f32.mrf.mxu0
        %v3046 = vadd.f32 %v2862, %v3045
        %3047 = vmatprep.mubr.f32.mxu0 %v2542
        %3048 = vmatmul.mubr.f32.gmra.mxu0 %v2541
        %v3049 = vpop.f32.mrf.mxu0
        %v3050 = vadd.f32 %v2858, %v3049
        %v3051 = vpop.f32.mrf.mxu0
        %v3052 = vadd.f32 %v2862, %v3051
        %3053 = vmatprep.mubr.f32.mxu0 %v2546
        %3054 = vmatmul.mubr.f32.gmra.mxu0 %v2545
        %v3055 = vpop.f32.mrf.mxu0
        %v3056 = vadd.f32 %v2858, %v3055
        %v3057 = vpop.f32.mrf.mxu0
        %v3058 = vadd.f32 %v2862, %v3057
        %3059 = vmatprep.mubr.f32.mxu0 %v2550
        %3060 = vmatmul.mubr.f32.gmra.mxu0 %v2549
        %v3061 = vpop.f32.mrf.mxu0
        %v3062 = vadd.f32 %v2858, %v3061
        %v3063 = vpop.f32.mrf.mxu0
        %v3064 = vadd.f32 %v2862, %v3063
        %3065 = vmatprep.mubr.f32.mxu0 %v2554
        %3066 = vmatmul.mubr.f32.gmra.mxu0 %v2553
        %v3067 = vpop.f32.mrf.mxu0
        %v3068 = vadd.f32 %v2858, %v3067
        %v3069 = vpop.f32.mrf.mxu0
        %v3070 = vadd.f32 %v2862, %v3069
        %3071 = vmatprep.mubr.f32.mxu0 %v2558
        %3072 = vmatmul.mubr.f32.gmra.mxu0 %v2557
        %v3073 = vpop.f32.mrf.mxu0
        %v3074 = vadd.f32 %v2858, %v3073
        %v3075 = vpop.f32.mrf.mxu0
        %v3076 = vadd.f32 %v2862, %v3075
        %3077 = vmatprep.mubr.f32.mxu0 %v2562
        %3078 = vmatmul.mubr.f32.gmra.mxu0 %v2561
        %v3079 = vpop.f32.mrf.mxu0
        %v3080 = vadd.f32 %v2858, %v3079
        %v3081 = vpop.f32.mrf.mxu0
        %v3082 = vadd.f32 %v2862, %v3081
        %3083 = vmatprep.mubr.f32.mxu0 %v2566
        %3084 = vmatmul.mubr.f32.gmra.mxu0 %v2565
        %v3085 = vpop.f32.mrf.mxu0
        %v3086 = vadd.f32 %v2858, %v3085
        %v3087 = vpop.f32.mrf.mxu0
        %v3088 = vadd.f32 %v2862, %v3087
        %3089 = vmatprep.mubr.f32.mxu0 %v2570
        %3090 = vmatmul.mubr.f32.gmra.mxu0 %v2569
        %v3091 = vpop.f32.mrf.mxu0
        %v3092 = vadd.f32 %v2858, %v3091
        %v3093 = vpop.f32.mrf.mxu0
        %v3094 = vadd.f32 %v2862, %v3093
        %3095 = vmatprep.mubr.f32.mxu0 %v2574
        %3096 = vmatmul.mubr.f32.gmra.mxu0 %v2573
        %v3097 = vpop.f32.mrf.mxu0
        %v3098 = vadd.f32 %v2858, %v3097
        %v3099 = vpop.f32.mrf.mxu0
        %v3100 = vadd.f32 %v2862, %v3099
        %3101 = vmatprep.mubr.f32.mxu0 %v2578
        %3102 = vmatmul.mubr.f32.gmra.mxu0 %v2577
        %v3103 = vpop.f32.mrf.mxu0
        %v3104 = vadd.f32 %v2858, %v3103
        %v3105 = vpop.f32.mrf.mxu0
        %v3106 = vadd.f32 %v2862, %v3105
        %3107 = vmatprep.mubr.f32.mxu0 %v2582
        %3108 = vmatmul.mubr.f32.gmra.mxu0 %v2581
        %v3109 = vpop.f32.mrf.mxu0
        %v3110 = vadd.f32 %v2858, %v3109
        %v3111 = vpop.f32.mrf.mxu0
        %v3112 = vadd.f32 %v2862, %v3111
        %3113 = vmatprep.mubr.f32.mxu0 %v2586
        %3114 = vmatmul.mubr.f32.gmra.mxu0 %v2585
        %v3115 = vpop.f32.mrf.mxu0
        %v3116 = vadd.f32 %v2858, %v3115
        %v3117 = vpop.f32.mrf.mxu0
        %v3118 = vadd.f32 %v2862, %v3117
        %3119 = vmatprep.mubr.f32.mxu0 %v2590
        %3120 = vmatmul.mubr.f32.gmra.mxu0 %v2589
        %v3121 = vpop.f32.mrf.mxu0
        %v3122 = vadd.f32 %v2858, %v3121
        %v3123 = vpop.f32.mrf.mxu0
        %v3124 = vadd.f32 %v2862, %v3123
        %3125 = vmatprep.mubr.f32.mxu0 %v2594
        %3126 = vmatmul.mubr.f32.gmra.mxu0 %v2593
        %v3127 = vpop.f32.mrf.mxu0
        %v3128 = vadd.f32 %v2858, %v3127
        %v3129 = vpop.f32.mrf.mxu0
        %v3130 = vadd.f32 %v2862, %v3129
        %3131 = vdwg.mxu0
        %3132 = vmatprep.subr.mxu0 %v2786
        %3133 = vmatpush1.msra.mxu0 %v2785
        %3134 = vmatprep.subr.mxu0 %v2782
        %3135 = vmatpush1.msra.mxu0 %v2781
        %3136 = vmatprep.subr.mxu0 %v2778
        %3137 = vmatpush1.msra.mxu0 %v2777
        %3138 = vmatprep.subr.mxu0 %v2774
        %3139 = vmatpush1.msra.mxu0 %v2773
        %3140 = vmatprep.subr.mxu0 %v2770
        %3141 = vmatpush1.msra.mxu0 %v2769
        %3142 = vmatprep.subr.mxu0 %v2766
        %3143 = vmatpush1.msra.mxu0 %v2765
        %3144 = vmatprep.subr.mxu0 %v2762
        %3145 = vmatpush1.msra.mxu0 %v2761
        %3146 = vmatprep.subr.mxu0 %v2758
        %3147 = vmatpush1.msra.mxu0 %v2757
        %3148 = vmatprep.subr.mxu0 %v2754
        %3149 = vmatpush1.msra.mxu0 %v2753
        %3150 = vmatprep.subr.mxu0 %v2750
        %3151 = vmatpush1.msra.mxu0 %v2749
        %3152 = vmatprep.subr.mxu0 %v2746
        %3153 = vmatpush1.msra.mxu0 %v2745
        %3154 = vmatprep.subr.mxu0 %v2742
        %3155 = vmatpush1.msra.mxu0 %v2741
        %3156 = vmatprep.subr.mxu0 %v2738
        %3157 = vmatpush1.msra.mxu0 %v2737
        %3158 = vmatprep.subr.mxu0 %v2734
        %3159 = vmatpush1.msra.mxu0 %v2733
        %3160 = vmatprep.subr.mxu0 %v2730
        %3161 = vmatpush1.msra.mxu0 %v2729
        %3162 = vmatprep.subr.mxu0 %v2726
        %3163 = vmatpush1.msra.mxu0 %v2725
        %3164 = vmatprep.subr.mxu0 %v2850
        %3165 = vmatpush2.msra.mxu0 %v2849
        %3166 = vmatprep.subr.mxu0 %v2846
        %3167 = vmatpush2.msra.mxu0 %v2845
        %3168 = vmatprep.subr.mxu0 %v2842
        %3169 = vmatpush2.msra.mxu0 %v2841
        %3170 = vmatprep.subr.mxu0 %v2838
        %3171 = vmatpush2.msra.mxu0 %v2837
        %3172 = vmatprep.subr.mxu0 %v2834
        %3173 = vmatpush2.msra.mxu0 %v2833
        %3174 = vmatprep.subr.mxu0 %v2830
        %3175 = vmatpush2.msra.mxu0 %v2829
        %3176 = vmatprep.subr.mxu0 %v2826
        %3177 = vmatpush2.msra.mxu0 %v2825
        %3178 = vmatprep.subr.mxu0 %v2822
        %3179 = vmatpush2.msra.mxu0 %v2821
        %3180 = vmatprep.subr.mxu0 %v2818
        %3181 = vmatpush2.msra.mxu0 %v2817
        %3182 = vmatprep.subr.mxu0 %v2814
        %3183 = vmatpush2.msra.mxu0 %v2813
        %3184 = vmatprep.subr.mxu0 %v2810
        %3185 = vmatpush2.msra.mxu0 %v2809
        %3186 = vmatprep.subr.mxu0 %v2806
        %3187 = vmatpush2.msra.mxu0 %v2805
        %3188 = vmatprep.subr.mxu0 %v2802
        %3189 = vmatpush2.msra.mxu0 %v2801
        %3190 = vmatprep.subr.mxu0 %v2798
        %3191 = vmatpush2.msra.mxu0 %v2797
        %3192 = vmatprep.subr.mxu0 %v2794
        %3193 = vmatpush2.msra.mxu0 %v2793
        %3194 = vmatprep.subr.mxu0 %v2790
        %3195 = vmatpush2.msra.mxu0 %v2789
        %3196 = vmatprep.mubr.f32.mxu0 %v2472
        %3197 = vmatmul.mubr.f32.gmra.mxu0 %v2471
        %v3198 = vpop.f32.mrf.mxu0
        %v3199 = vadd.f32 %v2942, %v3198
        %v3200 = vpop.f32.mrf.mxu0
        %v3201 = vadd.f32 %v2944, %v3200
        %3202 = vmatprep.mubr.f32.mxu0 %v2476
        %3203 = vmatmul.mubr.f32.gmra.mxu0 %v2475
        %v3204 = vpop.f32.mrf.mxu0
        %v3205 = vadd.f32 %v2948, %v3204
        %v3206 = vpop.f32.mrf.mxu0
        %v3207 = vadd.f32 %v2950, %v3206
        %3208 = vmatprep.mubr.f32.mxu0 %v2480
        %3209 = vmatmul.mubr.f32.gmra.mxu0 %v2479
        %v3210 = vpop.f32.mrf.mxu0
        %v3211 = vadd.f32 %v2954, %v3210
        %v3212 = vpop.f32.mrf.mxu0
        %v3213 = vadd.f32 %v2956, %v3212
        %3214 = vmatprep.mubr.f32.mxu0 %v2484
        %3215 = vmatmul.mubr.f32.gmra.mxu0 %v2483
        %v3216 = vpop.f32.mrf.mxu0
        %v3217 = vadd.f32 %v2960, %v3216
        %v3218 = vpop.f32.mrf.mxu0
        %v3219 = vadd.f32 %v2962, %v3218
        %3220 = vmatprep.mubr.f32.mxu0 %v2488
        %3221 = vmatmul.mubr.f32.gmra.mxu0 %v2487
        %v3222 = vpop.f32.mrf.mxu0
        %v3223 = vadd.f32 %v2966, %v3222
        %v3224 = vpop.f32.mrf.mxu0
        %v3225 = vadd.f32 %v2968, %v3224
        %3226 = vmatprep.mubr.f32.mxu0 %v2492
        %3227 = vmatmul.mubr.f32.gmra.mxu0 %v2491
        %v3228 = vpop.f32.mrf.mxu0
        %v3229 = vadd.f32 %v2972, %v3228
        %v3230 = vpop.f32.mrf.mxu0
        %v3231 = vadd.f32 %v2974, %v3230
        %3232 = vmatprep.mubr.f32.mxu0 %v2496
        %3233 = vmatmul.mubr.f32.gmra.mxu0 %v2495
        %v3234 = vpop.f32.mrf.mxu0
        %v3235 = vadd.f32 %v2978, %v3234
        %v3236 = vpop.f32.mrf.mxu0
        %v3237 = vadd.f32 %v2980, %v3236
        %3238 = vmatprep.mubr.f32.mxu0 %v2500
        %3239 = vmatmul.mubr.f32.gmra.mxu0 %v2499
        %v3240 = vpop.f32.mrf.mxu0
        %v3241 = vadd.f32 %v2984, %v3240
        %v3242 = vpop.f32.mrf.mxu0
        %v3243 = vadd.f32 %v2986, %v3242
        %3244 = vmatprep.mubr.f32.mxu0 %v2504
        %3245 = vmatmul.mubr.f32.gmra.mxu0 %v2503
        %v3246 = vpop.f32.mrf.mxu0
        %v3247 = vadd.f32 %v2990, %v3246
        %v3248 = vpop.f32.mrf.mxu0
        %v3249 = vadd.f32 %v2992, %v3248
        %3250 = vmatprep.mubr.f32.mxu0 %v2508
        %3251 = vmatmul.mubr.f32.gmra.mxu0 %v2507
        %v3252 = vpop.f32.mrf.mxu0
        %v3253 = vadd.f32 %v2996, %v3252
        %v3254 = vpop.f32.mrf.mxu0
        %v3255 = vadd.f32 %v2998, %v3254
        %3256 = vmatprep.mubr.f32.mxu0 %v2512
        %3257 = vmatmul.mubr.f32.gmra.mxu0 %v2511
        %v3258 = vpop.f32.mrf.mxu0
        %v3259 = vadd.f32 %v3002, %v3258
        %v3260 = vpop.f32.mrf.mxu0
        %v3261 = vadd.f32 %v3004, %v3260
        %3262 = vmatprep.mubr.f32.mxu0 %v2516
        %3263 = vmatmul.mubr.f32.gmra.mxu0 %v2515
        %v3264 = vpop.f32.mrf.mxu0
        %v3265 = vadd.f32 %v3008, %v3264
        %v3266 = vpop.f32.mrf.mxu0
        %v3267 = vadd.f32 %v3010, %v3266
        %3268 = vmatprep.mubr.f32.mxu0 %v2520
        %3269 = vmatmul.mubr.f32.gmra.mxu0 %v2519
        %v3270 = vpop.f32.mrf.mxu0
        %v3271 = vadd.f32 %v3014, %v3270
        %v3272 = vpop.f32.mrf.mxu0
        %v3273 = vadd.f32 %v3016, %v3272
        %3274 = vmatprep.mubr.f32.mxu0 %v2524
        %3275 = vmatmul.mubr.f32.gmra.mxu0 %v2523
        %v3276 = vpop.f32.mrf.mxu0
        %v3277 = vadd.f32 %v3020, %v3276
        %v3278 = vpop.f32.mrf.mxu0
        %v3279 = vadd.f32 %v3022, %v3278
        %3280 = vmatprep.mubr.f32.mxu0 %v2528
        %3281 = vmatmul.mubr.f32.gmra.mxu0 %v2527
        %v3282 = vpop.f32.mrf.mxu0
        %v3283 = vadd.f32 %v3026, %v3282
        %v3284 = vpop.f32.mrf.mxu0
        %v3285 = vadd.f32 %v3028, %v3284
        %3286 = vmatprep.mubr.f32.mxu0 %v2532
        %3287 = vmatmul.mubr.f32.gmra.mxu0 %v2531
        %v3288 = vpop.f32.mrf.mxu0
        %v3289 = vadd.f32 %v3032, %v3288
        %v3290 = vpop.f32.mrf.mxu0
        %v3291 = vadd.f32 %v3034, %v3290
        %3292 = vmatprep.mubr.f32.mxu0 %v2536
        %3293 = vmatmul.mubr.f32.gmra.mxu0 %v2535
        %v3294 = vpop.f32.mrf.mxu0
        %v3295 = vadd.f32 %v3038, %v3294
        %v3296 = vpop.f32.mrf.mxu0
        %v3297 = vadd.f32 %v3040, %v3296
        %3298 = vmatprep.mubr.f32.mxu0 %v2540
        %3299 = vmatmul.mubr.f32.gmra.mxu0 %v2539
        %v3300 = vpop.f32.mrf.mxu0
        %v3301 = vadd.f32 %v3044, %v3300
        %v3302 = vpop.f32.mrf.mxu0
        %v3303 = vadd.f32 %v3046, %v3302
        %3304 = vmatprep.mubr.f32.mxu0 %v2544
        %3305 = vmatmul.mubr.f32.gmra.mxu0 %v2543
        %v3306 = vpop.f32.mrf.mxu0
        %v3307 = vadd.f32 %v3050, %v3306
        %v3308 = vpop.f32.mrf.mxu0
        %v3309 = vadd.f32 %v3052, %v3308
        %3310 = vmatprep.mubr.f32.mxu0 %v2548
        %3311 = vmatmul.mubr.f32.gmra.mxu0 %v2547
        %v3312 = vpop.f32.mrf.mxu0
        %v3313 = vadd.f32 %v3056, %v3312
        %v3314 = vpop.f32.mrf.mxu0
        %v3315 = vadd.f32 %v3058, %v3314
        %3316 = vmatprep.mubr.f32.mxu0 %v2552
        %3317 = vmatmul.mubr.f32.gmra.mxu0 %v2551
        %v3318 = vpop.f32.mrf.mxu0
        %v3319 = vadd.f32 %v3062, %v3318
        %v3320 = vpop.f32.mrf.mxu0
        %v3321 = vadd.f32 %v3064, %v3320
        %3322 = vmatprep.mubr.f32.mxu0 %v2556
        %3323 = vmatmul.mubr.f32.gmra.mxu0 %v2555
        %v3324 = vpop.f32.mrf.mxu0
        %v3325 = vadd.f32 %v3068, %v3324
        %v3326 = vpop.f32.mrf.mxu0
        %v3327 = vadd.f32 %v3070, %v3326
        %3328 = vmatprep.mubr.f32.mxu0 %v2560
        %3329 = vmatmul.mubr.f32.gmra.mxu0 %v2559
        %v3330 = vpop.f32.mrf.mxu0
        %v3331 = vadd.f32 %v3074, %v3330
        %v3332 = vpop.f32.mrf.mxu0
        %v3333 = vadd.f32 %v3076, %v3332
        %3334 = vmatprep.mubr.f32.mxu0 %v2564
        %3335 = vmatmul.mubr.f32.gmra.mxu0 %v2563
        %v3336 = vpop.f32.mrf.mxu0
        %v3337 = vadd.f32 %v3080, %v3336
        %v3338 = vpop.f32.mrf.mxu0
        %v3339 = vadd.f32 %v3082, %v3338
        %3340 = vmatprep.mubr.f32.mxu0 %v2568
        %3341 = vmatmul.mubr.f32.gmra.mxu0 %v2567
        %v3342 = vpop.f32.mrf.mxu0
        %v3343 = vadd.f32 %v3086, %v3342
        %v3344 = vpop.f32.mrf.mxu0
        %v3345 = vadd.f32 %v3088, %v3344
        %3346 = vmatprep.mubr.f32.mxu0 %v2572
        %3347 = vmatmul.mubr.f32.gmra.mxu0 %v2571
        %v3348 = vpop.f32.mrf.mxu0
        %v3349 = vadd.f32 %v3092, %v3348
        %v3350 = vpop.f32.mrf.mxu0
        %v3351 = vadd.f32 %v3094, %v3350
        %3352 = vmatprep.mubr.f32.mxu0 %v2576
        %3353 = vmatmul.mubr.f32.gmra.mxu0 %v2575
        %v3354 = vpop.f32.mrf.mxu0
        %v3355 = vadd.f32 %v3098, %v3354
        %v3356 = vpop.f32.mrf.mxu0
        %v3357 = vadd.f32 %v3100, %v3356
        %3358 = vmatprep.mubr.f32.mxu0 %v2580
        %3359 = vmatmul.mubr.f32.gmra.mxu0 %v2579
        %v3360 = vpop.f32.mrf.mxu0
        %v3361 = vadd.f32 %v3104, %v3360
        %v3362 = vpop.f32.mrf.mxu0
        %v3363 = vadd.f32 %v3106, %v3362
        %3364 = vmatprep.mubr.f32.mxu0 %v2584
        %3365 = vmatmul.mubr.f32.gmra.mxu0 %v2583
        %v3366 = vpop.f32.mrf.mxu0
        %v3367 = vadd.f32 %v3110, %v3366
        %v3368 = vpop.f32.mrf.mxu0
        %v3369 = vadd.f32 %v3112, %v3368
        %3370 = vmatprep.mubr.f32.mxu0 %v2588
        %3371 = vmatmul.mubr.f32.gmra.mxu0 %v2587
        %v3372 = vpop.f32.mrf.mxu0
        %v3373 = vadd.f32 %v3116, %v3372
        %v3374 = vpop.f32.mrf.mxu0
        %v3375 = vadd.f32 %v3118, %v3374
        %3376 = vmatprep.mubr.f32.mxu0 %v2592
        %3377 = vmatmul.mubr.f32.gmra.mxu0 %v2591
        %v3378 = vpop.f32.mrf.mxu0
        %v3379 = vadd.f32 %v3122, %v3378
        %v3380 = vpop.f32.mrf.mxu0
        %v3381 = vadd.f32 %v3124, %v3380
        %3382 = vmatprep.mubr.f32.mxu0 %v2596
        %3383 = vmatmul.mubr.f32.gmra.mxu0 %v2595
        %v3384 = vpop.f32.mrf.mxu0
        %v3385 = vadd.f32 %v3128, %v3384
        %v3386 = vpop.f32.mrf.mxu0
        %v3387 = vadd.f32 %v3130, %v3386
        %3388 = vdwg.mxu0
        %3389 = vmatprep.subr.mxu0 %v2660
        %3390 = vmatpush1.msra.mxu0 %v2659
        %3391 = vmatprep.subr.mxu0 %v2656
        %3392 = vmatpush1.msra.mxu0 %v2655
        %3393 = vmatprep.subr.mxu0 %v2652
        %3394 = vmatpush1.msra.mxu0 %v2651
        %3395 = vmatprep.subr.mxu0 %v2648
        %3396 = vmatpush1.msra.mxu0 %v2647
        %3397 = vmatprep.subr.mxu0 %v2644
        %3398 = vmatpush1.msra.mxu0 %v2643
        %3399 = vmatprep.subr.mxu0 %v2640
        %3400 = vmatpush1.msra.mxu0 %v2639
        %3401 = vmatprep.subr.mxu0 %v2636
        %3402 = vmatpush1.msra.mxu0 %v2635
        %3403 = vmatprep.subr.mxu0 %v2632
        %3404 = vmatpush1.msra.mxu0 %v2631
        %3405 = vmatprep.subr.mxu0 %v2628
        %3406 = vmatpush1.msra.mxu0 %v2627
        %3407 = vmatprep.subr.mxu0 %v2624
        %3408 = vmatpush1.msra.mxu0 %v2623
        %3409 = vmatprep.subr.mxu0 %v2620
        %3410 = vmatpush1.msra.mxu0 %v2619
        %3411 = vmatprep.subr.mxu0 %v2616
        %3412 = vmatpush1.msra.mxu0 %v2615
        %3413 = vmatprep.subr.mxu0 %v2612
        %3414 = vmatpush1.msra.mxu0 %v2611
        %3415 = vmatprep.subr.mxu0 %v2608
        %3416 = vmatpush1.msra.mxu0 %v2607
        %3417 = vmatprep.subr.mxu0 %v2604
        %3418 = vmatpush1.msra.mxu0 %v2603
        %3419 = vmatprep.subr.mxu0 %v2600
        %3420 = vmatpush1.msra.mxu0 %v2599
        %3421 = vmatprep.subr.mxu0 %v2724
        %3422 = vmatpush2.msra.mxu0 %v2723
        %3423 = vmatprep.subr.mxu0 %v2720
        %3424 = vmatpush2.msra.mxu0 %v2719
        %3425 = vmatprep.subr.mxu0 %v2716
        %3426 = vmatpush2.msra.mxu0 %v2715
        %3427 = vmatprep.subr.mxu0 %v2712
        %3428 = vmatpush2.msra.mxu0 %v2711
        %3429 = vmatprep.subr.mxu0 %v2708
        %3430 = vmatpush2.msra.mxu0 %v2707
        %3431 = vmatprep.subr.mxu0 %v2704
        %3432 = vmatpush2.msra.mxu0 %v2703
        %3433 = vmatprep.subr.mxu0 %v2700
        %3434 = vmatpush2.msra.mxu0 %v2699
        %3435 = vmatprep.subr.mxu0 %v2696
        %3436 = vmatpush2.msra.mxu0 %v2695
        %3437 = vmatprep.subr.mxu0 %v2692
        %3438 = vmatpush2.msra.mxu0 %v2691
        %3439 = vmatprep.subr.mxu0 %v2688
        %3440 = vmatpush2.msra.mxu0 %v2687
        %3441 = vmatprep.subr.mxu0 %v2684
        %3442 = vmatpush2.msra.mxu0 %v2683
        %3443 = vmatprep.subr.mxu0 %v2680
        %3444 = vmatpush2.msra.mxu0 %v2679
        %3445 = vmatprep.subr.mxu0 %v2676
        %3446 = vmatpush2.msra.mxu0 %v2675
        %3447 = vmatprep.subr.mxu0 %v2672
        %3448 = vmatpush2.msra.mxu0 %v2671
        %3449 = vmatprep.subr.mxu0 %v2668
        %3450 = vmatpush2.msra.mxu0 %v2667
        %3451 = vmatprep.subr.mxu0 %v2664
        %3452 = vmatpush2.msra.mxu0 %v2663
        %3453 = vmatprep.mubr.f32.mxu0 %v2470
        %3454 = vmatmul.mubr.f32.gmra.mxu0 %v2469
        %v3455 = vpop.f32.mrf.mxu0
        %v3456 = vadd.f32 %v2866, %v3455
        %v3457 = vpop.f32.mrf.mxu0
        %v3458 = vadd.f32 %v2870, %v3457
        %3459 = vmatprep.mubr.f32.mxu0 %v2474
        %3460 = vmatmul.mubr.f32.gmra.mxu0 %v2473
        %v3461 = vpop.f32.mrf.mxu0
        %v3462 = vadd.f32 %v2866, %v3461
        %v3463 = vpop.f32.mrf.mxu0
        %v3464 = vadd.f32 %v2870, %v3463
        %3465 = vmatprep.mubr.f32.mxu0 %v2478
        %3466 = vmatmul.mubr.f32.gmra.mxu0 %v2477
        %v3467 = vpop.f32.mrf.mxu0
        %v3468 = vadd.f32 %v2866, %v3467
        %v3469 = vpop.f32.mrf.mxu0
        %v3470 = vadd.f32 %v2870, %v3469
        %3471 = vmatprep.mubr.f32.mxu0 %v2482
        %3472 = vmatmul.mubr.f32.gmra.mxu0 %v2481
        %v3473 = vpop.f32.mrf.mxu0
        %v3474 = vadd.f32 %v2866, %v3473
        %v3475 = vpop.f32.mrf.mxu0
        %v3476 = vadd.f32 %v2870, %v3475
        %3477 = vmatprep.mubr.f32.mxu0 %v2486
        %3478 = vmatmul.mubr.f32.gmra.mxu0 %v2485
        %v3479 = vpop.f32.mrf.mxu0
        %v3480 = vadd.f32 %v2866, %v3479
        %v3481 = vpop.f32.mrf.mxu0
        %v3482 = vadd.f32 %v2870, %v3481
        %3483 = vmatprep.mubr.f32.mxu0 %v2490
        %3484 = vmatmul.mubr.f32.gmra.mxu0 %v2489
        %v3485 = vpop.f32.mrf.mxu0
        %v3486 = vadd.f32 %v2866, %v3485
        %v3487 = vpop.f32.mrf.mxu0
        %v3488 = vadd.f32 %v2870, %v3487
        %3489 = vmatprep.mubr.f32.mxu0 %v2494
        %3490 = vmatmul.mubr.f32.gmra.mxu0 %v2493
        %v3491 = vpop.f32.mrf.mxu0
        %v3492 = vadd.f32 %v2866, %v3491
        %v3493 = vpop.f32.mrf.mxu0
        %v3494 = vadd.f32 %v2870, %v3493
        %3495 = vmatprep.mubr.f32.mxu0 %v2498
        %3496 = vmatmul.mubr.f32.gmra.mxu0 %v2497
        %v3497 = vpop.f32.mrf.mxu0
        %v3498 = vadd.f32 %v2866, %v3497
        %v3499 = vpop.f32.mrf.mxu0
        %v3500 = vadd.f32 %v2870, %v3499
        %3501 = vmatprep.mubr.f32.mxu0 %v2502
        %3502 = vmatmul.mubr.f32.gmra.mxu0 %v2501
        %v3503 = vpop.f32.mrf.mxu0
        %v3504 = vadd.f32 %v2866, %v3503
        %v3505 = vpop.f32.mrf.mxu0
        %v3506 = vadd.f32 %v2870, %v3505
        %3507 = vmatprep.mubr.f32.mxu0 %v2506
        %3508 = vmatmul.mubr.f32.gmra.mxu0 %v2505
        %v3509 = vpop.f32.mrf.mxu0
        %v3510 = vadd.f32 %v2866, %v3509
        %v3511 = vpop.f32.mrf.mxu0
        %v3512 = vadd.f32 %v2870, %v3511
        %3513 = vmatprep.mubr.f32.mxu0 %v2510
        %3514 = vmatmul.mubr.f32.gmra.mxu0 %v2509
        %v3515 = vpop.f32.mrf.mxu0
        %v3516 = vadd.f32 %v2866, %v3515
        %v3517 = vpop.f32.mrf.mxu0
        %v3518 = vadd.f32 %v2870, %v3517
        %3519 = vmatprep.mubr.f32.mxu0 %v2514
        %3520 = vmatmul.mubr.f32.gmra.mxu0 %v2513
        %v3521 = vpop.f32.mrf.mxu0
        %v3522 = vadd.f32 %v2866, %v3521
        %v3523 = vpop.f32.mrf.mxu0
        %v3524 = vadd.f32 %v2870, %v3523
        %3525 = vmatprep.mubr.f32.mxu0 %v2518
        %3526 = vmatmul.mubr.f32.gmra.mxu0 %v2517
        %v3527 = vpop.f32.mrf.mxu0
        %v3528 = vadd.f32 %v2866, %v3527
        %v3529 = vpop.f32.mrf.mxu0
        %v3530 = vadd.f32 %v2870, %v3529
        %3531 = vmatprep.mubr.f32.mxu0 %v2522
        %3532 = vmatmul.mubr.f32.gmra.mxu0 %v2521
        %v3533 = vpop.f32.mrf.mxu0
        %v3534 = vadd.f32 %v2866, %v3533
        %v3535 = vpop.f32.mrf.mxu0
        %v3536 = vadd.f32 %v2870, %v3535
        %3537 = vmatprep.mubr.f32.mxu0 %v2526
        %3538 = vmatmul.mubr.f32.gmra.mxu0 %v2525
        %v3539 = vpop.f32.mrf.mxu0
        %v3540 = vadd.f32 %v2866, %v3539
        %v3541 = vpop.f32.mrf.mxu0
        %v3542 = vadd.f32 %v2870, %v3541
        %3543 = vmatprep.mubr.f32.mxu0 %v2530
        %3544 = vmatmul.mubr.f32.gmra.mxu0 %v2529
        %v3545 = vpop.f32.mrf.mxu0
        %v3546 = vadd.f32 %v2866, %v3545
        %v3547 = vpop.f32.mrf.mxu0
        %v3548 = vadd.f32 %v2870, %v3547
        %3549 = vmatprep.mubr.f32.mxu0 %v2534
        %3550 = vmatmul.mubr.f32.gmra.mxu0 %v2533
        %v3551 = vpop.f32.mrf.mxu0
        %v3552 = vadd.f32 %v2866, %v3551
        %v3553 = vpop.f32.mrf.mxu0
        %v3554 = vadd.f32 %v2870, %v3553
        %3555 = vmatprep.mubr.f32.mxu0 %v2538
        %3556 = vmatmul.mubr.f32.gmra.mxu0 %v2537
        %v3557 = vpop.f32.mrf.mxu0
        %v3558 = vadd.f32 %v2866, %v3557
        %v3559 = vpop.f32.mrf.mxu0
        %v3560 = vadd.f32 %v2870, %v3559
        %3561 = vmatprep.mubr.f32.mxu0 %v2542
        %3562 = vmatmul.mubr.f32.gmra.mxu0 %v2541
        %v3563 = vpop.f32.mrf.mxu0
        %v3564 = vadd.f32 %v2866, %v3563
        %v3565 = vpop.f32.mrf.mxu0
        %v3566 = vadd.f32 %v2870, %v3565
        %3567 = vmatprep.mubr.f32.mxu0 %v2546
        %3568 = vmatmul.mubr.f32.gmra.mxu0 %v2545
        %v3569 = vpop.f32.mrf.mxu0
        %v3570 = vadd.f32 %v2866, %v3569
        %v3571 = vpop.f32.mrf.mxu0
        %v3572 = vadd.f32 %v2870, %v3571
        %3573 = vmatprep.mubr.f32.mxu0 %v2550
        %3574 = vmatmul.mubr.f32.gmra.mxu0 %v2549
        %v3575 = vpop.f32.mrf.mxu0
        %v3576 = vadd.f32 %v2866, %v3575
        %v3577 = vpop.f32.mrf.mxu0
        %v3578 = vadd.f32 %v2870, %v3577
        %3579 = vmatprep.mubr.f32.mxu0 %v2554
        %3580 = vmatmul.mubr.f32.gmra.mxu0 %v2553
        %v3581 = vpop.f32.mrf.mxu0
        %v3582 = vadd.f32 %v2866, %v3581
        %v3583 = vpop.f32.mrf.mxu0
        %v3584 = vadd.f32 %v2870, %v3583
        %3585 = vmatprep.mubr.f32.mxu0 %v2558
        %3586 = vmatmul.mubr.f32.gmra.mxu0 %v2557
        %v3587 = vpop.f32.mrf.mxu0
        %v3588 = vadd.f32 %v2866, %v3587
        %v3589 = vpop.f32.mrf.mxu0
        %v3590 = vadd.f32 %v2870, %v3589
        %3591 = vmatprep.mubr.f32.mxu0 %v2562
        %3592 = vmatmul.mubr.f32.gmra.mxu0 %v2561
        %v3593 = vpop.f32.mrf.mxu0
        %v3594 = vadd.f32 %v2866, %v3593
        %v3595 = vpop.f32.mrf.mxu0
        %v3596 = vadd.f32 %v2870, %v3595
        %3597 = vmatprep.mubr.f32.mxu0 %v2566
        %3598 = vmatmul.mubr.f32.gmra.mxu0 %v2565
        %v3599 = vpop.f32.mrf.mxu0
        %v3600 = vadd.f32 %v2866, %v3599
        %v3601 = vpop.f32.mrf.mxu0
        %v3602 = vadd.f32 %v2870, %v3601
        %3603 = vmatprep.mubr.f32.mxu0 %v2570
        %3604 = vmatmul.mubr.f32.gmra.mxu0 %v2569
        %v3605 = vpop.f32.mrf.mxu0
        %v3606 = vadd.f32 %v2866, %v3605
        %v3607 = vpop.f32.mrf.mxu0
        %v3608 = vadd.f32 %v2870, %v3607
        %3609 = vmatprep.mubr.f32.mxu0 %v2574
        %3610 = vmatmul.mubr.f32.gmra.mxu0 %v2573
        %v3611 = vpop.f32.mrf.mxu0
        %v3612 = vadd.f32 %v2866, %v3611
        %v3613 = vpop.f32.mrf.mxu0
        %v3614 = vadd.f32 %v2870, %v3613
        %3615 = vmatprep.mubr.f32.mxu0 %v2578
        %3616 = vmatmul.mubr.f32.gmra.mxu0 %v2577
        %v3617 = vpop.f32.mrf.mxu0
        %v3618 = vadd.f32 %v2866, %v3617
        %v3619 = vpop.f32.mrf.mxu0
        %v3620 = vadd.f32 %v2870, %v3619
        %3621 = vmatprep.mubr.f32.mxu0 %v2582
        %3622 = vmatmul.mubr.f32.gmra.mxu0 %v2581
        %v3623 = vpop.f32.mrf.mxu0
        %v3624 = vadd.f32 %v2866, %v3623
        %v3625 = vpop.f32.mrf.mxu0
        %v3626 = vadd.f32 %v2870, %v3625
        %3627 = vmatprep.mubr.f32.mxu0 %v2586
        %3628 = vmatmul.mubr.f32.gmra.mxu0 %v2585
        %v3629 = vpop.f32.mrf.mxu0
        %v3630 = vadd.f32 %v2866, %v3629
        %v3631 = vpop.f32.mrf.mxu0
        %v3632 = vadd.f32 %v2870, %v3631
        %3633 = vmatprep.mubr.f32.mxu0 %v2590
        %3634 = vmatmul.mubr.f32.gmra.mxu0 %v2589
        %v3635 = vpop.f32.mrf.mxu0
        %v3636 = vadd.f32 %v2866, %v3635
        %v3637 = vpop.f32.mrf.mxu0
        %v3638 = vadd.f32 %v2870, %v3637
        %3639 = vmatprep.mubr.f32.mxu0 %v2594
        %3640 = vmatmul.mubr.f32.gmra.mxu0 %v2593
        %v3641 = vpop.f32.mrf.mxu0
        %v3642 = vadd.f32 %v2866, %v3641
        %v3643 = vpop.f32.mrf.mxu0
        %v3644 = vadd.f32 %v2870, %v3643
        %3645 = vdwg.mxu0
        %3646 = vmatprep.subr.mxu0 %v2788
        %3647 = vmatpush1.msra.mxu0 %v2787
        %3648 = vmatprep.subr.mxu0 %v2784
        %3649 = vmatpush1.msra.mxu0 %v2783
        %3650 = vmatprep.subr.mxu0 %v2780
        %3651 = vmatpush1.msra.mxu0 %v2779
        %3652 = vmatprep.subr.mxu0 %v2776
        %3653 = vmatpush1.msra.mxu0 %v2775
        %3654 = vmatprep.subr.mxu0 %v2772
        %3655 = vmatpush1.msra.mxu0 %v2771
        %3656 = vmatprep.subr.mxu0 %v2768
        %3657 = vmatpush1.msra.mxu0 %v2767
        %3658 = vmatprep.subr.mxu0 %v2764
        %3659 = vmatpush1.msra.mxu0 %v2763
        %3660 = vmatprep.subr.mxu0 %v2760
        %3661 = vmatpush1.msra.mxu0 %v2759
        %3662 = vmatprep.subr.mxu0 %v2756
        %3663 = vmatpush1.msra.mxu0 %v2755
        %3664 = vmatprep.subr.mxu0 %v2752
        %3665 = vmatpush1.msra.mxu0 %v2751
        %3666 = vmatprep.subr.mxu0 %v2748
        %3667 = vmatpush1.msra.mxu0 %v2747
        %3668 = vmatprep.subr.mxu0 %v2744
        %3669 = vmatpush1.msra.mxu0 %v2743
        %3670 = vmatprep.subr.mxu0 %v2740
        %3671 = vmatpush1.msra.mxu0 %v2739
        %3672 = vmatprep.subr.mxu0 %v2736
        %3673 = vmatpush1.msra.mxu0 %v2735
        %3674 = vmatprep.subr.mxu0 %v2732
        %3675 = vmatpush1.msra.mxu0 %v2731
        %3676 = vmatprep.subr.mxu0 %v2728
        %3677 = vmatpush1.msra.mxu0 %v2727
        %3678 = vmatprep.subr.mxu0 %v2852
        %3679 = vmatpush2.msra.mxu0 %v2851
        %3680 = vmatprep.subr.mxu0 %v2848
        %3681 = vmatpush2.msra.mxu0 %v2847
        %3682 = vmatprep.subr.mxu0 %v2844
        %3683 = vmatpush2.msra.mxu0 %v2843
        %3684 = vmatprep.subr.mxu0 %v2840
        %3685 = vmatpush2.msra.mxu0 %v2839
        %3686 = vmatprep.subr.mxu0 %v2836
        %3687 = vmatpush2.msra.mxu0 %v2835
        %3688 = vmatprep.subr.mxu0 %v2832
        %3689 = vmatpush2.msra.mxu0 %v2831
        %3690 = vmatprep.subr.mxu0 %v2828
        %3691 = vmatpush2.msra.mxu0 %v2827
        %3692 = vmatprep.subr.mxu0 %v2824
        %3693 = vmatpush2.msra.mxu0 %v2823
        %3694 = vmatprep.subr.mxu0 %v2820
        %3695 = vmatpush2.msra.mxu0 %v2819
        %3696 = vmatprep.subr.mxu0 %v2816
        %3697 = vmatpush2.msra.mxu0 %v2815
        %3698 = vmatprep.subr.mxu0 %v2812
        %3699 = vmatpush2.msra.mxu0 %v2811
        %3700 = vmatprep.subr.mxu0 %v2808
        %3701 = vmatpush2.msra.mxu0 %v2807
        %3702 = vmatprep.subr.mxu0 %v2804
        %3703 = vmatpush2.msra.mxu0 %v2803
        %3704 = vmatprep.subr.mxu0 %v2800
        %3705 = vmatpush2.msra.mxu0 %v2799
        %3706 = vmatprep.subr.mxu0 %v2796
        %3707 = vmatpush2.msra.mxu0 %v2795
        %3708 = vmatprep.subr.mxu0 %v2792
        %3709 = vmatpush2.msra.mxu0 %v2791
        %3710 = vmatprep.mubr.f32.mxu0 %v2472
        %3711 = vmatmul.mubr.f32.gmra.mxu0 %v2471
        %v3712 = vpop.f32.mrf.mxu0
        %v3713 = vadd.f32 %v3456, %v3712
        %v3714 = vpop.f32.mrf.mxu0
        %v3715 = vadd.f32 %v3458, %v3714
        %3716 = vmatprep.mubr.f32.mxu0 %v2476
        %3717 = vmatmul.mubr.f32.gmra.mxu0 %v2475
        %v3718 = vpop.f32.mrf.mxu0
        %v3719 = vadd.f32 %v3462, %v3718
        %v3720 = vpop.f32.mrf.mxu0
        %v3721 = vadd.f32 %v3464, %v3720
        %3722 = vmatprep.mubr.f32.mxu0 %v2480
        %3723 = vmatmul.mubr.f32.gmra.mxu0 %v2479
        %v3724 = vpop.f32.mrf.mxu0
        %v3725 = vadd.f32 %v3468, %v3724
        %v3726 = vpop.f32.mrf.mxu0
        %v3727 = vadd.f32 %v3470, %v3726
        %3728 = vmatprep.mubr.f32.mxu0 %v2484
        %3729 = vmatmul.mubr.f32.gmra.mxu0 %v2483
        %v3730 = vpop.f32.mrf.mxu0
        %v3731 = vadd.f32 %v3474, %v3730
        %v3732 = vpop.f32.mrf.mxu0
        %v3733 = vadd.f32 %v3476, %v3732
        %3734 = vmatprep.mubr.f32.mxu0 %v2488
        %3735 = vmatmul.mubr.f32.gmra.mxu0 %v2487
        %v3736 = vpop.f32.mrf.mxu0
        %v3737 = vadd.f32 %v3480, %v3736
        %v3738 = vpop.f32.mrf.mxu0
        %v3739 = vadd.f32 %v3482, %v3738
        %3740 = vmatprep.mubr.f32.mxu0 %v2492
        %3741 = vmatmul.mubr.f32.gmra.mxu0 %v2491
        %v3742 = vpop.f32.mrf.mxu0
        %v3743 = vadd.f32 %v3486, %v3742
        %v3744 = vpop.f32.mrf.mxu0
        %v3745 = vadd.f32 %v3488, %v3744
        %3746 = vmatprep.mubr.f32.mxu0 %v2496
        %3747 = vmatmul.mubr.f32.gmra.mxu0 %v2495
        %v3748 = vpop.f32.mrf.mxu0
        %v3749 = vadd.f32 %v3492, %v3748
        %v3750 = vpop.f32.mrf.mxu0
        %v3751 = vadd.f32 %v3494, %v3750
        %3752 = vmatprep.mubr.f32.mxu0 %v2500
        %3753 = vmatmul.mubr.f32.gmra.mxu0 %v2499
        %v3754 = vpop.f32.mrf.mxu0
        %v3755 = vadd.f32 %v3498, %v3754
        %v3756 = vpop.f32.mrf.mxu0
        %v3757 = vadd.f32 %v3500, %v3756
        %3758 = vmatprep.mubr.f32.mxu0 %v2504
        %3759 = vmatmul.mubr.f32.gmra.mxu0 %v2503
        %v3760 = vpop.f32.mrf.mxu0
        %v3761 = vadd.f32 %v3504, %v3760
        %v3762 = vpop.f32.mrf.mxu0
        %v3763 = vadd.f32 %v3506, %v3762
        %3764 = vmatprep.mubr.f32.mxu0 %v2508
        %3765 = vmatmul.mubr.f32.gmra.mxu0 %v2507
        %v3766 = vpop.f32.mrf.mxu0
        %v3767 = vadd.f32 %v3510, %v3766
        %v3768 = vpop.f32.mrf.mxu0
        %v3769 = vadd.f32 %v3512, %v3768
        %3770 = vmatprep.mubr.f32.mxu0 %v2512
        %3771 = vmatmul.mubr.f32.gmra.mxu0 %v2511
        %v3772 = vpop.f32.mrf.mxu0
        %v3773 = vadd.f32 %v3516, %v3772
        %v3774 = vpop.f32.mrf.mxu0
        %v3775 = vadd.f32 %v3518, %v3774
        %3776 = vmatprep.mubr.f32.mxu0 %v2516
        %3777 = vmatmul.mubr.f32.gmra.mxu0 %v2515
        %v3778 = vpop.f32.mrf.mxu0
        %v3779 = vadd.f32 %v3522, %v3778
        %v3780 = vpop.f32.mrf.mxu0
        %v3781 = vadd.f32 %v3524, %v3780
        %3782 = vmatprep.mubr.f32.mxu0 %v2520
        %3783 = vmatmul.mubr.f32.gmra.mxu0 %v2519
        %v3784 = vpop.f32.mrf.mxu0
        %v3785 = vadd.f32 %v3528, %v3784
        %v3786 = vpop.f32.mrf.mxu0
        %v3787 = vadd.f32 %v3530, %v3786
        %3788 = vmatprep.mubr.f32.mxu0 %v2524
        %3789 = vmatmul.mubr.f32.gmra.mxu0 %v2523
        %v3790 = vpop.f32.mrf.mxu0
        %v3791 = vadd.f32 %v3534, %v3790
        %v3792 = vpop.f32.mrf.mxu0
        %v3793 = vadd.f32 %v3536, %v3792
        %3794 = vmatprep.mubr.f32.mxu0 %v2528
        %3795 = vmatmul.mubr.f32.gmra.mxu0 %v2527
        %v3796 = vpop.f32.mrf.mxu0
        %v3797 = vadd.f32 %v3540, %v3796
        %v3798 = vpop.f32.mrf.mxu0
        %v3799 = vadd.f32 %v3542, %v3798
        %3800 = vmatprep.mubr.f32.mxu0 %v2532
        %3801 = vmatmul.mubr.f32.gmra.mxu0 %v2531
        %v3802 = vpop.f32.mrf.mxu0
        %v3803 = vadd.f32 %v3546, %v3802
        %v3804 = vpop.f32.mrf.mxu0
        %v3805 = vadd.f32 %v3548, %v3804
        %3806 = vmatprep.mubr.f32.mxu0 %v2536
        %3807 = vmatmul.mubr.f32.gmra.mxu0 %v2535
        %v3808 = vpop.f32.mrf.mxu0
        %v3809 = vadd.f32 %v3552, %v3808
        %v3810 = vpop.f32.mrf.mxu0
        %v3811 = vadd.f32 %v3554, %v3810
        %3812 = vmatprep.mubr.f32.mxu0 %v2540
        %3813 = vmatmul.mubr.f32.gmra.mxu0 %v2539
        %v3814 = vpop.f32.mrf.mxu0
        %v3815 = vadd.f32 %v3558, %v3814
        %v3816 = vpop.f32.mrf.mxu0
        %v3817 = vadd.f32 %v3560, %v3816
        %3818 = vmatprep.mubr.f32.mxu0 %v2544
        %3819 = vmatmul.mubr.f32.gmra.mxu0 %v2543
        %v3820 = vpop.f32.mrf.mxu0
        %v3821 = vadd.f32 %v3564, %v3820
        %v3822 = vpop.f32.mrf.mxu0
        %v3823 = vadd.f32 %v3566, %v3822
        %3824 = vmatprep.mubr.f32.mxu0 %v2548
        %3825 = vmatmul.mubr.f32.gmra.mxu0 %v2547
        %v3826 = vpop.f32.mrf.mxu0
        %v3827 = vadd.f32 %v3570, %v3826
        %v3828 = vpop.f32.mrf.mxu0
        %v3829 = vadd.f32 %v3572, %v3828
        %3830 = vmatprep.mubr.f32.mxu0 %v2552
        %3831 = vmatmul.mubr.f32.gmra.mxu0 %v2551
        %v3832 = vpop.f32.mrf.mxu0
        %v3833 = vadd.f32 %v3576, %v3832
        %v3834 = vpop.f32.mrf.mxu0
        %v3835 = vadd.f32 %v3578, %v3834
        %3836 = vmatprep.mubr.f32.mxu0 %v2556
        %3837 = vmatmul.mubr.f32.gmra.mxu0 %v2555
        %v3838 = vpop.f32.mrf.mxu0
        %v3839 = vadd.f32 %v3582, %v3838
        %v3840 = vpop.f32.mrf.mxu0
        %v3841 = vadd.f32 %v3584, %v3840
        %3842 = vmatprep.mubr.f32.mxu0 %v2560
        %3843 = vmatmul.mubr.f32.gmra.mxu0 %v2559
        %v3844 = vpop.f32.mrf.mxu0
        %v3845 = vadd.f32 %v3588, %v3844
        %v3846 = vpop.f32.mrf.mxu0
        %v3847 = vadd.f32 %v3590, %v3846
        %3848 = vmatprep.mubr.f32.mxu0 %v2564
        %3849 = vmatmul.mubr.f32.gmra.mxu0 %v2563
        %v3850 = vpop.f32.mrf.mxu0
        %v3851 = vadd.f32 %v3594, %v3850
        %v3852 = vpop.f32.mrf.mxu0
        %v3853 = vadd.f32 %v3596, %v3852
        %3854 = vmatprep.mubr.f32.mxu0 %v2568
        %3855 = vmatmul.mubr.f32.gmra.mxu0 %v2567
        %v3856 = vpop.f32.mrf.mxu0
        %v3857 = vadd.f32 %v3600, %v3856
        %v3858 = vpop.f32.mrf.mxu0
        %v3859 = vadd.f32 %v3602, %v3858
        %3860 = vmatprep.mubr.f32.mxu0 %v2572
        %3861 = vmatmul.mubr.f32.gmra.mxu0 %v2571
        %v3862 = vpop.f32.mrf.mxu0
        %v3863 = vadd.f32 %v3606, %v3862
        %v3864 = vpop.f32.mrf.mxu0
        %v3865 = vadd.f32 %v3608, %v3864
        %3866 = vmatprep.mubr.f32.mxu0 %v2576
        %3867 = vmatmul.mubr.f32.gmra.mxu0 %v2575
        %v3868 = vpop.f32.mrf.mxu0
        %v3869 = vadd.f32 %v3612, %v3868
        %v3870 = vpop.f32.mrf.mxu0
        %v3871 = vadd.f32 %v3614, %v3870
        %3872 = vmatprep.mubr.f32.mxu0 %v2580
        %3873 = vmatmul.mubr.f32.gmra.mxu0 %v2579
        %v3874 = vpop.f32.mrf.mxu0
        %v3875 = vadd.f32 %v3618, %v3874
        %v3876 = vpop.f32.mrf.mxu0
        %v3877 = vadd.f32 %v3620, %v3876
        %3878 = vmatprep.mubr.f32.mxu0 %v2584
        %3879 = vmatmul.mubr.f32.gmra.mxu0 %v2583
        %v3880 = vpop.f32.mrf.mxu0
        %v3881 = vadd.f32 %v3624, %v3880
        %v3882 = vpop.f32.mrf.mxu0
        %v3883 = vadd.f32 %v3626, %v3882
        %3884 = vmatprep.mubr.f32.mxu0 %v2588
        %3885 = vmatmul.mubr.f32.gmra.mxu0 %v2587
        %v3886 = vpop.f32.mrf.mxu0
        %v3887 = vadd.f32 %v3630, %v3886
        %v3888 = vpop.f32.mrf.mxu0
        %v3889 = vadd.f32 %v3632, %v3888
        %3890 = vmatprep.mubr.f32.mxu0 %v2592
        %3891 = vmatmul.mubr.f32.gmra.mxu0 %v2591
        %v3892 = vpop.f32.mrf.mxu0
        %v3893 = vadd.f32 %v3636, %v3892
        %v3894 = vpop.f32.mrf.mxu0
        %v3895 = vadd.f32 %v3638, %v3894
        %3896 = vmatprep.mubr.f32.mxu0 %v2596
        %3897 = vmatmul.mubr.f32.gmra.mxu0 %v2595
        %v3898 = vpop.f32.mrf.mxu0
        %v3899 = vadd.f32 %v3642, %v3898
        %v3900 = vpop.f32.mrf.mxu0
        %v3901 = vadd.f32 %v3644, %v3900
        %3902 = vdwg.mxu0
        %v3903 = vmax.f32 %v3199, 0.0
        %v3904 = vmax.f32 %v3201, 0.0
        %v3905 = vmax.f32 %v3713, 0.0
        %v3906 = vmax.f32 %v3715, 0.0
        %v3907 = vmax.f32 %v3205, 0.0
        %v3908 = vmax.f32 %v3207, 0.0
        %v3909 = vmax.f32 %v3719, 0.0
        %v3910 = vmax.f32 %v3721, 0.0
        %v3911 = vmax.f32 %v3211, 0.0
        %v3912 = vmax.f32 %v3213, 0.0
        %v3913 = vmax.f32 %v3725, 0.0
        %v3914 = vmax.f32 %v3727, 0.0
        %v3915 = vmax.f32 %v3217, 0.0
        %v3916 = vmax.f32 %v3219, 0.0
        %v3917 = vmax.f32 %v3731, 0.0
        %v3918 = vmax.f32 %v3733, 0.0
        %v3919 = vmax.f32 %v3223, 0.0
        %v3920 = vmax.f32 %v3225, 0.0
        %v3921 = vmax.f32 %v3737, 0.0
        %v3922 = vmax.f32 %v3739, 0.0
        %v3923 = vmax.f32 %v3229, 0.0
        %v3924 = vmax.f32 %v3231, 0.0
        %v3925 = vmax.f32 %v3743, 0.0
        %v3926 = vmax.f32 %v3745, 0.0
        %v3927 = vmax.f32 %v3235, 0.0
        %v3928 = vmax.f32 %v3237, 0.0
        %v3929 = vmax.f32 %v3749, 0.0
        %v3930 = vmax.f32 %v3751, 0.0
        %v3931 = vmax.f32 %v3241, 0.0
        %v3932 = vmax.f32 %v3243, 0.0
        %v3933 = vmax.f32 %v3755, 0.0
        %v3934 = vmax.f32 %v3757, 0.0
        %v3935 = vmax.f32 %v3247, 0.0
        %v3936 = vmax.f32 %v3249, 0.0
        %v3937 = vmax.f32 %v3761, 0.0
        %v3938 = vmax.f32 %v3763, 0.0
        %v3939 = vmax.f32 %v3253, 0.0
        %v3940 = vmax.f32 %v3255, 0.0
        %v3941 = vmax.f32 %v3767, 0.0
        %v3942 = vmax.f32 %v3769, 0.0
        %v3943 = vmax.f32 %v3259, 0.0
        %v3944 = vmax.f32 %v3261, 0.0
        %v3945 = vmax.f32 %v3773, 0.0
        %v3946 = vmax.f32 %v3775, 0.0
        %v3947 = vmax.f32 %v3265, 0.0
        %v3948 = vmax.f32 %v3267, 0.0
        %v3949 = vmax.f32 %v3779, 0.0
        %v3950 = vmax.f32 %v3781, 0.0
        %v3951 = vmax.f32 %v3271, 0.0
        %v3952 = vmax.f32 %v3273, 0.0
        %v3953 = vmax.f32 %v3785, 0.0
        %v3954 = vmax.f32 %v3787, 0.0
        %v3955 = vmax.f32 %v3277, 0.0
        %v3956 = vmax.f32 %v3279, 0.0
        %v3957 = vmax.f32 %v3791, 0.0
        %v3958 = vmax.f32 %v3793, 0.0
        %v3959 = vmax.f32 %v3283, 0.0
        %v3960 = vmax.f32 %v3285, 0.0
        %v3961 = vmax.f32 %v3797, 0.0
        %v3962 = vmax.f32 %v3799, 0.0
        %v3963 = vmax.f32 %v3289, 0.0
        %v3964 = vmax.f32 %v3291, 0.0
        %v3965 = vmax.f32 %v3803, 0.0
        %v3966 = vmax.f32 %v3805, 0.0
        %v3967 = vmax.f32 %v3295, 0.0
        %v3968 = vmax.f32 %v3297, 0.0
        %v3969 = vmax.f32 %v3809, 0.0
        %v3970 = vmax.f32 %v3811, 0.0
        %v3971 = vmax.f32 %v3301, 0.0
        %v3972 = vmax.f32 %v3303, 0.0
        %v3973 = vmax.f32 %v3815, 0.0
        %v3974 = vmax.f32 %v3817, 0.0
        %v3975 = vmax.f32 %v3307, 0.0
        %v3976 = vmax.f32 %v3309, 0.0
        %v3977 = vmax.f32 %v3821, 0.0
        %v3978 = vmax.f32 %v3823, 0.0
        %v3979 = vmax.f32 %v3313, 0.0
        %v3980 = vmax.f32 %v3315, 0.0
        %v3981 = vmax.f32 %v3827, 0.0
        %v3982 = vmax.f32 %v3829, 0.0
        %v3983 = vmax.f32 %v3319, 0.0
        %v3984 = vmax.f32 %v3321, 0.0
        %v3985 = vmax.f32 %v3833, 0.0
        %v3986 = vmax.f32 %v3835, 0.0
        %v3987 = vmax.f32 %v3325, 0.0
        %v3988 = vmax.f32 %v3327, 0.0
        %v3989 = vmax.f32 %v3839, 0.0
        %v3990 = vmax.f32 %v3841, 0.0
        %v3991 = vmax.f32 %v3331, 0.0
        %v3992 = vmax.f32 %v3333, 0.0
        %v3993 = vmax.f32 %v3845, 0.0
        %v3994 = vmax.f32 %v3847, 0.0
        %v3995 = vmax.f32 %v3337, 0.0
        %v3996 = vmax.f32 %v3339, 0.0
        %v3997 = vmax.f32 %v3851, 0.0
        %v3998 = vmax.f32 %v3853, 0.0
        %v3999 = vmax.f32 %v3343, 0.0
        %v4000 = vmax.f32 %v3345, 0.0
        %v4001 = vmax.f32 %v3857, 0.0
        %v4002 = vmax.f32 %v3859, 0.0
        %v4003 = vmax.f32 %v3349, 0.0
        %v4004 = vmax.f32 %v3351, 0.0
        %v4005 = vmax.f32 %v3863, 0.0
        %v4006 = vmax.f32 %v3865, 0.0
        %v4007 = vmax.f32 %v3355, 0.0
        %v4008 = vmax.f32 %v3357, 0.0
        %v4009 = vmax.f32 %v3869, 0.0
        %v4010 = vmax.f32 %v3871, 0.0
        %v4011 = vmax.f32 %v3361, 0.0
        %v4012 = vmax.f32 %v3363, 0.0
        %v4013 = vmax.f32 %v3875, 0.0
        %v4014 = vmax.f32 %v3877, 0.0
        %v4015 = vmax.f32 %v3367, 0.0
        %v4016 = vmax.f32 %v3369, 0.0
        %v4017 = vmax.f32 %v3881, 0.0
        %v4018 = vmax.f32 %v3883, 0.0
        %v4019 = vmax.f32 %v3373, 0.0
        %v4020 = vmax.f32 %v3375, 0.0
        %v4021 = vmax.f32 %v3887, 0.0
        %v4022 = vmax.f32 %v3889, 0.0
        %v4023 = vmax.f32 %v3379, 0.0
        %v4024 = vmax.f32 %v3381, 0.0
        %v4025 = vmax.f32 %v3893, 0.0
        %v4026 = vmax.f32 %v3895, 0.0
        %v4027 = vmax.f32 %v3385, 0.0
        %v4028 = vmax.f32 %v3387, 0.0
        %v4029 = vmax.f32 %v3899, 0.0
        %v4030 = vmax.f32 %v3901, 0.0
        %v4031 = vld [vmem:[%s7] sm:$0xff]
        %v4032 = vld [vmem:[%s7 + $0x8] sm:$0xff]
        %v4033 = vld [vmem:[%s7 + $0x10] sm:$0xff]
        %v4034 = vld [vmem:[%s7 + $0x18] sm:$0xff]
        %v4035 = vld [vmem:[%s7 + $0x20] sm:$0xff]
        %v4036 = vld [vmem:[%s7 + $0x28] sm:$0xff]
        %v4037 = vld [vmem:[%s7 + $0x30] sm:$0xff]
        %v4038 = vld [vmem:[%s7 + $0x38] sm:$0xff]
        %v4039 = vld [vmem:[%s7 + $0x40] sm:$0xff]
        %v4040 = vld [vmem:[%s7 + $0x48] sm:$0xff]
        %v4041 = vld [vmem:[%s7 + $0x50] sm:$0xff]
        %v4042 = vld [vmem:[%s7 + $0x58] sm:$0xff]
        %v4043 = vld [vmem:[%s7 + $0x60] sm:$0xff]
        %v4044 = vld [vmem:[%s7 + $0x68] sm:$0xff]
        %v4045 = vld [vmem:[%s7 + $0x70] sm:$0xff]
        %v4046 = vld [vmem:[%s7 + $0x78] sm:$0xff]
        %v4047 = vld [vmem:[%s7 + $0x80] sm:$0xff]
        %v4048 = vld [vmem:[%s7 + $0x88] sm:$0xff]
        %v4049 = vld [vmem:[%s7 + $0x90] sm:$0xff]
        %v4050 = vld [vmem:[%s7 + $0x98] sm:$0xff]
        %v4051 = vld [vmem:[%s7 + $0xa0] sm:$0xff]
        %v4052 = vld [vmem:[%s7 + $0xa8] sm:$0xff]
        %v4053 = vld [vmem:[%s7 + $0xb0] sm:$0xff]
        %v4054 = vld [vmem:[%s7 + $0xb8] sm:$0xff]
        %v4055 = vld [vmem:[%s7 + $0xc0] sm:$0xff]
        %v4056 = vld [vmem:[%s7 + $0xc8] sm:$0xff]
        %v4057 = vld [vmem:[%s7 + $0xd0] sm:$0xff]
        %v4058 = vld [vmem:[%s7 + $0xd8] sm:$0xff]
        %v4059 = vld [vmem:[%s7 + $0xe0] sm:$0xff]
        %v4060 = vld [vmem:[%s7 + $0xe8] sm:$0xff]
        %v4061 = vld [vmem:[%s7 + $0xf0] sm:$0xff]
        %v4062 = vld [vmem:[%s7 + $0xf8] sm:$0xff]
        %v4063 = vld [vmem:[%s7 + $0x100] sm:$0xff]
        %v4064 = vld [vmem:[%s7 + $0x108] sm:$0xff]
        %v4065 = vld [vmem:[%s7 + $0x110] sm:$0xff]
        %v4066 = vld [vmem:[%s7 + $0x118] sm:$0xff]
        %v4067 = vld [vmem:[%s7 + $0x120] sm:$0xff]
        %v4068 = vld [vmem:[%s7 + $0x128] sm:$0xff]
        %v4069 = vld [vmem:[%s7 + $0x130] sm:$0xff]
        %v4070 = vld [vmem:[%s7 + $0x138] sm:$0xff]
        %v4071 = vld [vmem:[%s7 + $0x140] sm:$0xff]
        %v4072 = vld [vmem:[%s7 + $0x148] sm:$0xff]
        %v4073 = vld [vmem:[%s7 + $0x150] sm:$0xff]
        %v4074 = vld [vmem:[%s7 + $0x158] sm:$0xff]
        %v4075 = vld [vmem:[%s7 + $0x160] sm:$0xff]
        %v4076 = vld [vmem:[%s7 + $0x168] sm:$0xff]
        %v4077 = vld [vmem:[%s7 + $0x170] sm:$0xff]
        %v4078 = vld [vmem:[%s7 + $0x178] sm:$0xff]
        %v4079 = vld [vmem:[%s7 + $0x180] sm:$0xff]
        %v4080 = vld [vmem:[%s7 + $0x188] sm:$0xff]
        %v4081 = vld [vmem:[%s7 + $0x190] sm:$0xff]
        %v4082 = vld [vmem:[%s7 + $0x198] sm:$0xff]
        %v4083 = vld [vmem:[%s7 + $0x1a0] sm:$0xff]
        %v4084 = vld [vmem:[%s7 + $0x1a8] sm:$0xff]
        %v4085 = vld [vmem:[%s7 + $0x1b0] sm:$0xff]
        %v4086 = vld [vmem:[%s7 + $0x1b8] sm:$0xff]
        %v4087 = vld [vmem:[%s7 + $0x1c0] sm:$0xff]
        %v4088 = vld [vmem:[%s7 + $0x1c8] sm:$0xff]
        %v4089 = vld [vmem:[%s7 + $0x1d0] sm:$0xff]
        %v4090 = vld [vmem:[%s7 + $0x1d8] sm:$0xff]
        %v4091 = vld [vmem:[%s7 + $0x1e0] sm:$0xff]
        %v4092 = vld [vmem:[%s7 + $0x1e8] sm:$0xff]
        %v4093 = vld [vmem:[%s7 + $0x1f0] sm:$0xff]
        %v4094 = vld [vmem:[%s7 + $0x1f8] sm:$0xff]
        %v4095 = vld [vmem:[%s8] sm:$0x1]
        %v4097 = vlaneseq
        %v4098 = vshrl.u32 %v4097, 7
        %v4099 = vsub.s32 0, %v4098
        %v4100 = vrot.slane %v4095, %v4099
        %4102 = vmatprep.subr.mxu0 0.0
        %4103 = vmatpush1.msra.mxu0 %v4046
        %4104 = vmatprep.subr.mxu0 0.0
        %4105 = vmatpush1.msra.mxu0 %v4045
        %4106 = vmatprep.subr.mxu0 0.0
        %4107 = vmatpush1.msra.mxu0 %v4044
        %4108 = vmatprep.subr.mxu0 0.0
        %4109 = vmatpush1.msra.mxu0 %v4043
        %4110 = vmatprep.subr.mxu0 0.0
        %4111 = vmatpush1.msra.mxu0 %v4042
        %4112 = vmatprep.subr.mxu0 0.0
        %4113 = vmatpush1.msra.mxu0 %v4041
        %4114 = vmatprep.subr.mxu0 0.0
        %4115 = vmatpush1.msra.mxu0 %v4040
        %4116 = vmatprep.subr.mxu0 0.0
        %4117 = vmatpush1.msra.mxu0 %v4039
        %4118 = vmatprep.subr.mxu0 0.0
        %4119 = vmatpush1.msra.mxu0 %v4038
        %4120 = vmatprep.subr.mxu0 0.0
        %4121 = vmatpush1.msra.mxu0 %v4037
        %4122 = vmatprep.subr.mxu0 0.0
        %4123 = vmatpush1.msra.mxu0 %v4036
        %4124 = vmatprep.subr.mxu0 0.0
        %4125 = vmatpush1.msra.mxu0 %v4035
        %4126 = vmatprep.subr.mxu0 0.0
        %4127 = vmatpush1.msra.mxu0 %v4034
        %4128 = vmatprep.subr.mxu0 0.0
        %4129 = vmatpush1.msra.mxu0 %v4033
        %4130 = vmatprep.subr.mxu0 0.0
        %4131 = vmatpush1.msra.mxu0 %v4032
        %4132 = vmatprep.subr.mxu0 0.0
        %4133 = vmatpush1.msra.mxu0 %v4031
        %4134 = vmatprep.subr.mxu0 0.0
        %4135 = vmatpush2.msra.mxu0 %v4062
        %4136 = vmatprep.subr.mxu0 0.0
        %4137 = vmatpush2.msra.mxu0 %v4061
        %4138 = vmatprep.subr.mxu0 0.0
        %4139 = vmatpush2.msra.mxu0 %v4060
        %4140 = vmatprep.subr.mxu0 0.0
        %4141 = vmatpush2.msra.mxu0 %v4059
        %4142 = vmatprep.subr.mxu0 0.0
        %4143 = vmatpush2.msra.mxu0 %v4058
        %4144 = vmatprep.subr.mxu0 0.0
        %4145 = vmatpush2.msra.mxu0 %v4057
        %4146 = vmatprep.subr.mxu0 0.0
        %4147 = vmatpush2.msra.mxu0 %v4056
        %4148 = vmatprep.subr.mxu0 0.0
        %4149 = vmatpush2.msra.mxu0 %v4055
        %4150 = vmatprep.subr.mxu0 0.0
        %4151 = vmatpush2.msra.mxu0 %v4054
        %4152 = vmatprep.subr.mxu0 0.0
        %4153 = vmatpush2.msra.mxu0 %v4053
        %4154 = vmatprep.subr.mxu0 0.0
        %4155 = vmatpush2.msra.mxu0 %v4052
        %4156 = vmatprep.subr.mxu0 0.0
        %4157 = vmatpush2.msra.mxu0 %v4051
        %4158 = vmatprep.subr.mxu0 0.0
        %4159 = vmatpush2.msra.mxu0 %v4050
        %4160 = vmatprep.subr.mxu0 0.0
        %4161 = vmatpush2.msra.mxu0 %v4049
        %4162 = vmatprep.subr.mxu0 0.0
        %4163 = vmatpush2.msra.mxu0 %v4048
        %4164 = vmatprep.subr.mxu0 0.0
        %4165 = vmatpush2.msra.mxu0 %v4047
        %4166 = vmatprep.mubr.f32.mxu0 %v3904
        %4167 = vmatmul.mubr.f32.gmra.mxu0 %v3903
        %v4168 = vpop.f32.mrf.mxu0
        %v4169 = vadd.f32 %v4100, %v4168
        %v4170 = vpop.f32.mrf.mxu0
        %4171 = vmatprep.mubr.f32.mxu0 %v3908
        %4172 = vmatmul.mubr.f32.gmra.mxu0 %v3907
        %v4173 = vpop.f32.mrf.mxu0
        %v4174 = vadd.f32 %v4100, %v4173
        %v4175 = vpop.f32.mrf.mxu0
        %4176 = vmatprep.mubr.f32.mxu0 %v3912
        %4177 = vmatmul.mubr.f32.gmra.mxu0 %v3911
        %v4178 = vpop.f32.mrf.mxu0
        %v4179 = vadd.f32 %v4100, %v4178
        %v4180 = vpop.f32.mrf.mxu0
        %4181 = vmatprep.mubr.f32.mxu0 %v3916
        %4182 = vmatmul.mubr.f32.gmra.mxu0 %v3915
        %v4183 = vpop.f32.mrf.mxu0
        %v4184 = vadd.f32 %v4100, %v4183
        %v4185 = vpop.f32.mrf.mxu0
        %4186 = vmatprep.mubr.f32.mxu0 %v3920
        %4187 = vmatmul.mubr.f32.gmra.mxu0 %v3919
        %v4188 = vpop.f32.mrf.mxu0
        %v4189 = vadd.f32 %v4100, %v4188
        %v4190 = vpop.f32.mrf.mxu0
        %4191 = vmatprep.mubr.f32.mxu0 %v3924
        %4192 = vmatmul.mubr.f32.gmra.mxu0 %v3923
        %v4193 = vpop.f32.mrf.mxu0
        %v4194 = vadd.f32 %v4100, %v4193
        %v4195 = vpop.f32.mrf.mxu0
        %4196 = vmatprep.mubr.f32.mxu0 %v3928
        %4197 = vmatmul.mubr.f32.gmra.mxu0 %v3927
        %v4198 = vpop.f32.mrf.mxu0
        %v4199 = vadd.f32 %v4100, %v4198
        %v4200 = vpop.f32.mrf.mxu0
        %4201 = vmatprep.mubr.f32.mxu0 %v3932
        %4202 = vmatmul.mubr.f32.gmra.mxu0 %v3931
        %v4203 = vpop.f32.mrf.mxu0
        %v4204 = vadd.f32 %v4100, %v4203
        %v4205 = vpop.f32.mrf.mxu0
        %4206 = vmatprep.mubr.f32.mxu0 %v3936
        %4207 = vmatmul.mubr.f32.gmra.mxu0 %v3935
        %v4208 = vpop.f32.mrf.mxu0
        %v4209 = vadd.f32 %v4100, %v4208
        %v4210 = vpop.f32.mrf.mxu0
        %4211 = vmatprep.mubr.f32.mxu0 %v3940
        %4212 = vmatmul.mubr.f32.gmra.mxu0 %v3939
        %v4213 = vpop.f32.mrf.mxu0
        %v4214 = vadd.f32 %v4100, %v4213
        %v4215 = vpop.f32.mrf.mxu0
        %4216 = vmatprep.mubr.f32.mxu0 %v3944
        %4217 = vmatmul.mubr.f32.gmra.mxu0 %v3943
        %v4218 = vpop.f32.mrf.mxu0
        %v4219 = vadd.f32 %v4100, %v4218
        %v4220 = vpop.f32.mrf.mxu0
        %4221 = vmatprep.mubr.f32.mxu0 %v3948
        %4222 = vmatmul.mubr.f32.gmra.mxu0 %v3947
        %v4223 = vpop.f32.mrf.mxu0
        %v4224 = vadd.f32 %v4100, %v4223
        %v4225 = vpop.f32.mrf.mxu0
        %4226 = vmatprep.mubr.f32.mxu0 %v3952
        %4227 = vmatmul.mubr.f32.gmra.mxu0 %v3951
        %v4228 = vpop.f32.mrf.mxu0
        %v4229 = vadd.f32 %v4100, %v4228
        %v4230 = vpop.f32.mrf.mxu0
        %4231 = vmatprep.mubr.f32.mxu0 %v3956
        %4232 = vmatmul.mubr.f32.gmra.mxu0 %v3955
        %v4233 = vpop.f32.mrf.mxu0
        %v4234 = vadd.f32 %v4100, %v4233
        %v4235 = vpop.f32.mrf.mxu0
        %4236 = vmatprep.mubr.f32.mxu0 %v3960
        %4237 = vmatmul.mubr.f32.gmra.mxu0 %v3959
        %v4238 = vpop.f32.mrf.mxu0
        %v4239 = vadd.f32 %v4100, %v4238
        %v4240 = vpop.f32.mrf.mxu0
        %4241 = vmatprep.mubr.f32.mxu0 %v3964
        %4242 = vmatmul.mubr.f32.gmra.mxu0 %v3963
        %v4243 = vpop.f32.mrf.mxu0
        %v4244 = vadd.f32 %v4100, %v4243
        %v4245 = vpop.f32.mrf.mxu0
        %4246 = vmatprep.mubr.f32.mxu0 %v3968
        %4247 = vmatmul.mubr.f32.gmra.mxu0 %v3967
        %v4248 = vpop.f32.mrf.mxu0
        %v4249 = vadd.f32 %v4100, %v4248
        %v4250 = vpop.f32.mrf.mxu0
        %4251 = vmatprep.mubr.f32.mxu0 %v3972
        %4252 = vmatmul.mubr.f32.gmra.mxu0 %v3971
        %v4253 = vpop.f32.mrf.mxu0
        %v4254 = vadd.f32 %v4100, %v4253
        %v4255 = vpop.f32.mrf.mxu0
        %4256 = vmatprep.mubr.f32.mxu0 %v3976
        %4257 = vmatmul.mubr.f32.gmra.mxu0 %v3975
        %v4258 = vpop.f32.mrf.mxu0
        %v4259 = vadd.f32 %v4100, %v4258
        %v4260 = vpop.f32.mrf.mxu0
        %4261 = vmatprep.mubr.f32.mxu0 %v3980
        %4262 = vmatmul.mubr.f32.gmra.mxu0 %v3979
        %v4263 = vpop.f32.mrf.mxu0
        %v4264 = vadd.f32 %v4100, %v4263
        %v4265 = vpop.f32.mrf.mxu0
        %4266 = vmatprep.mubr.f32.mxu0 %v3984
        %4267 = vmatmul.mubr.f32.gmra.mxu0 %v3983
        %v4268 = vpop.f32.mrf.mxu0
        %v4269 = vadd.f32 %v4100, %v4268
        %v4270 = vpop.f32.mrf.mxu0
        %4271 = vmatprep.mubr.f32.mxu0 %v3988
        %4272 = vmatmul.mubr.f32.gmra.mxu0 %v3987
        %v4273 = vpop.f32.mrf.mxu0
        %v4274 = vadd.f32 %v4100, %v4273
        %v4275 = vpop.f32.mrf.mxu0
        %4276 = vmatprep.mubr.f32.mxu0 %v3992
        %4277 = vmatmul.mubr.f32.gmra.mxu0 %v3991
        %v4278 = vpop.f32.mrf.mxu0
        %v4279 = vadd.f32 %v4100, %v4278
        %v4280 = vpop.f32.mrf.mxu0
        %4281 = vmatprep.mubr.f32.mxu0 %v3996
        %4282 = vmatmul.mubr.f32.gmra.mxu0 %v3995
        %v4283 = vpop.f32.mrf.mxu0
        %v4284 = vadd.f32 %v4100, %v4283
        %v4285 = vpop.f32.mrf.mxu0
        %4286 = vmatprep.mubr.f32.mxu0 %v4000
        %4287 = vmatmul.mubr.f32.gmra.mxu0 %v3999
        %v4288 = vpop.f32.mrf.mxu0
        %v4289 = vadd.f32 %v4100, %v4288
        %v4290 = vpop.f32.mrf.mxu0
        %4291 = vmatprep.mubr.f32.mxu0 %v4004
        %4292 = vmatmul.mubr.f32.gmra.mxu0 %v4003
        %v4293 = vpop.f32.mrf.mxu0
        %v4294 = vadd.f32 %v4100, %v4293
        %v4295 = vpop.f32.mrf.mxu0
        %4296 = vmatprep.mubr.f32.mxu0 %v4008
        %4297 = vmatmul.mubr.f32.gmra.mxu0 %v4007
        %v4298 = vpop.f32.mrf.mxu0
        %v4299 = vadd.f32 %v4100, %v4298
        %v4300 = vpop.f32.mrf.mxu0
        %4301 = vmatprep.mubr.f32.mxu0 %v4012
        %4302 = vmatmul.mubr.f32.gmra.mxu0 %v4011
        %v4303 = vpop.f32.mrf.mxu0
        %v4304 = vadd.f32 %v4100, %v4303
        %v4305 = vpop.f32.mrf.mxu0
        %4306 = vmatprep.mubr.f32.mxu0 %v4016
        %4307 = vmatmul.mubr.f32.gmra.mxu0 %v4015
        %v4308 = vpop.f32.mrf.mxu0
        %v4309 = vadd.f32 %v4100, %v4308
        %v4310 = vpop.f32.mrf.mxu0
        %4311 = vmatprep.mubr.f32.mxu0 %v4020
        %4312 = vmatmul.mubr.f32.gmra.mxu0 %v4019
        %v4313 = vpop.f32.mrf.mxu0
        %v4314 = vadd.f32 %v4100, %v4313
        %v4315 = vpop.f32.mrf.mxu0
        %4316 = vmatprep.mubr.f32.mxu0 %v4024
        %4317 = vmatmul.mubr.f32.gmra.mxu0 %v4023
        %v4318 = vpop.f32.mrf.mxu0
        %v4319 = vadd.f32 %v4100, %v4318
        %v4320 = vpop.f32.mrf.mxu0
        %4321 = vmatprep.mubr.f32.mxu0 %v4028
        %4322 = vmatmul.mubr.f32.gmra.mxu0 %v4027
        %v4323 = vpop.f32.mrf.mxu0
        %v4324 = vadd.f32 %v4100, %v4323
        %v4325 = vpop.f32.mrf.mxu0
        %4326 = vdwg.mxu0
        %4327 = vmatprep.subr.mxu0 0.0
        %4328 = vmatpush1.msra.mxu0 %v4078
        %4329 = vmatprep.subr.mxu0 0.0
        %4330 = vmatpush1.msra.mxu0 %v4077
        %4331 = vmatprep.subr.mxu0 0.0
        %4332 = vmatpush1.msra.mxu0 %v4076
        %4333 = vmatprep.subr.mxu0 0.0
        %4334 = vmatpush1.msra.mxu0 %v4075
        %4335 = vmatprep.subr.mxu0 0.0
        %4336 = vmatpush1.msra.mxu0 %v4074
        %4337 = vmatprep.subr.mxu0 0.0
        %4338 = vmatpush1.msra.mxu0 %v4073
        %4339 = vmatprep.subr.mxu0 0.0
        %4340 = vmatpush1.msra.mxu0 %v4072
        %4341 = vmatprep.subr.mxu0 0.0
        %4342 = vmatpush1.msra.mxu0 %v4071
        %4343 = vmatprep.subr.mxu0 0.0
        %4344 = vmatpush1.msra.mxu0 %v4070
        %4345 = vmatprep.subr.mxu0 0.0
        %4346 = vmatpush1.msra.mxu0 %v4069
        %4347 = vmatprep.subr.mxu0 0.0
        %4348 = vmatpush1.msra.mxu0 %v4068
        %4349 = vmatprep.subr.mxu0 0.0
        %4350 = vmatpush1.msra.mxu0 %v4067
        %4351 = vmatprep.subr.mxu0 0.0
        %4352 = vmatpush1.msra.mxu0 %v4066
        %4353 = vmatprep.subr.mxu0 0.0
        %4354 = vmatpush1.msra.mxu0 %v4065
        %4355 = vmatprep.subr.mxu0 0.0
        %4356 = vmatpush1.msra.mxu0 %v4064
        %4357 = vmatprep.subr.mxu0 0.0
        %4358 = vmatpush1.msra.mxu0 %v4063
        %4359 = vmatprep.subr.mxu0 0.0
        %4360 = vmatpush2.msra.mxu0 %v4094
        %4361 = vmatprep.subr.mxu0 0.0
        %4362 = vmatpush2.msra.mxu0 %v4093
        %4363 = vmatprep.subr.mxu0 0.0
        %4364 = vmatpush2.msra.mxu0 %v4092
        %4365 = vmatprep.subr.mxu0 0.0
        %4366 = vmatpush2.msra.mxu0 %v4091
        %4367 = vmatprep.subr.mxu0 0.0
        %4368 = vmatpush2.msra.mxu0 %v4090
        %4369 = vmatprep.subr.mxu0 0.0
        %4370 = vmatpush2.msra.mxu0 %v4089
        %4371 = vmatprep.subr.mxu0 0.0
        %4372 = vmatpush2.msra.mxu0 %v4088
        %4373 = vmatprep.subr.mxu0 0.0
        %4374 = vmatpush2.msra.mxu0 %v4087
        %4375 = vmatprep.subr.mxu0 0.0
        %4376 = vmatpush2.msra.mxu0 %v4086
        %4377 = vmatprep.subr.mxu0 0.0
        %4378 = vmatpush2.msra.mxu0 %v4085
        %4379 = vmatprep.subr.mxu0 0.0
        %4380 = vmatpush2.msra.mxu0 %v4084
        %4381 = vmatprep.subr.mxu0 0.0
        %4382 = vmatpush2.msra.mxu0 %v4083
        %4383 = vmatprep.subr.mxu0 0.0
        %4384 = vmatpush2.msra.mxu0 %v4082
        %4385 = vmatprep.subr.mxu0 0.0
        %4386 = vmatpush2.msra.mxu0 %v4081
        %4387 = vmatprep.subr.mxu0 0.0
        %4388 = vmatpush2.msra.mxu0 %v4080
        %4389 = vmatprep.subr.mxu0 0.0
        %4390 = vmatpush2.msra.mxu0 %v4079
        %4391 = vmatprep.mubr.f32.mxu0 %v3906
        %4392 = vmatmul.mubr.f32.gmra.mxu0 %v3905
        %v4393 = vpop.f32.mrf.mxu0
        %v4394 = vadd.f32 %v4169, %v4393
        %v4395 = vpop.f32.mrf.mxu0
        %4396 = vmatprep.mubr.f32.mxu0 %v3910
        %4397 = vmatmul.mubr.f32.gmra.mxu0 %v3909
        %v4398 = vpop.f32.mrf.mxu0
        %v4399 = vadd.f32 %v4174, %v4398
        %v4400 = vpop.f32.mrf.mxu0
        %4401 = vmatprep.mubr.f32.mxu0 %v3914
        %4402 = vmatmul.mubr.f32.gmra.mxu0 %v3913
        %v4403 = vpop.f32.mrf.mxu0
        %v4404 = vadd.f32 %v4179, %v4403
        %v4405 = vpop.f32.mrf.mxu0
        %4406 = vmatprep.mubr.f32.mxu0 %v3918
        %4407 = vmatmul.mubr.f32.gmra.mxu0 %v3917
        %v4408 = vpop.f32.mrf.mxu0
        %v4409 = vadd.f32 %v4184, %v4408
        %v4410 = vpop.f32.mrf.mxu0
        %4411 = vmatprep.mubr.f32.mxu0 %v3922
        %4412 = vmatmul.mubr.f32.gmra.mxu0 %v3921
        %v4413 = vpop.f32.mrf.mxu0
        %v4414 = vadd.f32 %v4189, %v4413
        %v4415 = vpop.f32.mrf.mxu0
        %4416 = vmatprep.mubr.f32.mxu0 %v3926
        %4417 = vmatmul.mubr.f32.gmra.mxu0 %v3925
        %v4418 = vpop.f32.mrf.mxu0
        %v4419 = vadd.f32 %v4194, %v4418
        %v4420 = vpop.f32.mrf.mxu0
        %4421 = vmatprep.mubr.f32.mxu0 %v3930
        %4422 = vmatmul.mubr.f32.gmra.mxu0 %v3929
        %v4423 = vpop.f32.mrf.mxu0
        %v4424 = vadd.f32 %v4199, %v4423
        %v4425 = vpop.f32.mrf.mxu0
        %4426 = vmatprep.mubr.f32.mxu0 %v3934
        %4427 = vmatmul.mubr.f32.gmra.mxu0 %v3933
        %v4428 = vpop.f32.mrf.mxu0
        %v4429 = vadd.f32 %v4204, %v4428
        %v4430 = vpop.f32.mrf.mxu0
        %4431 = vmatprep.mubr.f32.mxu0 %v3938
        %4432 = vmatmul.mubr.f32.gmra.mxu0 %v3937
        %v4433 = vpop.f32.mrf.mxu0
        %v4434 = vadd.f32 %v4209, %v4433
        %v4435 = vpop.f32.mrf.mxu0
        %4436 = vmatprep.mubr.f32.mxu0 %v3942
        %4437 = vmatmul.mubr.f32.gmra.mxu0 %v3941
        %v4438 = vpop.f32.mrf.mxu0
        %v4439 = vadd.f32 %v4214, %v4438
        %v4440 = vpop.f32.mrf.mxu0
        %4441 = vmatprep.mubr.f32.mxu0 %v3946
        %4442 = vmatmul.mubr.f32.gmra.mxu0 %v3945
        %v4443 = vpop.f32.mrf.mxu0
        %v4444 = vadd.f32 %v4219, %v4443
        %v4445 = vpop.f32.mrf.mxu0
        %4446 = vmatprep.mubr.f32.mxu0 %v3950
        %4447 = vmatmul.mubr.f32.gmra.mxu0 %v3949
        %v4448 = vpop.f32.mrf.mxu0
        %v4449 = vadd.f32 %v4224, %v4448
        %v4450 = vpop.f32.mrf.mxu0
        %4451 = vmatprep.mubr.f32.mxu0 %v3954
        %4452 = vmatmul.mubr.f32.gmra.mxu0 %v3953
        %v4453 = vpop.f32.mrf.mxu0
        %v4454 = vadd.f32 %v4229, %v4453
        %v4455 = vpop.f32.mrf.mxu0
        %4456 = vmatprep.mubr.f32.mxu0 %v3958
        %4457 = vmatmul.mubr.f32.gmra.mxu0 %v3957
        %v4458 = vpop.f32.mrf.mxu0
        %v4459 = vadd.f32 %v4234, %v4458
        %v4460 = vpop.f32.mrf.mxu0
        %4461 = vmatprep.mubr.f32.mxu0 %v3962
        %4462 = vmatmul.mubr.f32.gmra.mxu0 %v3961
        %v4463 = vpop.f32.mrf.mxu0
        %v4464 = vadd.f32 %v4239, %v4463
        %v4465 = vpop.f32.mrf.mxu0
        %4466 = vmatprep.mubr.f32.mxu0 %v3966
        %4467 = vmatmul.mubr.f32.gmra.mxu0 %v3965
        %v4468 = vpop.f32.mrf.mxu0
        %v4469 = vadd.f32 %v4244, %v4468
        %v4470 = vpop.f32.mrf.mxu0
        %4471 = vmatprep.mubr.f32.mxu0 %v3970
        %4472 = vmatmul.mubr.f32.gmra.mxu0 %v3969
        %v4473 = vpop.f32.mrf.mxu0
        %v4474 = vadd.f32 %v4249, %v4473
        %v4475 = vpop.f32.mrf.mxu0
        %4476 = vmatprep.mubr.f32.mxu0 %v3974
        %4477 = vmatmul.mubr.f32.gmra.mxu0 %v3973
        %v4478 = vpop.f32.mrf.mxu0
        %v4479 = vadd.f32 %v4254, %v4478
        %v4480 = vpop.f32.mrf.mxu0
        %4481 = vmatprep.mubr.f32.mxu0 %v3978
        %4482 = vmatmul.mubr.f32.gmra.mxu0 %v3977
        %v4483 = vpop.f32.mrf.mxu0
        %v4484 = vadd.f32 %v4259, %v4483
        %v4485 = vpop.f32.mrf.mxu0
        %4486 = vmatprep.mubr.f32.mxu0 %v3982
        %4487 = vmatmul.mubr.f32.gmra.mxu0 %v3981
        %v4488 = vpop.f32.mrf.mxu0
        %v4489 = vadd.f32 %v4264, %v4488
        %v4490 = vpop.f32.mrf.mxu0
        %4491 = vmatprep.mubr.f32.mxu0 %v3986
        %4492 = vmatmul.mubr.f32.gmra.mxu0 %v3985
        %v4493 = vpop.f32.mrf.mxu0
        %v4494 = vadd.f32 %v4269, %v4493
        %v4495 = vpop.f32.mrf.mxu0
        %4496 = vmatprep.mubr.f32.mxu0 %v3990
        %4497 = vmatmul.mubr.f32.gmra.mxu0 %v3989
        %v4498 = vpop.f32.mrf.mxu0
        %v4499 = vadd.f32 %v4274, %v4498
        %v4500 = vpop.f32.mrf.mxu0
        %4501 = vmatprep.mubr.f32.mxu0 %v3994
        %4502 = vmatmul.mubr.f32.gmra.mxu0 %v3993
        %v4503 = vpop.f32.mrf.mxu0
        %v4504 = vadd.f32 %v4279, %v4503
        %v4505 = vpop.f32.mrf.mxu0
        %4506 = vmatprep.mubr.f32.mxu0 %v3998
        %4507 = vmatmul.mubr.f32.gmra.mxu0 %v3997
        %v4508 = vpop.f32.mrf.mxu0
        %v4509 = vadd.f32 %v4284, %v4508
        %v4510 = vpop.f32.mrf.mxu0
        %4511 = vmatprep.mubr.f32.mxu0 %v4002
        %4512 = vmatmul.mubr.f32.gmra.mxu0 %v4001
        %v4513 = vpop.f32.mrf.mxu0
        %v4514 = vadd.f32 %v4289, %v4513
        %v4515 = vpop.f32.mrf.mxu0
        %4516 = vmatprep.mubr.f32.mxu0 %v4006
        %4517 = vmatmul.mubr.f32.gmra.mxu0 %v4005
        %v4518 = vpop.f32.mrf.mxu0
        %v4519 = vadd.f32 %v4294, %v4518
        %v4520 = vpop.f32.mrf.mxu0
        %4521 = vmatprep.mubr.f32.mxu0 %v4010
        %4522 = vmatmul.mubr.f32.gmra.mxu0 %v4009
        %v4523 = vpop.f32.mrf.mxu0
        %v4524 = vadd.f32 %v4299, %v4523
        %v4525 = vpop.f32.mrf.mxu0
        %4526 = vmatprep.mubr.f32.mxu0 %v4014
        %4527 = vmatmul.mubr.f32.gmra.mxu0 %v4013
        %v4528 = vpop.f32.mrf.mxu0
        %v4529 = vadd.f32 %v4304, %v4528
        %v4530 = vpop.f32.mrf.mxu0
        %4531 = vmatprep.mubr.f32.mxu0 %v4018
        %4532 = vmatmul.mubr.f32.gmra.mxu0 %v4017
        %v4533 = vpop.f32.mrf.mxu0
        %v4534 = vadd.f32 %v4309, %v4533
        %v4535 = vpop.f32.mrf.mxu0
        %4536 = vmatprep.mubr.f32.mxu0 %v4022
        %4537 = vmatmul.mubr.f32.gmra.mxu0 %v4021
        %v4538 = vpop.f32.mrf.mxu0
        %v4539 = vadd.f32 %v4314, %v4538
        %v4540 = vpop.f32.mrf.mxu0
        %4541 = vmatprep.mubr.f32.mxu0 %v4026
        %4542 = vmatmul.mubr.f32.gmra.mxu0 %v4025
        %v4543 = vpop.f32.mrf.mxu0
        %v4544 = vadd.f32 %v4319, %v4543
        %v4545 = vpop.f32.mrf.mxu0
        %4546 = vmatprep.mubr.f32.mxu0 %v4030
        %4547 = vmatmul.mubr.f32.gmra.mxu0 %v4029
        %v4548 = vpop.f32.mrf.mxu0
        %v4549 = vadd.f32 %v4324, %v4548
        %v4550 = vpop.f32.mrf.mxu0
        %4551 = vdwg.mxu0
        %4552 = vst [vmem:[%s364] sm:$0xff] %v4394
        %4553 = vst [vmem:[%s364 + $0x8] sm:$0xff] %v4399
        %4554 = vst [vmem:[%s364 + $0x10] sm:$0xff] %v4404
        %4555 = vst [vmem:[%s364 + $0x18] sm:$0xff] %v4409
        %4556 = vst [vmem:[%s364 + $0x20] sm:$0xff] %v4414
        %4557 = vst [vmem:[%s364 + $0x28] sm:$0xff] %v4419
        %4558 = vst [vmem:[%s364 + $0x30] sm:$0xff] %v4424
        %4559 = vst [vmem:[%s364 + $0x38] sm:$0xff] %v4429
        %4560 = vst [vmem:[%s364 + $0x40] sm:$0xff] %v4434
        %4561 = vst [vmem:[%s364 + $0x48] sm:$0xff] %v4439
        %4562 = vst [vmem:[%s364 + $0x50] sm:$0xff] %v4444
        %4563 = vst [vmem:[%s364 + $0x58] sm:$0xff] %v4449
        %4564 = vst [vmem:[%s364 + $0x60] sm:$0xff] %v4454
        %4565 = vst [vmem:[%s364 + $0x68] sm:$0xff] %v4459
        %4566 = vst [vmem:[%s364 + $0x70] sm:$0xff] %v4464
        %4567 = vst [vmem:[%s364 + $0x78] sm:$0xff] %v4469
        %4568 = vst [vmem:[%s364 + $0x80] sm:$0xff] %v4474
        %4569 = vst [vmem:[%s364 + $0x88] sm:$0xff] %v4479
        %4570 = vst [vmem:[%s364 + $0x90] sm:$0xff] %v4484
        %4571 = vst [vmem:[%s364 + $0x98] sm:$0xff] %v4489
        %4572 = vst [vmem:[%s364 + $0xa0] sm:$0xff] %v4494
        %4573 = vst [vmem:[%s364 + $0xa8] sm:$0xff] %v4499
        %4574 = vst [vmem:[%s364 + $0xb0] sm:$0xff] %v4504
        %4575 = vst [vmem:[%s364 + $0xb8] sm:$0xff] %v4509
        %4576 = vst [vmem:[%s364 + $0xc0] sm:$0xff] %v4514
        %4577 = vst [vmem:[%s364 + $0xc8] sm:$0xff] %v4519
        %4578 = vst [vmem:[%s364 + $0xd0] sm:$0xff] %v4524
        %4579 = vst [vmem:[%s364 + $0xd8] sm:$0xff] %v4529
        %4580 = vst [vmem:[%s364 + $0xe0] sm:$0xff] %v4534
        %4581 = vst [vmem:[%s364 + $0xe8] sm:$0xff] %v4539
        %4582 = vst [vmem:[%s364 + $0xf0] sm:$0xff] %v4544
        %4583 = vst [vmem:[%s364 + $0xf8] sm:$0xff] %v4549
        %s4584 = smul.u32 32, %s22
        %p4585 = scmp.lt.s32.totalorder %s4584, 63
        %s4586 = scalar_select %p4585, %s4584, 63
        %s4587 = smul.addr %s4586, 8
        %s4588 = scalar_lea.vmem %s9, %s4587
        // Predicated region
        $region65: #{mlp_diffusion.1} parent=55 // pred_check
          %p4589 = pneg %p234
        $region66: #{mlp_diffusion.1} parent=55 // pred_check_branch
          %4591 = sbr.rel (%p4589) target = $region68
        $region67: #{mlp_diffusion.1} parent=55 // pred_region
          %s4592 = smul.u32 32, %s22
        $region68: #{mlp_diffusion.1} parent=55 // pred_fallthru
          _
      $region56: #{mlp_diffusion.1} parent=5 // pred_fallthru
        _
      %p4593 = scmp.le.s32.totalorder 2, %s17
      // Predicated region
      $region69: #{mlp_diffusion.1} parent=5 // pred_check
        %p4594 = pneg %p4593
      $region70: #{mlp_diffusion.1} parent=5 // pred_check_branch
        %4596 = sbr.rel (%p4594) target = $region72
      $region71: #{mlp_diffusion.1} parent=5 // pred_region
        %s4597 = ssub.s32 %s17, 2
        // Predicated region
        $region73: #{mlp_diffusion.1} parent=71 // pred_check
          %p4598 = pneg %p240
        $region74: #{mlp_diffusion.1} parent=71 // pred_check_branch
          %4600 = sbr.rel (%p4598) target = $region76
        $region75: #{mlp_diffusion.1} parent=71 // pred_region
          %s4601 = smul.u32 32, %s23
          %p4602 = scmp.lt.s32.totalorder %s4601, 63
          %s4603 = scalar_select %p4602, %s4601, 63
          %s4604 = smul.addr %s4603, 8
          %s4605 = scalar_lea.vmem %s9, %s4604
        $region76: #{mlp_diffusion.1} parent=71 // pred_fallthru
          _
      $region72: #{mlp_diffusion.1} parent=5 // pred_fallthru
        _
    $region6: #{mlp_diffusion.1} parent=1 // loop_footer
      %s21 = sadd.s32 1, %s17
    $region7: #{mlp_diffusion.1} parent=1 // loop_footer_branch
      %16 = sbr.rel target = $region3
    $region8: #{mlp_diffusion.1} parent=1 // loop_exit
      _
    %4606 = vsyncpa [#allocation3], 1
    %s4607 = scalar_lea.sflag [#allocation3], 1
    %4608 = vsyncpa %s4607, 1
    %4609 = vsyncpa [#allocation5], 1

</llo_original>
